<compile_context>
chip_gen: v6e
topology: v6e:2x2x1
jax: 0.10.0
libtpu: 0.0.40
codegen_flags: <defaults>
</compile_context>

<pallas_src>
import functools

import jax
import jax.numpy as jnp
from jax.experimental import pallas as pl
from jax.experimental.pallas import tpu as pltpu


# 48 MiB: comfortably under v7x's 64 MiB physical VMEM, and raises the scoped
# defaults on v5e (16 MiB) / v6e (32 MiB) so larger row blocks are accepted.
_VMEM_LIMIT = 48 * 1024 * 1024


def _ds(start, size, stride):
    return pl.ds(start, size) if stride == 1 else pl.ds(start, size, stride)


# ---------------------------------------------------------------------------
# Kernel 1: partial convolution, R output rows per (n, row_block) grid point.
#           Weights are fully VMEM-resident; input image is resident per batch
#           element.  Also emits per-row-block (sum, sumsq) stats for BN.
# ---------------------------------------------------------------------------
def _pconv_rowblock_kernel(xv_ref, m_ref, wf_ref, wm_ref, b_ref,
                           feat_ref, omask_ref, stats_ref,
                           *, kh, kw, rows, wo, stride):
    r = pl.program_id(1)
    row0 = pl.multiple_of(r * (rows * stride), rows * stride)

    m = rows * wo
    c_out_pad = feat_ref.shape[-1]
    facc = jnp.zeros((m, c_out_pad), jnp.float32)   # register accumulators
    macc = jnp.zeros((m, c_out_pad), jnp.float32)

    # kh*kw taps, each a (R*Wo, C_in) @ (C_in, C_out_pad) MXU matmul (bf16 in,
    # f32 accumulation).  Weights never leave VMEM.
    for ki in range(kh):
        for kj in range(kw):
            xs = xv_ref[_ds(row0 + ki, rows, stride), _ds(kj, wo, stride), :]
            ms = m_ref[_ds(row0 + ki, rows, stride), _ds(kj, wo, stride), :]
            xs = xs.reshape(m, xs.shape[-1])
            ms = ms.reshape(m, ms.shape[-1])
            facc = facc + jnp.dot(xs, wf_ref[ki, kj],
                                  preferred_element_type=jnp.float32)
            macc = macc + jnp.dot(ms, wm_ref[ki, kj],
                                  preferred_element_type=jnp.float32)

    # Partial-conv renormalization.  Mask entries are exact 0/1 in bf16 and the
    # accumulation is f32, so `macc == 0` matches the f32 reference test for
    # any practical (non-underflowing) mask-conv weights.
    invalid = macc == jnp.float32(0.0)
    sum_mask = jnp.where(invalid, jnp.float32(1.0), macc)
    # (conv_out - bias)/sum_mask + bias == conv_nobias/sum_mask + bias
    out = facc * pl.reciprocal(sum_mask, approx=True) + b_ref[...]
    out = jnp.where(invalid, jnp.float32(0.0), out)

    feat_ref[...] = out.reshape(feat_ref.shape).astype(feat_ref.dtype)
    omask_ref[...] = jnp.where(invalid, jnp.float32(0.0), jnp.float32(1.0)) \
        .reshape(omask_ref.shape).astype(omask_ref.dtype)

    # batched per-row-block channel stats (f32, computed pre-cast) for BN
    stats_ref[0:1, :] = jnp.sum(out, axis=0, keepdims=True)
    stats_ref[1:2, :] = jnp.sum(out * out, axis=0, keepdims=True)


# ---------------------------------------------------------------------------
# Kernel 2: tiled BN-apply + activation:  y = act(x * scale + shift)
# ---------------------------------------------------------------------------
def _bn_act_kernel(x_ref, scale_ref, shift_ref, o_ref, *, neg_slope):
    y = x_ref[...].astype(jnp.float32) * scale_ref[...] + shift_ref[...]
    if neg_slope == 0.0:                      # ReLU
        y = jnp.maximum(y, jnp.float32(0.0))
    elif neg_slope != 1.0:                    # LeakyReLU (1.0 -> identity)
        y = jnp.maximum(y, jnp.float32(0.0)) \
            + jnp.float32(neg_slope) * jnp.minimum(y, jnp.float32(0.0))
    o_ref[...] = y


def _pick_tile(m, cap=1024):
    for t in (1024, 512, 256, 128, 64, 32, 16, 8):
        if t <= cap and m % t == 0:
            return t
    # awkward m: capped tile + ragged (masked) trailing block via pl.cdiv
    return min(m, 256)


# ---------------------------------------------------------------------------
# Host wrapper (NCHW in / NCHW out, matching the PyTorch module API).
# ---------------------------------------------------------------------------
def pconv2d_block(x, mask, w_f, b_f, w_m, gamma, beta, *,
                  stride=1, padding=0, eps=1e-5,
                  bn=True, activation="ReLU", slope_leaky=0.2,
                  feat_dtype=jnp.float32):
    n, c_in, h, w = x.shape
    c_out, _, kh, kw = w_f.shape
    ho = (h + 2 * padding - kh) // stride + 1
    wo = (w + 2 * padding - kw) // stride + 1
    hp, wp = h + 2 * padding, w + 2 * padding

    c_out_pad = ((c_out + 127) // 128) * 128          # lane-dense output width
    cpad = c_out_pad - c_out

    # Rows per grid step: largest of (8,4,2,1) dividing Ho whose output block
    # stays comfortably inside VMEM (sized for v7x's 64 MiB physical VMEM).
    rows = 1
    for cand in (8, 4, 2):
        if ho % cand == 0 and cand * wo * c_out_pad * 4 * 6 <= 12 * 1024 * 1024:
            rows = cand
            break
    nrb = ho // rows

    # NHWC, spatially padded.  Both feature and mask operands feed the MXU in
    # bf16 with f32 accumulation (mask values 0/1 are exact in bf16).
    pad_cfg = ((0, 0), (padding, padding), (padding, padding), (0, 0))
    xv = jnp.pad((x * mask).transpose(0, 2, 3, 1), pad_cfg).astype(jnp.bfloat16)
    mp = jnp.pad(mask.transpose(0, 2, 3, 1), pad_cfg).astype(jnp.bfloat16)

    # weights: (C_out, C_in, kh, kw) -> (kh, kw, C_in, C_out_pad), VMEM-resident
    wf_r = jnp.pad(w_f.transpose(2, 3, 1, 0),
                   ((0, 0), (0, 0), (0, 0), (0, cpad))).astype(jnp.bfloat16)
    wm_r = jnp.pad(w_m.transpose(2, 3, 1, 0),
                   ((0, 0), (0, 0), (0, 0), (0, cpad))).astype(jnp.bfloat16)
    b_r = jnp.pad(b_f, (0, cpad)).reshape(1, c_out_pad).astype(jnp.float32)

    kernel = functools.partial(_pconv_rowblock_kernel,
                               kh=kh, kw=kw, rows=rows, wo=wo, stride=stride)
    feat, omask, stats = pl.pallas_call(
        kernel,
        out_shape=(jax.ShapeDtypeStruct((n, ho, wo, c_out_pad), feat_dtype),
                   jax.ShapeDtypeStruct((n, ho, wo, c_out_pad), jnp.bfloat16),
                   jax.ShapeDtypeStruct((n, nrb, 2, c_out_pad), jnp.float32)),
        grid=(n, nrb),
        in_specs=[
            # whole padded image per batch element; re-DMA'd only when b changes
            pl.BlockSpec((None, hp, wp, c_in), lambda b, r: (b, 0, 0, 0)),
            pl.BlockSpec((None, hp, wp, c_in), lambda b, r: (b, 0, 0, 0)),
            # fully-resident weights / bias (constant index maps -> one DMA)
            pl.BlockSpec((kh, kw, c_in, c_out_pad), lambda b, r: (0, 0, 0, 0)),
            pl.BlockSpec((kh, kw, c_in, c_out_pad), lambda b, r: (0, 0, 0, 0)),
            pl.BlockSpec((1, c_out_pad), lambda b, r: (0, 0)),
        ],
        out_specs=(
            pl.BlockSpec((None, rows, wo, c_out_pad), lambda b, r: (b, r, 0, 0)),
            pl.BlockSpec((None, rows, wo, c_out_pad), lambda b, r: (b, r, 0, 0)),
            pl.BlockSpec((None, None, 2, c_out_pad), lambda b, r: (b, r, 0, 0)),
        ),
        compiler_params=pltpu.CompilerParams(
            dimension_semantics=("parallel", "parallel"),
            vmem_limit_bytes=_VMEM_LIMIT),
    )(xv, mp, wf_r, wm_r, b_r)

    # ---- BatchNorm batch statistics (tiny host reduction over block sums) ----
    # NOTE: var = E[x^2] - E[x]^2 in f32 (same biased batch var PyTorch uses for
    # normalization in train mode); susceptible to cancellation for huge
    # activations -- acceptable for this block's post-renorm features.
    m_total = n * ho * wo
    ssum = jnp.sum(stats, axis=(0, 1))                       # (2, C_out_pad)
    mean = ssum[0] / m_total
    var = jnp.maximum(ssum[1] / m_total - mean * mean, 0.0)

    if bn:
        gamma_p = jnp.pad(gamma.astype(jnp.float32), (0, cpad), constant_values=1.0)
        beta_p = jnp.pad(beta.astype(jnp.float32), (0, cpad))
        scale = gamma_p * jax.lax.rsqrt(var + jnp.float32(eps))
        shift = beta_p - mean * scale
    else:
        scale = jnp.ones((c_out_pad,), jnp.float32)
        shift = jnp.zeros((c_out_pad,), jnp.float32)

    if activation == "ReLU":
        neg_slope = 0.0
    elif activation == "LeakyReLU":
        neg_slope = float(slope_leaky)
    else:
        neg_slope = 1.0                                      # identity

    # ---- tiled BN-apply + activation pass (HBM-roofline elementwise) ----
    feat_flat = feat.reshape(m_total, c_out_pad)
    tile_m = _pick_tile(m_total)
    y = pl.pallas_call(
        functools.partial(_bn_act_kernel, neg_slope=neg_slope),
        out_shape=jax.ShapeDtypeStruct((m_total, c_out_pad), jnp.float32),
        grid=(pl.cdiv(m_total, tile_m),),
        in_specs=[pl.BlockSpec((tile_m, c_out_pad), lambda i: (i, 0)),
                  pl.BlockSpec((1, c_out_pad), lambda i: (0, 0)),
                  pl.BlockSpec((1, c_out_pad), lambda i: (0, 0))],
        out_specs=pl.BlockSpec((tile_m, c_out_pad), lambda i: (i, 0)),
        compiler_params=pltpu.CompilerParams(
            dimension_semantics=("parallel",),
            vmem_limit_bytes=_VMEM_LIMIT),
    )(feat_flat, scale.reshape(1, c_out_pad), shift.reshape(1, c_out_pad))

    # back to NCHW (module API); drop channel padding.
    # TODO(synk): if the surrounding model consumes NHWC, skip this transpose.
    out_feature = y.reshape(n, ho, wo, c_out_pad)[..., :c_out].transpose(0, 3, 1, 2)
    out_mask = omask[..., :c_out].astype(jnp.float32).transpose(0, 3, 1, 2)
    return out_feature, out_mask


if __name__ == "__main__":
    key = jax.random.PRNGKey(0)
    N, C_in, H, W = 2, 4, 16, 16
    C_out, K = 8, 3
    stride, padding = 1, 1

    k0, k1, k2, k3, k4 = jax.random.split(key, 5)
    x = jax.random.normal(k0, (N, C_in, H, W), jnp.float32)
    mask = (jax.random.uniform(k1, (N, C_in, H, W)) > 0.3).astype(jnp.float32)

    # deterministic parameter init (shapes match nn.Conv2d / nn.BatchNorm2d)
    fan_in = C_in * K * K
    bound = 1.0 / (fan_in ** 0.5)
    w_f = jax.random.uniform(k2, (C_out, C_in, K, K), jnp.float32, -bound, bound)
    b_f = jax.random.uniform(k3, (C_out,), jnp.float32, -bound, bound)
    w_m = jax.random.uniform(k4, (C_out, C_in, K, K), jnp.float32, -bound, bound)
    gamma = jnp.ones((C_out,), jnp.float32)   # BatchNorm2d weight
    beta = jnp.zeros((C_out,), jnp.float32)   # BatchNorm2d bias

    out_feature, out_mask = pconv2d_block(
        x, mask, w_f, b_f, w_m, gamma, beta,
        stride=stride, padding=padding, bn=True, activation="ReLU")
    jax.block_until_ready((out_feature, out_mask))

    assert out_feature.shape == (N, C_out, H, W)
    assert out_mask.shape == (N, C_out, H, W)
    print("KERNEL_OK")
</pallas_src>

<mosaic_0001>
module attributes {stable_mosaic.version = 11 : i64} {
  func.func @_pconv_rowblock_kernel(%arg0: i32, %arg1: i32, %arg2: memref<1x18x18x4xbf16, #tpu.memory_space<vmem>>, %arg3: memref<1x18x18x4xbf16, #tpu.memory_space<vmem>>, %arg4: memref<3x3x4x128xbf16, #tpu.memory_space<vmem>>, %arg5: memref<3x3x4x128xbf16, #tpu.memory_space<vmem>>, %arg6: memref<1x128xf32, #tpu.memory_space<vmem>>, %arg7: memref<1x8x16x128xf32, #tpu.memory_space<vmem>>, %arg8: memref<1x8x16x128xbf16, #tpu.memory_space<vmem>>, %arg9: memref<1x1x2x128xf32, #tpu.memory_space<vmem>>) attributes {dimension_semantics = [#tpu.dimension_semantics<parallel>, #tpu.dimension_semantics<parallel>], iteration_bounds = array<i64: 2, 2>, scalar_prefetch = 0 : i64, scratch_operands = 0 : i64, tpu.core_type = #tpu.core_type<tc>, window_params = [{transform_indices = @transform_0, window_bounds = array<i64: 1, 18, 18, 4>}, {transform_indices = @transform_1, window_bounds = array<i64: 1, 18, 18, 4>}, {pipeline_mode = #tpu.pipeline_mode<synchronous>, transform_indices = @transform_2, window_bounds = array<i64: 3, 3, 4, 128>}, {pipeline_mode = #tpu.pipeline_mode<synchronous>, transform_indices = @transform_3, window_bounds = array<i64: 3, 3, 4, 128>}, {pipeline_mode = #tpu.pipeline_mode<synchronous>, transform_indices = @transform_4, window_bounds = array<i64: 1, 128>}, {transform_indices = @transform_5, window_bounds = array<i64: 1, 8, 16, 128>}, {transform_indices = @transform_6, window_bounds = array<i64: 1, 8, 16, 128>}, {transform_indices = @transform_7, window_bounds = array<i64: 1, 1, 2, 128>}]} {
    %c8_i32 = arith.constant 8 : i32
    %0 = arith.muli %arg1, %c8_i32 : i32
    %1 = tpu.assume_multiple %0, 8 : i32
    %cst = arith.constant 0.000000e+00 : f32
    %2 = vector.broadcast %cst : f32 to vector<128x128xf32>
    %cst_0 = arith.constant 0.000000e+00 : f32
    %3 = vector.broadcast %cst_0 : f32 to vector<128x128xf32>
    %c0_i32 = arith.constant 0 : i32
    %4 = arith.addi %1, %c0_i32 : i32
    %c0 = arith.constant 0 : index
    %5 = arith.index_cast %4 : i32 to index
    %c0_1 = arith.constant 0 : index
    %c0_2 = arith.constant 0 : index
    %6 = vector.load %arg2[%c0, %5, %c0_1, %c0_2] : memref<1x18x18x4xbf16, #tpu.memory_space<vmem>>, vector<1x8x16x4xbf16>
    %7 = vector.shape_cast %6 : vector<1x8x16x4xbf16> to vector<8x16x4xbf16>
    %c0_i32_3 = arith.constant 0 : i32
    %8 = arith.addi %1, %c0_i32_3 : i32
    %c0_4 = arith.constant 0 : index
    %9 = arith.index_cast %8 : i32 to index
    %c0_5 = arith.constant 0 : index
    %c0_6 = arith.constant 0 : index
    %10 = vector.load %arg3[%c0_4, %9, %c0_5, %c0_6] : memref<1x18x18x4xbf16, #tpu.memory_space<vmem>>, vector<1x8x16x4xbf16>
    %11 = vector.shape_cast %10 : vector<1x8x16x4xbf16> to vector<8x16x4xbf16>
    %12 = vector.shape_cast %7 : vector<8x16x4xbf16> to vector<128x4xbf16>
    %13 = vector.shape_cast %11 : vector<8x16x4xbf16> to vector<128x4xbf16>
    %c0_7 = arith.constant 0 : index
    %c0_8 = arith.constant 0 : index
    %c0_9 = arith.constant 0 : index
    %c0_10 = arith.constant 0 : index
    %14 = vector.load %arg4[%c0_7, %c0_8, %c0_9, %c0_10] : memref<3x3x4x128xbf16, #tpu.memory_space<vmem>>, vector<1x1x4x128xbf16>
    %15 = vector.shape_cast %14 : vector<1x1x4x128xbf16> to vector<4x128xbf16>
    %cst_11 = arith.constant dense<0.000000e+00> : vector<128x128xf32>
    %16 = tpu.matmul %12, %15, %cst_11 {dimension_numbers = #tpu.dot_dimension_numbers<[1], [0], [0], [1], [0, 0, 1, 1], [], []>} : vector<128x4xbf16>, vector<4x128xbf16>, vector<128x128xf32> -> vector<128x128xf32>
    %17 = arith.addf %2, %16 : vector<128x128xf32>
    %c0_12 = arith.constant 0 : index
    %c0_13 = arith.constant 0 : index
    %c0_14 = arith.constant 0 : index
    %c0_15 = arith.constant 0 : index
    %18 = vector.load %arg5[%c0_12, %c0_13, %c0_14, %c0_15] : memref<3x3x4x128xbf16, #tpu.memory_space<vmem>>, vector<1x1x4x128xbf16>
    %19 = vector.shape_cast %18 : vector<1x1x4x128xbf16> to vector<4x128xbf16>
    %cst_16 = arith.constant dense<0.000000e+00> : vector<128x128xf32>
    %20 = tpu.matmul %13, %19, %cst_16 {dimension_numbers = #tpu.dot_dimension_numbers<[1], [0], [0], [1], [0, 0, 1, 1], [], []>} : vector<128x4xbf16>, vector<4x128xbf16>, vector<128x128xf32> -> vector<128x128xf32>
    %21 = arith.addf %3, %20 : vector<128x128xf32>
    %c0_i32_17 = arith.constant 0 : i32
    %22 = arith.addi %1, %c0_i32_17 : i32
    %c0_18 = arith.constant 0 : index
    %23 = arith.index_cast %22 : i32 to index
    %c1 = arith.constant 1 : index
    %c0_19 = arith.constant 0 : index
    %24 = vector.load %arg2[%c0_18, %23, %c1, %c0_19] : memref<1x18x18x4xbf16, #tpu.memory_space<vmem>>, vector<1x8x16x4xbf16>
    %25 = vector.shape_cast %24 : vector<1x8x16x4xbf16> to vector<8x16x4xbf16>
    %c0_i32_20 = arith.constant 0 : i32
    %26 = arith.addi %1, %c0_i32_20 : i32
    %c0_21 = arith.constant 0 : index
    %27 = arith.index_cast %26 : i32 to index
    %c1_22 = arith.constant 1 : index
    %c0_23 = arith.constant 0 : index
    %28 = vector.load %arg3[%c0_21, %27, %c1_22, %c0_23] : memref<1x18x18x4xbf16, #tpu.memory_space<vmem>>, vector<1x8x16x4xbf16>
    %29 = vector.shape_cast %28 : vector<1x8x16x4xbf16> to vector<8x16x4xbf16>
    %30 = vector.shape_cast %25 : vector<8x16x4xbf16> to vector<128x4xbf16>
    %31 = vector.shape_cast %29 : vector<8x16x4xbf16> to vector<128x4xbf16>
    %c0_24 = arith.constant 0 : index
    %c1_25 = arith.constant 1 : index
    %c0_26 = arith.constant 0 : index
    %c0_27 = arith.constant 0 : index
    %32 = vector.load %arg4[%c0_24, %c1_25, %c0_26, %c0_27] : memref<3x3x4x128xbf16, #tpu.memory_space<vmem>>, vector<1x1x4x128xbf16>
    %33 = vector.shape_cast %32 : vector<1x1x4x128xbf16> to vector<4x128xbf16>
    %cst_28 = arith.constant dense<0.000000e+00> : vector<128x128xf32>
    %34 = tpu.matmul %30, %33, %cst_28 {dimension_numbers = #tpu.dot_dimension_numbers<[1], [0], [0], [1], [0, 0, 1, 1], [], []>} : vector<128x4xbf16>, vector<4x128xbf16>, vector<128x128xf32> -> vector<128x128xf32>
    %35 = arith.addf %17, %34 : vector<128x128xf32>
    %c0_29 = arith.constant 0 : index
    %c1_30 = arith.constant 1 : index
    %c0_31 = arith.constant 0 : index
    %c0_32 = arith.constant 0 : index
    %36 = vector.load %arg5[%c0_29, %c1_30, %c0_31, %c0_32] : memref<3x3x4x128xbf16, #tpu.memory_space<vmem>>, vector<1x1x4x128xbf16>
    %37 = vector.shape_cast %36 : vector<1x1x4x128xbf16> to vector<4x128xbf16>
    %cst_33 = arith.constant dense<0.000000e+00> : vector<128x128xf32>
    %38 = tpu.matmul %31, %37, %cst_33 {dimension_numbers = #tpu.dot_dimension_numbers<[1], [0], [0], [1], [0, 0, 1, 1], [], []>} : vector<128x4xbf16>, vector<4x128xbf16>, vector<128x128xf32> -> vector<128x128xf32>
    %39 = arith.addf %21, %38 : vector<128x128xf32>
    %c0_i32_34 = arith.constant 0 : i32
    %40 = arith.addi %1, %c0_i32_34 : i32
    %c0_35 = arith.constant 0 : index
    %41 = arith.index_cast %40 : i32 to index
    %c2 = arith.constant 2 : index
    %c0_36 = arith.constant 0 : index
    %42 = vector.load %arg2[%c0_35, %41, %c2, %c0_36] : memref<1x18x18x4xbf16, #tpu.memory_space<vmem>>, vector<1x8x16x4xbf16>
    %43 = vector.shape_cast %42 : vector<1x8x16x4xbf16> to vector<8x16x4xbf16>
    %c0_i32_37 = arith.constant 0 : i32
    %44 = arith.addi %1, %c0_i32_37 : i32
    %c0_38 = arith.constant 0 : index
    %45 = arith.index_cast %44 : i32 to index
    %c2_39 = arith.constant 2 : index
    %c0_40 = arith.constant 0 : index
    %46 = vector.load %arg3[%c0_38, %45, %c2_39, %c0_40] : memref<1x18x18x4xbf16, #tpu.memory_space<vmem>>, vector<1x8x16x4xbf16>
    %47 = vector.shape_cast %46 : vector<1x8x16x4xbf16> to vector<8x16x4xbf16>
    %48 = vector.shape_cast %43 : vector<8x16x4xbf16> to vector<128x4xbf16>
    %49 = vector.shape_cast %47 : vector<8x16x4xbf16> to vector<128x4xbf16>
    %c0_41 = arith.constant 0 : index
    %c2_42 = arith.constant 2 : index
    %c0_43 = arith.constant 0 : index
    %c0_44 = arith.constant 0 : index
    %50 = vector.load %arg4[%c0_41, %c2_42, %c0_43, %c0_44] : memref<3x3x4x128xbf16, #tpu.memory_space<vmem>>, vector<1x1x4x128xbf16>
    %51 = vector.shape_cast %50 : vector<1x1x4x128xbf16> to vector<4x128xbf16>
    %cst_45 = arith.constant dense<0.000000e+00> : vector<128x128xf32>
    %52 = tpu.matmul %48, %51, %cst_45 {dimension_numbers = #tpu.dot_dimension_numbers<[1], [0], [0], [1], [0, 0, 1, 1], [], []>} : vector<128x4xbf16>, vector<4x128xbf16>, vector<128x128xf32> -> vector<128x128xf32>
    %53 = arith.addf %35, %52 : vector<128x128xf32>
    %c0_46 = arith.constant 0 : index
    %c2_47 = arith.constant 2 : index
    %c0_48 = arith.constant 0 : index
    %c0_49 = arith.constant 0 : index
    %54 = vector.load %arg5[%c0_46, %c2_47, %c0_48, %c0_49] : memref<3x3x4x128xbf16, #tpu.memory_space<vmem>>, vector<1x1x4x128xbf16>
    %55 = vector.shape_cast %54 : vector<1x1x4x128xbf16> to vector<4x128xbf16>
    %cst_50 = arith.constant dense<0.000000e+00> : vector<128x128xf32>
    %56 = tpu.matmul %49, %55, %cst_50 {dimension_numbers = #tpu.dot_dimension_numbers<[1], [0], [0], [1], [0, 0, 1, 1], [], []>} : vector<128x4xbf16>, vector<4x128xbf16>, vector<128x128xf32> -> vector<128x128xf32>
    %57 = arith.addf %39, %56 : vector<128x128xf32>
    %c1_i32 = arith.constant 1 : i32
    %58 = arith.addi %1, %c1_i32 : i32
    %c0_51 = arith.constant 0 : index
    %59 = arith.index_cast %58 : i32 to index
    %c0_52 = arith.constant 0 : index
    %c0_53 = arith.constant 0 : index
    %60 = vector.load %arg2[%c0_51, %59, %c0_52, %c0_53] : memref<1x18x18x4xbf16, #tpu.memory_space<vmem>>, vector<1x8x16x4xbf16>
    %61 = vector.shape_cast %60 : vector<1x8x16x4xbf16> to vector<8x16x4xbf16>
    %c1_i32_54 = arith.constant 1 : i32
    %62 = arith.addi %1, %c1_i32_54 : i32
    %c0_55 = arith.constant 0 : index
    %63 = arith.index_cast %62 : i32 to index
    %c0_56 = arith.constant 0 : index
    %c0_57 = arith.constant 0 : index
    %64 = vector.load %arg3[%c0_55, %63, %c0_56, %c0_57] : memref<1x18x18x4xbf16, #tpu.memory_space<vmem>>, vector<1x8x16x4xbf16>
    %65 = vector.shape_cast %64 : vector<1x8x16x4xbf16> to vector<8x16x4xbf16>
    %66 = vector.shape_cast %61 : vector<8x16x4xbf16> to vector<128x4xbf16>
    %67 = vector.shape_cast %65 : vector<8x16x4xbf16> to vector<128x4xbf16>
    %c1_58 = arith.constant 1 : index
    %c0_59 = arith.constant 0 : index
    %c0_60 = arith.constant 0 : index
    %c0_61 = arith.constant 0 : index
    %68 = vector.load %arg4[%c1_58, %c0_59, %c0_60, %c0_61] : memref<3x3x4x128xbf16, #tpu.memory_space<vmem>>, vector<1x1x4x128xbf16>
    %69 = vector.shape_cast %68 : vector<1x1x4x128xbf16> to vector<4x128xbf16>
    %cst_62 = arith.constant dense<0.000000e+00> : vector<128x128xf32>
    %70 = tpu.matmul %66, %69, %cst_62 {dimension_numbers = #tpu.dot_dimension_numbers<[1], [0], [0], [1], [0, 0, 1, 1], [], []>} : vector<128x4xbf16>, vector<4x128xbf16>, vector<128x128xf32> -> vector<128x128xf32>
    %71 = arith.addf %53, %70 : vector<128x128xf32>
    %c1_63 = arith.constant 1 : index
    %c0_64 = arith.constant 0 : index
    %c0_65 = arith.constant 0 : index
    %c0_66 = arith.constant 0 : index
    %72 = vector.load %arg5[%c1_63, %c0_64, %c0_65, %c0_66] : memref<3x3x4x128xbf16, #tpu.memory_space<vmem>>, vector<1x1x4x128xbf16>
    %73 = vector.shape_cast %72 : vector<1x1x4x128xbf16> to vector<4x128xbf16>
    %cst_67 = arith.constant dense<0.000000e+00> : vector<128x128xf32>
    %74 = tpu.matmul %67, %73, %cst_67 {dimension_numbers = #tpu.dot_dimension_numbers<[1], [0], [0], [1], [0, 0, 1, 1], [], []>} : vector<128x4xbf16>, vector<4x128xbf16>, vector<128x128xf32> -> vector<128x128xf32>
    %75 = arith.addf %57, %74 : vector<128x128xf32>
    %c1_i32_68 = arith.constant 1 : i32
    %76 = arith.addi %1, %c1_i32_68 : i32
    %c0_69 = arith.constant 0 : index
    %77 = arith.index_cast %76 : i32 to index
    %c1_70 = arith.constant 1 : index
    %c0_71 = arith.constant 0 : index
    %78 = vector.load %arg2[%c0_69, %77, %c1_70, %c0_71] : memref<1x18x18x4xbf16, #tpu.memory_space<vmem>>, vector<1x8x16x4xbf16>
    %79 = vector.shape_cast %78 : vector<1x8x16x4xbf16> to vector<8x16x4xbf16>
    %c1_i32_72 = arith.constant 1 : i32
    %80 = arith.addi %1, %c1_i32_72 : i32
    %c0_73 = arith.constant 0 : index
    %81 = arith.index_cast %80 : i32 to index
    %c1_74 = arith.constant 1 : index
    %c0_75 = arith.constant 0 : index
    %82 = vector.load %arg3[%c0_73, %81, %c1_74, %c0_75] : memref<1x18x18x4xbf16, #tpu.memory_space<vmem>>, vector<1x8x16x4xbf16>
    %83 = vector.shape_cast %82 : vector<1x8x16x4xbf16> to vector<8x16x4xbf16>
    %84 = vector.shape_cast %79 : vector<8x16x4xbf16> to vector<128x4xbf16>
    %85 = vector.shape_cast %83 : vector<8x16x4xbf16> to vector<128x4xbf16>
    %c1_76 = arith.constant 1 : index
    %c1_77 = arith.constant 1 : index
    %c0_78 = arith.constant 0 : index
    %c0_79 = arith.constant 0 : index
    %86 = vector.load %arg4[%c1_76, %c1_77, %c0_78, %c0_79] : memref<3x3x4x128xbf16, #tpu.memory_space<vmem>>, vector<1x1x4x128xbf16>
    %87 = vector.shape_cast %86 : vector<1x1x4x128xbf16> to vector<4x128xbf16>
    %cst_80 = arith.constant dense<0.000000e+00> : vector<128x128xf32>
    %88 = tpu.matmul %84, %87, %cst_80 {dimension_numbers = #tpu.dot_dimension_numbers<[1], [0], [0], [1], [0, 0, 1, 1], [], []>} : vector<128x4xbf16>, vector<4x128xbf16>, vector<128x128xf32> -> vector<128x128xf32>
    %89 = arith.addf %71, %88 : vector<128x128xf32>
    %c1_81 = arith.constant 1 : index
    %c1_82 = arith.constant 1 : index
    %c0_83 = arith.constant 0 : index
    %c0_84 = arith.constant 0 : index
    %90 = vector.load %arg5[%c1_81, %c1_82, %c0_83, %c0_84] : memref<3x3x4x128xbf16, #tpu.memory_space<vmem>>, vector<1x1x4x128xbf16>
    %91 = vector.shape_cast %90 : vector<1x1x4x128xbf16> to vector<4x128xbf16>
    %cst_85 = arith.constant dense<0.000000e+00> : vector<128x128xf32>
    %92 = tpu.matmul %85, %91, %cst_85 {dimension_numbers = #tpu.dot_dimension_numbers<[1], [0], [0], [1], [0, 0, 1, 1], [], []>} : vector<128x4xbf16>, vector<4x128xbf16>, vector<128x128xf32> -> vector<128x128xf32>
    %93 = arith.addf %75, %92 : vector<128x128xf32>
    %c1_i32_86 = arith.constant 1 : i32
    %94 = arith.addi %1, %c1_i32_86 : i32
    %c0_87 = arith.constant 0 : index
    %95 = arith.index_cast %94 : i32 to index
    %c2_88 = arith.constant 2 : index
    %c0_89 = arith.constant 0 : index
    %96 = vector.load %arg2[%c0_87, %95, %c2_88, %c0_89] : memref<1x18x18x4xbf16, #tpu.memory_space<vmem>>, vector<1x8x16x4xbf16>
    %97 = vector.shape_cast %96 : vector<1x8x16x4xbf16> to vector<8x16x4xbf16>
    %c1_i32_90 = arith.constant 1 : i32
    %98 = arith.addi %1, %c1_i32_90 : i32
    %c0_91 = arith.constant 0 : index
    %99 = arith.index_cast %98 : i32 to index
    %c2_92 = arith.constant 2 : index
    %c0_93 = arith.constant 0 : index
    %100 = vector.load %arg3[%c0_91, %99, %c2_92, %c0_93] : memref<1x18x18x4xbf16, #tpu.memory_space<vmem>>, vector<1x8x16x4xbf16>
    %101 = vector.shape_cast %100 : vector<1x8x16x4xbf16> to vector<8x16x4xbf16>
    %102 = vector.shape_cast %97 : vector<8x16x4xbf16> to vector<128x4xbf16>
    %103 = vector.shape_cast %101 : vector<8x16x4xbf16> to vector<128x4xbf16>
    %c1_94 = arith.constant 1 : index
    %c2_95 = arith.constant 2 : index
    %c0_96 = arith.constant 0 : index
    %c0_97 = arith.constant 0 : index
    %104 = vector.load %arg4[%c1_94, %c2_95, %c0_96, %c0_97] : memref<3x3x4x128xbf16, #tpu.memory_space<vmem>>, vector<1x1x4x128xbf16>
    %105 = vector.shape_cast %104 : vector<1x1x4x128xbf16> to vector<4x128xbf16>
    %cst_98 = arith.constant dense<0.000000e+00> : vector<128x128xf32>
    %106 = tpu.matmul %102, %105, %cst_98 {dimension_numbers = #tpu.dot_dimension_numbers<[1], [0], [0], [1], [0, 0, 1, 1], [], []>} : vector<128x4xbf16>, vector<4x128xbf16>, vector<128x128xf32> -> vector<128x128xf32>
    %107 = arith.addf %89, %106 : vector<128x128xf32>
    %c1_99 = arith.constant 1 : index
    %c2_100 = arith.constant 2 : index
    %c0_101 = arith.constant 0 : index
    %c0_102 = arith.constant 0 : index
    %108 = vector.load %arg5[%c1_99, %c2_100, %c0_101, %c0_102] : memref<3x3x4x128xbf16, #tpu.memory_space<vmem>>, vector<1x1x4x128xbf16>
    %109 = vector.shape_cast %108 : vector<1x1x4x128xbf16> to vector<4x128xbf16>
    %cst_103 = arith.constant dense<0.000000e+00> : vector<128x128xf32>
    %110 = tpu.matmul %103, %109, %cst_103 {dimension_numbers = #tpu.dot_dimension_numbers<[1], [0], [0], [1], [0, 0, 1, 1], [], []>} : vector<128x4xbf16>, vector<4x128xbf16>, vector<128x128xf32> -> vector<128x128xf32>
    %111 = arith.addf %93, %110 : vector<128x128xf32>
    %c2_i32 = arith.constant 2 : i32
    %112 = arith.addi %1, %c2_i32 : i32
    %c0_104 = arith.constant 0 : index
    %113 = arith.index_cast %112 : i32 to index
    %c0_105 = arith.constant 0 : index
    %c0_106 = arith.constant 0 : index
    %114 = vector.load %arg2[%c0_104, %113, %c0_105, %c0_106] : memref<1x18x18x4xbf16, #tpu.memory_space<vmem>>, vector<1x8x16x4xbf16>
    %115 = vector.shape_cast %114 : vector<1x8x16x4xbf16> to vector<8x16x4xbf16>
    %c2_i32_107 = arith.constant 2 : i32
    %116 = arith.addi %1, %c2_i32_107 : i32
    %c0_108 = arith.constant 0 : index
    %117 = arith.index_cast %116 : i32 to index
    %c0_109 = arith.constant 0 : index
    %c0_110 = arith.constant 0 : index
    %118 = vector.load %arg3[%c0_108, %117, %c0_109, %c0_110] : memref<1x18x18x4xbf16, #tpu.memory_space<vmem>>, vector<1x8x16x4xbf16>
    %119 = vector.shape_cast %118 : vector<1x8x16x4xbf16> to vector<8x16x4xbf16>
    %120 = vector.shape_cast %115 : vector<8x16x4xbf16> to vector<128x4xbf16>
    %121 = vector.shape_cast %119 : vector<8x16x4xbf16> to vector<128x4xbf16>
    %c2_111 = arith.constant 2 : index
    %c0_112 = arith.constant 0 : index
    %c0_113 = arith.constant 0 : index
    %c0_114 = arith.constant 0 : index
    %122 = vector.load %arg4[%c2_111, %c0_112, %c0_113, %c0_114] : memref<3x3x4x128xbf16, #tpu.memory_space<vmem>>, vector<1x1x4x128xbf16>
    %123 = vector.shape_cast %122 : vector<1x1x4x128xbf16> to vector<4x128xbf16>
    %cst_115 = arith.constant dense<0.000000e+00> : vector<128x128xf32>
    %124 = tpu.matmul %120, %123, %cst_115 {dimension_numbers = #tpu.dot_dimension_numbers<[1], [0], [0], [1], [0, 0, 1, 1], [], []>} : vector<128x4xbf16>, vector<4x128xbf16>, vector<128x128xf32> -> vector<128x128xf32>
    %125 = arith.addf %107, %124 : vector<128x128xf32>
    %c2_116 = arith.constant 2 : index
    %c0_117 = arith.constant 0 : index
    %c0_118 = arith.constant 0 : index
    %c0_119 = arith.constant 0 : index
    %126 = vector.load %arg5[%c2_116, %c0_117, %c0_118, %c0_119] : memref<3x3x4x128xbf16, #tpu.memory_space<vmem>>, vector<1x1x4x128xbf16>
    %127 = vector.shape_cast %126 : vector<1x1x4x128xbf16> to vector<4x128xbf16>
    %cst_120 = arith.constant dense<0.000000e+00> : vector<128x128xf32>
    %128 = tpu.matmul %121, %127, %cst_120 {dimension_numbers = #tpu.dot_dimension_numbers<[1], [0], [0], [1], [0, 0, 1, 1], [], []>} : vector<128x4xbf16>, vector<4x128xbf16>, vector<128x128xf32> -> vector<128x128xf32>
    %129 = arith.addf %111, %128 : vector<128x128xf32>
    %c2_i32_121 = arith.constant 2 : i32
    %130 = arith.addi %1, %c2_i32_121 : i32
    %c0_122 = arith.constant 0 : index
    %131 = arith.index_cast %130 : i32 to index
    %c1_123 = arith.constant 1 : index
    %c0_124 = arith.constant 0 : index
    %132 = vector.load %arg2[%c0_122, %131, %c1_123, %c0_124] : memref<1x18x18x4xbf16, #tpu.memory_space<vmem>>, vector<1x8x16x4xbf16>
    %133 = vector.shape_cast %132 : vector<1x8x16x4xbf16> to vector<8x16x4xbf16>
    %c2_i32_125 = arith.constant 2 : i32
    %134 = arith.addi %1, %c2_i32_125 : i32
    %c0_126 = arith.constant 0 : index
    %135 = arith.index_cast %134 : i32 to index
    %c1_127 = arith.constant 1 : index
    %c0_128 = arith.constant 0 : index
    %136 = vector.load %arg3[%c0_126, %135, %c1_127, %c0_128] : memref<1x18x18x4xbf16, #tpu.memory_space<vmem>>, vector<1x8x16x4xbf16>
    %137 = vector.shape_cast %136 : vector<1x8x16x4xbf16> to vector<8x16x4xbf16>
    %138 = vector.shape_cast %133 : vector<8x16x4xbf16> to vector<128x4xbf16>
    %139 = vector.shape_cast %137 : vector<8x16x4xbf16> to vector<128x4xbf16>
    %c2_129 = arith.constant 2 : index
    %c1_130 = arith.constant 1 : index
    %c0_131 = arith.constant 0 : index
    %c0_132 = arith.constant 0 : index
    %140 = vector.load %arg4[%c2_129, %c1_130, %c0_131, %c0_132] : memref<3x3x4x128xbf16, #tpu.memory_space<vmem>>, vector<1x1x4x128xbf16>
    %141 = vector.shape_cast %140 : vector<1x1x4x128xbf16> to vector<4x128xbf16>
    %cst_133 = arith.constant dense<0.000000e+00> : vector<128x128xf32>
    %142 = tpu.matmul %138, %141, %cst_133 {dimension_numbers = #tpu.dot_dimension_numbers<[1], [0], [0], [1], [0, 0, 1, 1], [], []>} : vector<128x4xbf16>, vector<4x128xbf16>, vector<128x128xf32> -> vector<128x128xf32>
    %143 = arith.addf %125, %142 : vector<128x128xf32>
    %c2_134 = arith.constant 2 : index
    %c1_135 = arith.constant 1 : index
    %c0_136 = arith.constant 0 : index
    %c0_137 = arith.constant 0 : index
    %144 = vector.load %arg5[%c2_134, %c1_135, %c0_136, %c0_137] : memref<3x3x4x128xbf16, #tpu.memory_space<vmem>>, vector<1x1x4x128xbf16>
    %145 = vector.shape_cast %144 : vector<1x1x4x128xbf16> to vector<4x128xbf16>
    %cst_138 = arith.constant dense<0.000000e+00> : vector<128x128xf32>
    %146 = tpu.matmul %139, %145, %cst_138 {dimension_numbers = #tpu.dot_dimension_numbers<[1], [0], [0], [1], [0, 0, 1, 1], [], []>} : vector<128x4xbf16>, vector<4x128xbf16>, vector<128x128xf32> -> vector<128x128xf32>
    %147 = arith.addf %129, %146 : vector<128x128xf32>
    %c2_i32_139 = arith.constant 2 : i32
    %148 = arith.addi %1, %c2_i32_139 : i32
    %c0_140 = arith.constant 0 : index
    %149 = arith.index_cast %148 : i32 to index
    %c2_141 = arith.constant 2 : index
    %c0_142 = arith.constant 0 : index
    %150 = vector.load %arg2[%c0_140, %149, %c2_141, %c0_142] : memref<1x18x18x4xbf16, #tpu.memory_space<vmem>>, vector<1x8x16x4xbf16>
    %151 = vector.shape_cast %150 : vector<1x8x16x4xbf16> to vector<8x16x4xbf16>
    %c2_i32_143 = arith.constant 2 : i32
    %152 = arith.addi %1, %c2_i32_143 : i32
    %c0_144 = arith.constant 0 : index
    %153 = arith.index_cast %152 : i32 to index
    %c2_145 = arith.constant 2 : index
    %c0_146 = arith.constant 0 : index
    %154 = vector.load %arg3[%c0_144, %153, %c2_145, %c0_146] : memref<1x18x18x4xbf16, #tpu.memory_space<vmem>>, vector<1x8x16x4xbf16>
    %155 = vector.shape_cast %154 : vector<1x8x16x4xbf16> to vector<8x16x4xbf16>
    %156 = vector.shape_cast %151 : vector<8x16x4xbf16> to vector<128x4xbf16>
    %157 = vector.shape_cast %155 : vector<8x16x4xbf16> to vector<128x4xbf16>
    %c2_147 = arith.constant 2 : index
    %c2_148 = arith.constant 2 : index
    %c0_149 = arith.constant 0 : index
    %c0_150 = arith.constant 0 : index
    %158 = vector.load %arg4[%c2_147, %c2_148, %c0_149, %c0_150] : memref<3x3x4x128xbf16, #tpu.memory_space<vmem>>, vector<1x1x4x128xbf16>
    %159 = vector.shape_cast %158 : vector<1x1x4x128xbf16> to vector<4x128xbf16>
    %cst_151 = arith.constant dense<0.000000e+00> : vector<128x128xf32>
    %160 = tpu.matmul %156, %159, %cst_151 {dimension_numbers = #tpu.dot_dimension_numbers<[1], [0], [0], [1], [0, 0, 1, 1], [], []>} : vector<128x4xbf16>, vector<4x128xbf16>, vector<128x128xf32> -> vector<128x128xf32>
    %161 = arith.addf %143, %160 : vector<128x128xf32>
    %c2_152 = arith.constant 2 : index
    %c2_153 = arith.constant 2 : index
    %c0_154 = arith.constant 0 : index
    %c0_155 = arith.constant 0 : index
    %162 = vector.load %arg5[%c2_152, %c2_153, %c0_154, %c0_155] : memref<3x3x4x128xbf16, #tpu.memory_space<vmem>>, vector<1x1x4x128xbf16>
    %163 = vector.shape_cast %162 : vector<1x1x4x128xbf16> to vector<4x128xbf16>
    %cst_156 = arith.constant dense<0.000000e+00> : vector<128x128xf32>
    %164 = tpu.matmul %157, %163, %cst_156 {dimension_numbers = #tpu.dot_dimension_numbers<[1], [0], [0], [1], [0, 0, 1, 1], [], []>} : vector<128x4xbf16>, vector<4x128xbf16>, vector<128x128xf32> -> vector<128x128xf32>
    %165 = arith.addf %147, %164 : vector<128x128xf32>
    %cst_157 = arith.constant 0.000000e+00 : f32
    %166 = vector.broadcast %cst_157 : f32 to vector<128x128xf32>
    %167 = arith.cmpf oeq, %165, %166 : vector<128x128xf32>
    %cst_158 = arith.constant 1.000000e+00 : f32
    %168 = vector.broadcast %cst_158 : f32 to vector<128x128xf32>
    %169 = arith.select %167, %168, %165 : vector<128x128xi1>, vector<128x128xf32>
    %170 = tpu.reciprocal %169 {approx = true} : vector<128x128xf32> -> vector<128x128xf32>
    %171 = arith.mulf %161, %170 : vector<128x128xf32>
    %c0_159 = arith.constant 0 : index
    %c0_160 = arith.constant 0 : index
    %172 = vector.load %arg6[%c0_159, %c0_160] : memref<1x128xf32, #tpu.memory_space<vmem>>, vector<1x128xf32>
    %173 = vector.broadcast %172 : vector<1x128xf32> to vector<128x128xf32>
    %174 = arith.addf %171, %173 : vector<128x128xf32>
    %cst_161 = arith.constant 0.000000e+00 : f32
    %175 = vector.broadcast %cst_161 : f32 to vector<128x128xf32>
    %176 = arith.select %167, %175, %174 : vector<128x128xi1>, vector<128x128xf32>
    %177 = vector.shape_cast %176 : vector<128x128xf32> to vector<8x16x128xf32>
    %c0_162 = arith.constant 0 : index
    %c0_163 = arith.constant 0 : index
    %c0_164 = arith.constant 0 : index
    %c0_165 = arith.constant 0 : index
    %178 = vector.load %arg7[%c0_162, %c0_163, %c0_164, %c0_165] : memref<1x8x16x128xf32, #tpu.memory_space<vmem>>, vector<1x8x16x128xf32>
    %179 = vector.shape_cast %178 : vector<1x8x16x128xf32> to vector<8x16x128xf32>
    %180 = vector.shape_cast %177 : vector<8x16x128xf32> to vector<1x8x16x128xf32>
    tpu.vector_store %arg7[%c0_162, %c0_163, %c0_164, %c0_165], %180 {strides = array<i32>} : memref<1x8x16x128xf32, #tpu.memory_space<vmem>>, vector<1x8x16x128xf32>,
    %cst_166 = arith.constant 0.000000e+00 : f32
    %cst_167 = arith.constant 1.000000e+00 : f32
    %181 = vector.broadcast %cst_166 : f32 to vector<128x128xf32>
    %182 = vector.broadcast %cst_167 : f32 to vector<128x128xf32>
    %183 = arith.select %167, %181, %182 : vector<128x128xi1>, vector<128x128xf32>
    %184 = vector.shape_cast %183 : vector<128x128xf32> to vector<8x16x128xf32>
    %185 = arith.truncf %184 : vector<8x16x128xf32> to vector<8x16x128xbf16>
    %c0_168 = arith.constant 0 : index
    %c0_169 = arith.constant 0 : index
    %c0_170 = arith.constant 0 : index
    %c0_171 = arith.constant 0 : index
    %186 = vector.load %arg8[%c0_168, %c0_169, %c0_170, %c0_171] : memref<1x8x16x128xbf16, #tpu.memory_space<vmem>>, vector<1x8x16x128xbf16>
    %187 = vector.shape_cast %186 : vector<1x8x16x128xbf16> to vector<8x16x128xbf16>
    %188 = vector.shape_cast %185 : vector<8x16x128xbf16> to vector<1x8x16x128xbf16>
    tpu.vector_store %arg8[%c0_168, %c0_169, %c0_170, %c0_171], %188 {strides = array<i32>} : memref<1x8x16x128xbf16, #tpu.memory_space<vmem>>, vector<1x8x16x128xbf16>,
    %cst_172 = arith.constant dense<0.000000e+00> : vector<128xf32>
    %189 = vector.multi_reduction <add>, %176, %cst_172 [0] : vector<128x128xf32> to vector<128xf32>
    %190 = vector.shape_cast %189 : vector<128xf32> to vector<1x128xf32>
    %c0_173 = arith.constant 0 : index
    %c0_174 = arith.constant 0 : index
    %c0_175 = arith.constant 0 : index
    %c0_176 = arith.constant 0 : index
    %191 = vector.load %arg9[%c0_173, %c0_174, %c0_175, %c0_176] : memref<1x1x2x128xf32, #tpu.memory_space<vmem>>, vector<1x1x1x128xf32>
    %192 = vector.shape_cast %191 : vector<1x1x1x128xf32> to vector<1x128xf32>
    %193 = vector.shape_cast %190 : vector<1x128xf32> to vector<1x1x1x128xf32>
    tpu.vector_store %arg9[%c0_173, %c0_174, %c0_175, %c0_176], %193 {strides = array<i32>} : memref<1x1x2x128xf32, #tpu.memory_space<vmem>>, vector<1x1x1x128xf32>,
    %194 = arith.mulf %176, %176 : vector<128x128xf32>
    %cst_177 = arith.constant dense<0.000000e+00> : vector<128xf32>
    %195 = vector.multi_reduction <add>, %194, %cst_177 [0] : vector<128x128xf32> to vector<128xf32>
    %196 = vector.shape_cast %195 : vector<128xf32> to vector<1x128xf32>
    %c0_178 = arith.constant 0 : index
    %c0_179 = arith.constant 0 : index
    %c1_180 = arith.constant 1 : index
    %c0_181 = arith.constant 0 : index
    %197 = vector.load %arg9[%c0_178, %c0_179, %c1_180, %c0_181] : memref<1x1x2x128xf32, #tpu.memory_space<vmem>>, vector<1x1x1x128xf32>
    %198 = vector.shape_cast %197 : vector<1x1x1x128xf32> to vector<1x128xf32>
    %199 = vector.shape_cast %196 : vector<1x128xf32> to vector<1x1x1x128xf32>
    tpu.vector_store %arg9[%c0_178, %c0_179, %c1_180, %c0_181], %199 {strides = array<i32>} : memref<1x1x2x128xf32, #tpu.memory_space<vmem>>, vector<1x1x1x128xf32>,
    return
  }
  func.func @transform_0(%arg0: i32, %arg1: i32) -> (i32, i32, i32, i32) {
    %c0_i32 = arith.constant 0 : i32
    %c0_i32_0 = arith.constant 0 : i32
    %c0_i32_1 = arith.constant 0 : i32
    %c0_i32_2 = arith.constant 0 : i32
    return %arg0, %c0_i32, %c0_i32_0, %c0_i32_1 : i32, i32, i32, i32
  }
  func.func @transform_1(%arg0: i32, %arg1: i32) -> (i32, i32, i32, i32) {
    %c0_i32 = arith.constant 0 : i32
    %c0_i32_0 = arith.constant 0 : i32
    %c0_i32_1 = arith.constant 0 : i32
    %c0_i32_2 = arith.constant 0 : i32
    return %arg0, %c0_i32, %c0_i32_0, %c0_i32_1 : i32, i32, i32, i32
  }
  func.func @transform_2(%arg0: i32, %arg1: i32) -> (i32, i32, i32, i32) {
    %c0_i32 = arith.constant 0 : i32
    %c0_i32_0 = arith.constant 0 : i32
    %c0_i32_1 = arith.constant 0 : i32
    %c0_i32_2 = arith.constant 0 : i32
    %c0_i32_3 = arith.constant 0 : i32
    return %c0_i32, %c0_i32_0, %c0_i32_1, %c0_i32_2 : i32, i32, i32, i32
  }
  func.func @transform_3(%arg0: i32, %arg1: i32) -> (i32, i32, i32, i32) {
    %c0_i32 = arith.constant 0 : i32
    %c0_i32_0 = arith.constant 0 : i32
    %c0_i32_1 = arith.constant 0 : i32
    %c0_i32_2 = arith.constant 0 : i32
    %c0_i32_3 = arith.constant 0 : i32
    return %c0_i32, %c0_i32_0, %c0_i32_1, %c0_i32_2 : i32, i32, i32, i32
  }
  func.func @transform_4(%arg0: i32, %arg1: i32) -> (i32, i32) {
    %c0_i32 = arith.constant 0 : i32
    %c0_i32_0 = arith.constant 0 : i32
    %c0_i32_1 = arith.constant 0 : i32
    return %c0_i32, %c0_i32_0 : i32, i32
  }
  func.func @transform_5(%arg0: i32, %arg1: i32) -> (i32, i32, i32, i32) {
    %c0_i32 = arith.constant 0 : i32
    %c0_i32_0 = arith.constant 0 : i32
    %c0_i32_1 = arith.constant 0 : i32
    return %arg0, %arg1, %c0_i32, %c0_i32_0 : i32, i32, i32, i32
  }
  func.func @transform_6(%arg0: i32, %arg1: i32) -> (i32, i32, i32, i32) {
    %c0_i32 = arith.constant 0 : i32
    %c0_i32_0 = arith.constant 0 : i32
    %c0_i32_1 = arith.constant 0 : i32
    return %arg0, %arg1, %c0_i32, %c0_i32_0 : i32, i32, i32, i32
  }
  func.func @transform_7(%arg0: i32, %arg1: i32) -> (i32, i32, i32, i32) {
    %c0_i32 = arith.constant 0 : i32
    %c0_i32_0 = arith.constant 0 : i32
    %c0_i32_1 = arith.constant 0 : i32
    return %arg0, %arg1, %c0_i32, %c0_i32_0 : i32, i32, i32, i32
  }
}

</mosaic_0001>

<llo_original>
// kernel: tpu_custom_call.1
$region0: #{tpu_custom_call.1}
  #allocation0 [shape = 'u32[]', space=smem, size = 0x4, offset = 0x4, fixed_abs, tag = 'smem constant byte address 0x4 - core index']
  #allocation1 [shape = 'u32[144,128]{1,0:T(1,128)}', space=vmem, size = 0x12000, scoped, tag = 'internal scratch']
  %s0 = inlined_call_operand.vmem [shape: bf16[2,18,18,4], index: 0, kind: input, shape index: {}]
  %s1 = inlined_call_operand.vmem [shape: bf16[2,18,18,4], index: 1, kind: input, shape index: {}]
  %s2 = inlined_call_operand.vmem [shape: bf16[3,3,4,128], index: 2, kind: input, shape index: {}]
  %s3 = inlined_call_operand.vmem [shape: bf16[3,3,4,128], index: 3, kind: input, shape index: {}]
  %s4 = inlined_call_operand.vmem [shape: f32[1,128], index: 4, kind: input, shape index: {}]
  %s5 = inlined_call_operand.hbm [shape: f32[2,16,16,128], index: 5, kind: output, shape index: {0}]
  %s6 = inlined_call_operand.hbm [shape: bf16[2,16,16,128], index: 6, kind: output, shape index: {1}]
  %s7 = inlined_call_operand.hbm [shape: f32[2,2,2,128], index: 7, kind: output, shape index: {2}]
  %8 = xla_tuple %s5, %s6, %s7
  %s9 = sld [smem:[#allocation0]]
  $region69: #{tpu_custom_call.1} parent=0
    _
  %s11 = ssub.s32 1, %s9
  %s12 = scalar_select 0, %s11, %s9
  $region1: #{tpu_custom_call.1} parent=0
    #allocation2 [shape = 'u8[131072]{0}', space=vmem, size = 0x20000, scoped, tag = 'output window, operand 0']
    #allocation3 [shape = 's32[2]{0}', space=sflag, size = 0x8, scoped, tag = 'scoped memory for tpu_custom_call.1']
    #allocation4 [shape = 'u8[65536]{0}', space=vmem, size = 0x10000, scoped, tag = 'output window, operand 1']
    #allocation5 [shape = 's32[2]{0}', space=sflag, size = 0x8, scoped, tag = 'scoped memory for tpu_custom_call.1']
    #allocation6 [shape = 'u8[2048]{0}', space=vmem, size = 0x800, scoped, tag = 'output window, operand 2']
    %13 = vsyncpa [#allocation3], 0
    %s14 = scalar_lea.sflag [#allocation3], 1
    %15 = vsyncpa %s14, 0
    %16 = vsyncpa [#allocation5], 0
    %s17 = scalar_lea.sflag [#allocation5], 1
    %18 = vsyncpa %s17, 0
    loop: start=0, step=1, limit=6
    $region2: #{tpu_custom_call.1} parent=1 // loop_pre_header
      _
    $region3: #{tpu_custom_call.1} parent=1 // loop_header
      %s20 = sphi 0, %s24
      %p21 = scmp.ge.s32.totalorder %s20, 6
      %s27 = sphi 0, %s39
      %s28 = sphi 0, %s35
      %s29 = sphi 0, %s27
      %s30 = sphi 0, %s28
      %s31 = sphi 0, %s29
      %s32 = sphi 0, %s30
      %s42 = sphi 0, %s44
      %s45 = sphi 0, %s42
      %s46 = sphi 0, %s45
      %s62 = sphi 0, %s46
      %s68 = sphi 0, %s70
      %s71 = sphi 0, %s68
      %s72 = sphi 0, %s71
      %s88 = sphi 0, %s72
      %s92 = sphi 0, %s92
      %s94 = sphi 0, %s92
      %s95 = sphi 0, %s94
      %s109 = sphi 0, %s95
      %s113 = sphi 0, %s113
      %s115 = sphi 0, %s113
      %s116 = sphi 0, %s115
      %s130 = sphi 0, %s116
      %s134 = sphi 0, %s134
      %s136 = sphi 0, %s134
      %s137 = sphi 0, %s136
      %s151 = sphi 0, %s137
      %s159 = sphi 0, %s161
      %s162 = sphi 0, %s159
      %s163 = sphi 0, %s162
      %s179 = sphi 0, %s163
      %s187 = sphi 0, %s189
      %s190 = sphi 0, %s187
      %s191 = sphi 0, %s190
      %s207 = sphi 0, %s191
      %s215 = sphi 0, %s217
      %s218 = sphi 0, %s215
      %s219 = sphi 0, %s218
      %s235 = sphi 0, %s219
    $region4: #{tpu_custom_call.1} parent=1 // loop_header_branch
      %23 = sbr.rel (%p21) target = $region8
    $region5: #{tpu_custom_call.1} parent=1 // loop_body
      %s25 = ssub.s32 %s20, 1
      %s26 = ssub.s32 %s20, 2
      %s33 = sadd.s32 1, %s28
      %p34 = scmp.ge.s32.totalorder %s33, 2
      %s35 = scalar_select %p34, 0, %s33
      %s36 = sadd.s32 1, %s27
      %s37 = scalar_select %p34, %s36, %s27
      %p38 = scmp.ge.s32.totalorder %s37, 2
      %s39 = scalar_select %p38, 0, %s37
      %s40 = ssub.s32 %s27, %s39
      %p41 = scmp.eq.s32.totalorder %s40, 0
      %s43 = sadd.s32 %s42, 1
      %s44 = scalar_select %p41, %s42, %s43
      %p47 = pneg %p41
      %p48 = scmp.eq.s32.totalorder %s20, 3
      %p49 = por %p47, %p48
      %p50 = scmp.ne.s32.totalorder %s42, %s45
      %p51 = scmp.eq.s32.totalorder %s20, 0
      %p52 = por %p50, %p51
      %p53 = scmp.ne.s32.totalorder %s42, %s45
      %p54 = scmp.eq.s32.totalorder %s25, 3
      %p55 = por %p53, %p54
      %p56 = scmp.ne.s32.totalorder %s45, %s46
      %p57 = scmp.eq.s32.totalorder %s25, 0
      %p58 = por %p56, %p57
      %p59 = scmp.ne.s32.totalorder %s45, %s46
      %p60 = scmp.eq.s32.totalorder %s26, 3
      %p61 = por %p59, %p60
      %p63 = scmp.ne.s32.totalorder %s46, %s62
      %p64 = scmp.eq.s32.totalorder %s26, 0
      %p65 = por %p63, %p64
      %s66 = ssub.s32 %s27, %s39
      %p67 = scmp.eq.s32.totalorder %s66, 0
      %s69 = sadd.s32 %s68, 1
      %s70 = scalar_select %p67, %s68, %s69
      %p73 = pneg %p67
      %p74 = scmp.eq.s32.totalorder %s20, 3
      %p75 = por %p73, %p74
      %p76 = scmp.ne.s32.totalorder %s68, %s71
      %p77 = scmp.eq.s32.totalorder %s20, 0
      %p78 = por %p76, %p77
      %p79 = scmp.ne.s32.totalorder %s68, %s71
      %p80 = scmp.eq.s32.totalorder %s25, 3
      %p81 = por %p79, %p80
      %p82 = scmp.ne.s32.totalorder %s71, %s72
      %p83 = scmp.eq.s32.totalorder %s25, 0
      %p84 = por %p82, %p83
      %p85 = scmp.ne.s32.totalorder %s71, %s72
      %p86 = scmp.eq.s32.totalorder %s26, 3
      %p87 = por %p85, %p86
      %p89 = scmp.ne.s32.totalorder %s72, %s88
      %p90 = scmp.eq.s32.totalorder %s26, 0
      %p91 = por %p89, %p90
      %s93 = sadd.s32 %s92, 1
      %p96 = scmp.eq.s32.totalorder %s20, 3
      %p97 = scmp.ne.s32.totalorder %s92, %s94
      %p98 = scmp.eq.s32.totalorder %s20, 0
      %p99 = por %p97, %p98
      %p100 = scmp.ne.s32.totalorder %s92, %s94
      %p101 = scmp.eq.s32.totalorder %s25, 3
      %p102 = por %p100, %p101
      %p103 = scmp.ne.s32.totalorder %s94, %s95
      %p104 = scmp.eq.s32.totalorder %s25, 0
      %p105 = por %p103, %p104
      %p106 = scmp.ne.s32.totalorder %s94, %s95
      %p107 = scmp.eq.s32.totalorder %s26, 3
      %p108 = por %p106, %p107
      %p110 = scmp.ne.s32.totalorder %s95, %s109
      %p111 = scmp.eq.s32.totalorder %s26, 0
      %p112 = por %p110, %p111
      %s114 = sadd.s32 %s113, 1
      %p117 = scmp.eq.s32.totalorder %s20, 3
      %p118 = scmp.ne.s32.totalorder %s113, %s115
      %p119 = scmp.eq.s32.totalorder %s20, 0
      %p120 = por %p118, %p119
      %p121 = scmp.ne.s32.totalorder %s113, %s115
      %p122 = scmp.eq.s32.totalorder %s25, 3
      %p123 = por %p121, %p122
      %p124 = scmp.ne.s32.totalorder %s115, %s116
      %p125 = scmp.eq.s32.totalorder %s25, 0
      %p126 = por %p124, %p125
      %p127 = scmp.ne.s32.totalorder %s115, %s116
      %p128 = scmp.eq.s32.totalorder %s26, 3
      %p129 = por %p127, %p128
      %p131 = scmp.ne.s32.totalorder %s116, %s130
      %p132 = scmp.eq.s32.totalorder %s26, 0
      %p133 = por %p131, %p132
      %s135 = sadd.s32 %s134, 1
      %p138 = scmp.eq.s32.totalorder %s20, 3
      %p139 = scmp.ne.s32.totalorder %s134, %s136
      %p140 = scmp.eq.s32.totalorder %s20, 0
      %p141 = por %p139, %p140
      %p142 = scmp.ne.s32.totalorder %s134, %s136
      %p143 = scmp.eq.s32.totalorder %s25, 3
      %p144 = por %p142, %p143
      %p145 = scmp.ne.s32.totalorder %s136, %s137
      %p146 = scmp.eq.s32.totalorder %s25, 0
      %p147 = por %p145, %p146
      %p148 = scmp.ne.s32.totalorder %s136, %s137
      %p149 = scmp.eq.s32.totalorder %s26, 3
      %p150 = por %p148, %p149
      %p152 = scmp.ne.s32.totalorder %s137, %s151
      %p153 = scmp.eq.s32.totalorder %s26, 0
      %p154 = por %p152, %p153
      %s155 = ssub.s32 %s27, %s39
      %s156 = ssub.s32 %s28, %s35
      %s157 = sor.u32 %s155, %s156
      %p158 = scmp.eq.s32.totalorder %s157, 0
      %s160 = sadd.s32 %s159, 1
      %s161 = scalar_select %p158, %s159, %s160
      %p164 = pneg %p158
      %p165 = scmp.eq.s32.totalorder %s20, 3
      %p166 = por %p164, %p165
      %p167 = scmp.ne.s32.totalorder %s159, %s162
      %p168 = scmp.eq.s32.totalorder %s20, 0
      %p169 = por %p167, %p168
      %p170 = scmp.ne.s32.totalorder %s159, %s162
      %p171 = scmp.eq.s32.totalorder %s25, 3
      %p172 = por %p170, %p171
      %p173 = scmp.ne.s32.totalorder %s162, %s163
      %p174 = scmp.eq.s32.totalorder %s25, 0
      %p175 = por %p173, %p174
      %p176 = scmp.ne.s32.totalorder %s162, %s163
      %p177 = scmp.eq.s32.totalorder %s26, 3
      %p178 = por %p176, %p177
      %p180 = scmp.ne.s32.totalorder %s163, %s179
      %p181 = scmp.eq.s32.totalorder %s26, 0
      %p182 = por %p180, %p181
      %s183 = ssub.s32 %s27, %s39
      %s184 = ssub.s32 %s28, %s35
      %s185 = sor.u32 %s183, %s184
      %p186 = scmp.eq.s32.totalorder %s185, 0
      %s188 = sadd.s32 %s187, 1
      %s189 = scalar_select %p186, %s187, %s188
      %p192 = pneg %p186
      %p193 = scmp.eq.s32.totalorder %s20, 3
      %p194 = por %p192, %p193
      %p195 = scmp.ne.s32.totalorder %s187, %s190
      %p196 = scmp.eq.s32.totalorder %s20, 0
      %p197 = por %p195, %p196
      %p198 = scmp.ne.s32.totalorder %s187, %s190
      %p199 = scmp.eq.s32.totalorder %s25, 3
      %p200 = por %p198, %p199
      %p201 = scmp.ne.s32.totalorder %s190, %s191
      %p202 = scmp.eq.s32.totalorder %s25, 0
      %p203 = por %p201, %p202
      %p204 = scmp.ne.s32.totalorder %s190, %s191
      %p205 = scmp.eq.s32.totalorder %s26, 3
      %p206 = por %p204, %p205
      %p208 = scmp.ne.s32.totalorder %s191, %s207
      %p209 = scmp.eq.s32.totalorder %s26, 0
      %p210 = por %p208, %p209
      %s211 = ssub.s32 %s27, %s39
      %s212 = ssub.s32 %s28, %s35
      %s213 = sor.u32 %s211, %s212
      %p214 = scmp.eq.s32.totalorder %s213, 0
      %s216 = sadd.s32 %s215, 1
      %s217 = scalar_select %p214, %s215, %s216
      %p220 = pneg %p214
      %p221 = scmp.eq.s32.totalorder %s20, 3
      %p222 = por %p220, %p221
      %p223 = scmp.ne.s32.totalorder %s215, %s218
      %p224 = scmp.eq.s32.totalorder %s20, 0
      %p225 = por %p223, %p224
      %p226 = scmp.ne.s32.totalorder %s215, %s218
      %p227 = scmp.eq.s32.totalorder %s25, 3
      %p228 = por %p226, %p227
      %p229 = scmp.ne.s32.totalorder %s218, %s219
      %p230 = scmp.eq.s32.totalorder %s25, 0
      %p231 = por %p229, %p230
      %p232 = scmp.ne.s32.totalorder %s218, %s219
      %p233 = scmp.eq.s32.totalorder %s26, 3
      %p234 = por %p232, %p233
      %p236 = scmp.ne.s32.totalorder %s219, %s235
      %p237 = scmp.eq.s32.totalorder %s26, 0
      %p238 = por %p236, %p237
      %p239 = scmp.le.s32.totalorder 1, %s20
      %p240 = scmp.lt.s32.totalorder %s20, 5
      %p241 = pnand %p239, %p240
      %p242 = pneg %p241
      // Predicated region
      $region9: #{tpu_custom_call.1} parent=5 // pred_check
        _
      $region10: #{tpu_custom_call.1} parent=5 // pred_check_branch
        %244 = sbr.rel (%p241) target = $region12
      $region11: #{tpu_custom_call.1} parent=5 // pred_region
        %s245 = ssub.s32 %s20, 1
        // Predicated region
        $region13: #{tpu_custom_call.1} parent=11 // pred_check
          %p246 = pneg %p105
        $region14: #{tpu_custom_call.1} parent=11 // pred_check_branch
          %248 = sbr.rel (%p246) target = $region16
        $region15: #{tpu_custom_call.1} parent=11 // pred_region
          _
        $region16: #{tpu_custom_call.1} parent=11 // pred_fallthru
          _
        // Predicated region
        $region17: #{tpu_custom_call.1} parent=11 // pred_check
          %p249 = pneg %p126
        $region18: #{tpu_custom_call.1} parent=11 // pred_check_branch
          %251 = sbr.rel (%p249) target = $region20
        $region19: #{tpu_custom_call.1} parent=11 // pred_region
          _
        $region20: #{tpu_custom_call.1} parent=11 // pred_fallthru
          _
        // Predicated region
        $region21: #{tpu_custom_call.1} parent=11 // pred_check
          %p252 = pneg %p147
        $region22: #{tpu_custom_call.1} parent=11 // pred_check_branch
          %254 = sbr.rel (%p252) target = $region24
        $region23: #{tpu_custom_call.1} parent=11 // pred_region
          _
        $region24: #{tpu_custom_call.1} parent=11 // pred_fallthru
          _
      $region12: #{tpu_custom_call.1} parent=5 // pred_fallthru
        _
      %p255 = scmp.lt.s32.totalorder %s20, 4
      // Predicated region
      $region25: #{tpu_custom_call.1} parent=5 // pred_check
        %p256 = pneg %p255
      $region26: #{tpu_custom_call.1} parent=5 // pred_check_branch
        %258 = sbr.rel (%p256) target = $region28
      $region27: #{tpu_custom_call.1} parent=5 // pred_region
        // Predicated region
        $region29: #{tpu_custom_call.1} parent=27 // pred_check
          %p259 = pneg %p52
        $region30: #{tpu_custom_call.1} parent=27 // pred_check_branch
          %261 = sbr.rel (%p259) target = $region32
        $region31: #{tpu_custom_call.1} parent=27 // pred_region
          %p262 = scmp.lt.s32.totalorder %s27, 1
          %s263 = scalar_select %p262, %s27, 1
          %s264 = smul.addr %s263, 54
          %s265 = smul.addr %s264, 4
          %s266 = scalar_lea.vmem %s0, %s265
        $region32: #{tpu_custom_call.1} parent=27 // pred_fallthru
          _
        // Predicated region
        $region33: #{tpu_custom_call.1} parent=27 // pred_check
          %p267 = pneg %p78
        $region34: #{tpu_custom_call.1} parent=27 // pred_check_branch
          %269 = sbr.rel (%p267) target = $region36
        $region35: #{tpu_custom_call.1} parent=27 // pred_region
          %p270 = scmp.lt.s32.totalorder %s27, 1
          %s271 = scalar_select %p270, %s27, 1
          %s272 = smul.addr %s271, 54
          %s273 = smul.addr %s272, 4
          %s274 = scalar_lea.vmem %s1, %s273
        $region36: #{tpu_custom_call.1} parent=27 // pred_fallthru
          _
      $region28: #{tpu_custom_call.1} parent=5 // pred_fallthru
        _
      %p275 = scmp.le.s32.totalorder 1, %s20
      %p276 = scmp.lt.s32.totalorder %s20, 5
      %p277 = pnand %p275, %p276
      %p278 = pneg %p277
      // Predicated region
      $region37: #{tpu_custom_call.1} parent=5 // pred_check
        _
      $region38: #{tpu_custom_call.1} parent=5 // pred_check_branch
        %280 = sbr.rel (%p277) target = $region40
      $region39: #{tpu_custom_call.1} parent=5 // pred_region
        %s281 = ssub.s32 %s20, 1
        %p282 = scmp.lt.s32.totalorder %s29, 1
        %s283 = scalar_select %p282, %s29, 1
        %s284 = smul.addr %s283, 54
        %s285 = smul.addr %s284, 4
        %s286 = scalar_lea.vmem %s0, %s285
        %p287 = pneg %p58
        %p288 = pneg %p55
        %p289 = scmp.lt.s32.totalorder %s29, 1
        %s290 = scalar_select %p289, %s29, 1
        %s291 = smul.addr %s290, 54
        %s292 = smul.addr %s291, 4
        %s293 = scalar_lea.vmem %s1, %s292
        %p294 = pneg %p84
        %p295 = pneg %p81
        %p296 = pneg %p105
        %p297 = pneg %p102
        %p298 = pneg %p126
        %p299 = pneg %p123
        %p300 = pneg %p147
        %p301 = pneg %p144
        %p302 = pneg %p175
        %p303 = pneg %p172
        %s304 = sand.u32 %s162, 1
        %s305 = scalar_lea.sflag [#allocation3], %s304
        %s306 = sand.u32 %s162, 1
        %s307 = smul.addr %s306, 128
        %s308 = scalar_lea.vmem [#allocation2], %s307
        %p309 = pneg %p203
        %p310 = pneg %p200
        %s311 = sand.u32 %s25, 1
        %s312 = scalar_lea.sflag [#allocation5], %s311
        %s313 = sand.u32 %s190, 1
        %s314 = smul.addr %s313, 64
        %s315 = scalar_lea.vmem [#allocation4], %s314
        %p316 = pneg %p231
        %p317 = pneg %p228
        %s318 = sand.u32 %s25, 1
        %s319 = scalar_lea.sflag [#allocation5], %s318
        %s320 = sand.u32 %s218, 1
        %s321 = smul.addr %s320, 2
        %s322 = scalar_lea.vmem [#allocation6], %s321
        %p323 = scmp.lt.s32.totalorder %s29, 1
        %s324 = scalar_select %p323, %s29, 1
        %s325 = smul.addr %s324, 54
        %s326 = smul.addr %s325, 4
        %s327 = scalar_lea.vmem %s0, %s326
        %p328 = scmp.lt.s32.totalorder %s29, 1
        %s329 = scalar_select %p328, %s29, 1
        %s330 = smul.addr %s329, 54
        %s331 = smul.addr %s330, 4
        %s332 = scalar_lea.vmem %s1, %s331
        %s333 = smul.u32 8, %s30
        %s334 = smul.u32 8, %s30
        %s336 = smul.u32 %s30, 8
        %s337 = smul.u32 %s336, 3
        %s338 = smul.addr %s337, 4
        %s339 = scalar_lea.vmem %s327, %s338
        %v340 = vld [vmem:[%s339] sm:$0xf]
        %v341 = vld [vmem:[%s339 + $0x4] sm:$0xf]
        %v342 = vld [vmem:[%s339 + $0xc] sm:$0xf]
        %v343 = vld [vmem:[%s339 + $0x10] sm:$0xf]
        %v344 = vld [vmem:[%s339 + $0x18] sm:$0xf]
        %v345 = vld [vmem:[%s339 + $0x1c] sm:$0xf]
        %v346 = vld [vmem:[%s339 + $0x24] sm:$0xf]
        %v347 = vld [vmem:[%s339 + $0x28] sm:$0xf]
        %v348 = vld [vmem:[%s339 + $0x30] sm:$0xf]
        %v349 = vld [vmem:[%s339 + $0x34] sm:$0xf]
        %v350 = vld [vmem:[%s339 + $0x3c] sm:$0xf]
        %v351 = vld [vmem:[%s339 + $0x40] sm:$0xf]
        %v352 = vld [vmem:[%s339 + $0x48] sm:$0xf]
        %v353 = vld [vmem:[%s339 + $0x4c] sm:$0xf]
        %v354 = vld [vmem:[%s339 + $0x54] sm:$0xf]
        %v355 = vld [vmem:[%s339 + $0x58] sm:$0xf]
        %s356 = smul.addr %s337, 4
        %s357 = scalar_lea.vmem %s332, %s356
        %v358 = vld [vmem:[%s357] sm:$0xf]
        %v359 = vld [vmem:[%s357 + $0x4] sm:$0xf]
        %v360 = vld [vmem:[%s357 + $0xc] sm:$0xf]
        %v361 = vld [vmem:[%s357 + $0x10] sm:$0xf]
        %v362 = vld [vmem:[%s357 + $0x18] sm:$0xf]
        %v363 = vld [vmem:[%s357 + $0x1c] sm:$0xf]
        %v364 = vld [vmem:[%s357 + $0x24] sm:$0xf]
        %v365 = vld [vmem:[%s357 + $0x28] sm:$0xf]
        %v366 = vld [vmem:[%s357 + $0x30] sm:$0xf]
        %v367 = vld [vmem:[%s357 + $0x34] sm:$0xf]
        %v368 = vld [vmem:[%s357 + $0x3c] sm:$0xf]
        %v369 = vld [vmem:[%s357 + $0x40] sm:$0xf]
        %v370 = vld [vmem:[%s357 + $0x48] sm:$0xf]
        %v371 = vld [vmem:[%s357 + $0x4c] sm:$0xf]
        %v372 = vld [vmem:[%s357 + $0x54] sm:$0xf]
        %v373 = vld [vmem:[%s357 + $0x58] sm:$0xf]
        %v374 = vld [vmem:[%s2] sm:$0x3]
        %v375 = vld [vmem:[%s3] sm:$0x3]
        %v376 = vld [vmem:[%s339 + $0x8] sm:$0x1]
        %v377 = vld [vmem:[%s339 + $0x14] sm:$0x1]
        %v378 = vld [vmem:[%s339 + $0x20] sm:$0x1]
        %v379 = vld [vmem:[%s339 + $0x2c] sm:$0x1]
        %v380 = vld [vmem:[%s339 + $0x38] sm:$0x1]
        %v381 = vld [vmem:[%s339 + $0x44] sm:$0x1]
        %v382 = vld [vmem:[%s339 + $0x50] sm:$0x1]
        %v383 = vld [vmem:[%s339 + $0x5c] sm:$0x1]
        %v384 = vld [vmem:[%s357 + $0x8] sm:$0x1]
        %v385 = vld [vmem:[%s357 + $0x14] sm:$0x1]
        %v386 = vld [vmem:[%s357 + $0x20] sm:$0x1]
        %v387 = vld [vmem:[%s357 + $0x2c] sm:$0x1]
        %v388 = vld [vmem:[%s357 + $0x38] sm:$0x1]
        %v389 = vld [vmem:[%s357 + $0x44] sm:$0x1]
        %v390 = vld [vmem:[%s357 + $0x50] sm:$0x1]
        %v391 = vld [vmem:[%s357 + $0x5c] sm:$0x1]
        %vm392 = vsmask.f32 3328
        %vm393 = vsmask.f32 7440
        %vm394 = vmor %vm392, %vm393
        %v396 = vshrl.u32 %v340, 16
        %v398 = vrot.slane %v396, 4
        %v399 = vshll.u32 %v340, 16
        %v401 = vrot.slane %v399, 5
        %v402 = vor.u32 %v398, %v401
        %v403 = vrot.slane %v402, 4
        %v405 = vshll.u32 %v341, 16
        %v407 = vrot.slane %v405, 5
        %v408 = vsel %vm394, %v403, %v407
        %v409 = vshrl.u32 %v341, 16
        %v411 = vrot.slane %v409, 4
        %v412 = vor.u32 %v411, %v407
        %v413 = vrot.slane %v412, 4
        %v415 = vshll.u32 %v376, 16
        %v417 = vrot.slane %v415, 5
        %v418 = vsel %vm394, %v413, %v417
        %v420 = vshrl.u32 %v342, 16
        %v422 = vrot.slane %v420, 4
        %v423 = vshll.u32 %v342, 16
        %v425 = vrot.slane %v423, 5
        %v426 = vor.u32 %v422, %v425
        %v427 = vrot.slane %v426, 4
        %v429 = vshll.u32 %v343, 16
        %v431 = vrot.slane %v429, 5
        %v432 = vsel %vm394, %v427, %v431
        %v433 = vshrl.u32 %v343, 16
        %v435 = vrot.slane %v433, 4
        %v436 = vor.u32 %v435, %v431
        %v437 = vrot.slane %v436, 4
        %v439 = vshll.u32 %v377, 16
        %v441 = vrot.slane %v439, 5
        %v442 = vsel %vm394, %v437, %v441
        %v444 = vshrl.u32 %v344, 16
        %v446 = vrot.slane %v444, 4
        %v447 = vshll.u32 %v344, 16
        %v449 = vrot.slane %v447, 5
        %v450 = vor.u32 %v446, %v449
        %v451 = vrot.slane %v450, 4
        %v453 = vshll.u32 %v345, 16
        %v455 = vrot.slane %v453, 5
        %v456 = vsel %vm394, %v451, %v455
        %v457 = vshrl.u32 %v345, 16
        %v459 = vrot.slane %v457, 4
        %v460 = vor.u32 %v459, %v455
        %v461 = vrot.slane %v460, 4
        %v463 = vshll.u32 %v378, 16
        %v465 = vrot.slane %v463, 5
        %v466 = vsel %vm394, %v461, %v465
        %v468 = vshrl.u32 %v346, 16
        %v470 = vrot.slane %v468, 4
        %v471 = vshll.u32 %v346, 16
        %v473 = vrot.slane %v471, 5
        %v474 = vor.u32 %v470, %v473
        %v475 = vrot.slane %v474, 4
        %v477 = vshll.u32 %v347, 16
        %v479 = vrot.slane %v477, 5
        %v480 = vsel %vm394, %v475, %v479
        %v481 = vshrl.u32 %v347, 16
        %v483 = vrot.slane %v481, 4
        %v484 = vor.u32 %v483, %v479
        %v485 = vrot.slane %v484, 4
        %v487 = vshll.u32 %v379, 16
        %v489 = vrot.slane %v487, 5
        %v490 = vsel %vm394, %v485, %v489
        %v492 = vshrl.u32 %v348, 16
        %v494 = vrot.slane %v492, 4
        %v495 = vshll.u32 %v348, 16
        %v497 = vrot.slane %v495, 5
        %v498 = vor.u32 %v494, %v497
        %v499 = vrot.slane %v498, 4
        %v501 = vshll.u32 %v349, 16
        %v503 = vrot.slane %v501, 5
        %v504 = vsel %vm394, %v499, %v503
        %v505 = vshrl.u32 %v349, 16
        %v507 = vrot.slane %v505, 4
        %v508 = vor.u32 %v507, %v503
        %v509 = vrot.slane %v508, 4
        %v511 = vshll.u32 %v380, 16
        %v513 = vrot.slane %v511, 5
        %v514 = vsel %vm394, %v509, %v513
        %v516 = vshrl.u32 %v350, 16
        %v518 = vrot.slane %v516, 4
        %v519 = vshll.u32 %v350, 16
        %v521 = vrot.slane %v519, 5
        %v522 = vor.u32 %v518, %v521
        %v523 = vrot.slane %v522, 4
        %v525 = vshll.u32 %v351, 16
        %v527 = vrot.slane %v525, 5
        %v528 = vsel %vm394, %v523, %v527
        %v529 = vshrl.u32 %v351, 16
        %v531 = vrot.slane %v529, 4
        %v532 = vor.u32 %v531, %v527
        %v533 = vrot.slane %v532, 4
        %v535 = vshll.u32 %v381, 16
        %v537 = vrot.slane %v535, 5
        %v538 = vsel %vm394, %v533, %v537
        %v540 = vshrl.u32 %v352, 16
        %v542 = vrot.slane %v540, 4
        %v543 = vshll.u32 %v352, 16
        %v545 = vrot.slane %v543, 5
        %v546 = vor.u32 %v542, %v545
        %v547 = vrot.slane %v546, 4
        %v549 = vshll.u32 %v353, 16
        %v551 = vrot.slane %v549, 5
        %v552 = vsel %vm394, %v547, %v551
        %v553 = vshrl.u32 %v353, 16
        %v555 = vrot.slane %v553, 4
        %v556 = vor.u32 %v555, %v551
        %v557 = vrot.slane %v556, 4
        %v559 = vshll.u32 %v382, 16
        %v561 = vrot.slane %v559, 5
        %v562 = vsel %vm394, %v557, %v561
        %v564 = vshrl.u32 %v354, 16
        %v566 = vrot.slane %v564, 4
        %v567 = vshll.u32 %v354, 16
        %v569 = vrot.slane %v567, 5
        %v570 = vor.u32 %v566, %v569
        %v571 = vrot.slane %v570, 4
        %v573 = vshll.u32 %v355, 16
        %v575 = vrot.slane %v573, 5
        %v576 = vsel %vm394, %v571, %v575
        %v577 = vshrl.u32 %v355, 16
        %v579 = vrot.slane %v577, 4
        %v580 = vor.u32 %v579, %v575
        %v581 = vrot.slane %v580, 4
        %v583 = vshll.u32 %v383, 16
        %v585 = vrot.slane %v583, 5
        %v586 = vsel %vm394, %v581, %v585
        %v588 = vshrl.u32 %v358, 16
        %v590 = vrot.slane %v588, 4
        %v591 = vshll.u32 %v358, 16
        %v593 = vrot.slane %v591, 5
        %v594 = vor.u32 %v590, %v593
        %v595 = vrot.slane %v594, 4
        %v597 = vshll.u32 %v359, 16
        %v599 = vrot.slane %v597, 5
        %v600 = vsel %vm394, %v595, %v599
        %v601 = vshrl.u32 %v359, 16
        %v603 = vrot.slane %v601, 4
        %v604 = vor.u32 %v603, %v599
        %v605 = vrot.slane %v604, 4
        %v607 = vshll.u32 %v384, 16
        %v609 = vrot.slane %v607, 5
        %v610 = vsel %vm394, %v605, %v609
        %v612 = vshrl.u32 %v360, 16
        %v614 = vrot.slane %v612, 4
        %v615 = vshll.u32 %v360, 16
        %v617 = vrot.slane %v615, 5
        %v618 = vor.u32 %v614, %v617
        %v619 = vrot.slane %v618, 4
        %v621 = vshll.u32 %v361, 16
        %v623 = vrot.slane %v621, 5
        %v624 = vsel %vm394, %v619, %v623
        %v625 = vshrl.u32 %v361, 16
        %v627 = vrot.slane %v625, 4
        %v628 = vor.u32 %v627, %v623
        %v629 = vrot.slane %v628, 4
        %v631 = vshll.u32 %v385, 16
        %v633 = vrot.slane %v631, 5
        %v634 = vsel %vm394, %v629, %v633
        %v636 = vshrl.u32 %v362, 16
        %v638 = vrot.slane %v636, 4
        %v639 = vshll.u32 %v362, 16
        %v641 = vrot.slane %v639, 5
        %v642 = vor.u32 %v638, %v641
        %v643 = vrot.slane %v642, 4
        %v645 = vshll.u32 %v363, 16
        %v647 = vrot.slane %v645, 5
        %v648 = vsel %vm394, %v643, %v647
        %v649 = vshrl.u32 %v363, 16
        %v651 = vrot.slane %v649, 4
        %v652 = vor.u32 %v651, %v647
        %v653 = vrot.slane %v652, 4
        %v655 = vshll.u32 %v386, 16
        %v657 = vrot.slane %v655, 5
        %v658 = vsel %vm394, %v653, %v657
        %v660 = vshrl.u32 %v364, 16
        %v662 = vrot.slane %v660, 4
        %v663 = vshll.u32 %v364, 16
        %v665 = vrot.slane %v663, 5
        %v666 = vor.u32 %v662, %v665
        %v667 = vrot.slane %v666, 4
        %v669 = vshll.u32 %v365, 16
        %v671 = vrot.slane %v669, 5
        %v672 = vsel %vm394, %v667, %v671
        %v673 = vshrl.u32 %v365, 16
        %v675 = vrot.slane %v673, 4
        %v676 = vor.u32 %v675, %v671
        %v677 = vrot.slane %v676, 4
        %v679 = vshll.u32 %v387, 16
        %v681 = vrot.slane %v679, 5
        %v682 = vsel %vm394, %v677, %v681
        %v684 = vshrl.u32 %v366, 16
        %v686 = vrot.slane %v684, 4
        %v687 = vshll.u32 %v366, 16
        %v689 = vrot.slane %v687, 5
        %v690 = vor.u32 %v686, %v689
        %v691 = vrot.slane %v690, 4
        %v693 = vshll.u32 %v367, 16
        %v695 = vrot.slane %v693, 5
        %v696 = vsel %vm394, %v691, %v695
        %v697 = vshrl.u32 %v367, 16
        %v699 = vrot.slane %v697, 4
        %v700 = vor.u32 %v699, %v695
        %v701 = vrot.slane %v700, 4
        %v703 = vshll.u32 %v388, 16
        %v705 = vrot.slane %v703, 5
        %v706 = vsel %vm394, %v701, %v705
        %v708 = vshrl.u32 %v368, 16
        %v710 = vrot.slane %v708, 4
        %v711 = vshll.u32 %v368, 16
        %v713 = vrot.slane %v711, 5
        %v714 = vor.u32 %v710, %v713
        %v715 = vrot.slane %v714, 4
        %v717 = vshll.u32 %v369, 16
        %v719 = vrot.slane %v717, 5
        %v720 = vsel %vm394, %v715, %v719
        %v721 = vshrl.u32 %v369, 16
        %v723 = vrot.slane %v721, 4
        %v724 = vor.u32 %v723, %v719
        %v725 = vrot.slane %v724, 4
        %v727 = vshll.u32 %v389, 16
        %v729 = vrot.slane %v727, 5
        %v730 = vsel %vm394, %v725, %v729
        %v732 = vshrl.u32 %v370, 16
        %v734 = vrot.slane %v732, 4
        %v735 = vshll.u32 %v370, 16
        %v737 = vrot.slane %v735, 5
        %v738 = vor.u32 %v734, %v737
        %v739 = vrot.slane %v738, 4
        %v741 = vshll.u32 %v371, 16
        %v743 = vrot.slane %v741, 5
        %v744 = vsel %vm394, %v739, %v743
        %v745 = vshrl.u32 %v371, 16
        %v747 = vrot.slane %v745, 4
        %v748 = vor.u32 %v747, %v743
        %v749 = vrot.slane %v748, 4
        %v751 = vshll.u32 %v390, 16
        %v753 = vrot.slane %v751, 5
        %v754 = vsel %vm394, %v749, %v753
        %v756 = vshrl.u32 %v372, 16
        %v758 = vrot.slane %v756, 4
        %v759 = vshll.u32 %v372, 16
        %v761 = vrot.slane %v759, 5
        %v762 = vor.u32 %v758, %v761
        %v763 = vrot.slane %v762, 4
        %v765 = vshll.u32 %v373, 16
        %v767 = vrot.slane %v765, 5
        %v768 = vsel %vm394, %v763, %v767
        %v769 = vshrl.u32 %v373, 16
        %v771 = vrot.slane %v769, 4
        %v772 = vor.u32 %v771, %v767
        %v773 = vrot.slane %v772, 4
        %v775 = vshll.u32 %v391, 16
        %v777 = vrot.slane %v775, 5
        %v778 = vsel %vm394, %v773, %v777
        %s779 = scalar_lea.vmem %s2, 2
        %v780 = vld [vmem:[%s779] sm:$0x3]
        %v781 = vunpack.c.l.b16 %v408
        %v782 = vunpack.c.l.b16 %v418
        %v783 = vunpack.c.l.b16 %v432
        %v784 = vunpack.c.l.b16 %v442
        %v785 = vunpack.c.l.b16 %v456
        %v786 = vunpack.c.l.b16 %v466
        %v787 = vunpack.c.l.b16 %v480
        %v788 = vunpack.c.l.b16 %v490
        %v789 = vunpack.c.l.b16 %v504
        %v790 = vunpack.c.l.b16 %v514
        %v791 = vunpack.c.l.b16 %v528
        %v792 = vunpack.c.l.b16 %v538
        %v793 = vunpack.c.l.b16 %v552
        %v794 = vunpack.c.l.b16 %v562
        %v795 = vunpack.c.l.b16 %v576
        %v796 = vunpack.c.l.b16 %v586
        %v797 = vpack.c.b16 %v782, %v781
        %v798 = vpack.c.b16 %v784, %v783
        %v799 = vpack.c.b16 %v786, %v785
        %v800 = vpack.c.b16 %v788, %v787
        %v801 = vpack.c.b16 %v790, %v789
        %v802 = vpack.c.b16 %v792, %v791
        %v803 = vpack.c.b16 %v794, %v793
        %v804 = vpack.c.b16 %v796, %v795
        %vm805 = vcmask 31744
        %v807 = vsel %vm805, %v797, 0
        %v810 = vsel %vm805, %v798, 0
        %v813 = vsel %vm805, %v799, 0
        %v816 = vsel %vm805, %v800, 0
        %v819 = vsel %vm805, %v801, 0
        %v822 = vsel %vm805, %v802, 0
        %v825 = vsel %vm805, %v803, 0
        %v828 = vsel %vm805, %v804, 0
        %vm830 = vcmask 1041408
        %v832 = vsel %vm830, %v780, 0
        %834 = vmatprep.subr.bf16.mxu0 0
        %835 = vmatpush1.bf16.msra.mxu0 0
        %836 = vmatprep.subr.bf16.mxu0 0
        %837 = vmatpush1.bf16.msra.mxu0 0
        %838 = vmatprep.subr.bf16.mxu0 0
        %839 = vmatpush1.bf16.msra.mxu0 0
        %840 = vmatprep.subr.bf16.mxu0 0
        %841 = vmatpush1.bf16.msra.mxu0 0
        %842 = vmatprep.subr.bf16.mxu0 0
        %843 = vmatpush1.bf16.msra.mxu0 0
        %844 = vmatprep.subr.bf16.mxu0 0
        %845 = vmatpush1.bf16.msra.mxu0 0
        %846 = vmatprep.subr.bf16.mxu0 0
        %847 = vmatpush1.bf16.msra.mxu0 0
        %848 = vmatprep.subr.bf16.mxu0 0
        %849 = vmatpush1.bf16.msra.mxu0 %v832
        %850 = vmatprep.subr.bf16.mxu0 0
        %851 = vmatpush2.bf16.msra.mxu0 0
        %852 = vmatprep.subr.bf16.mxu0 0
        %853 = vmatpush2.bf16.msra.mxu0 0
        %854 = vmatprep.subr.bf16.mxu0 0
        %855 = vmatpush2.bf16.msra.mxu0 0
        %856 = vmatprep.subr.bf16.mxu0 0
        %857 = vmatpush2.bf16.msra.mxu0 0
        %858 = vmatprep.subr.bf16.mxu0 0
        %859 = vmatpush2.bf16.msra.mxu0 0
        %860 = vmatprep.subr.bf16.mxu0 0
        %861 = vmatpush2.bf16.msra.mxu0 0
        %862 = vmatprep.subr.bf16.mxu0 0
        %863 = vmatpush2.bf16.msra.mxu0 0
        %864 = vmatprep.subr.bf16.mxu0 0
        %865 = vmatpush2.bf16.msra.mxu0 0
        %866 = vmatprep.mubr.bf16.mxu0 0
        %867 = vmatmul.mubr.bf16.gmra.mxu0 %v807
        %v868 = vpop.f32.mrf.mxu0
        %v869 = vadd.f32 0.0, %v868
        %v870 = vpop.f32.mrf.mxu0
        %v871 = vpop.f32.mrf.mxu0
        %v872 = vadd.f32 0.0, %v871
        %v873 = vpop.f32.mrf.mxu0
        %874 = vmatprep.mubr.bf16.mxu0 0
        %875 = vmatmul.mubr.bf16.gmra.mxu0 %v810
        %v876 = vpop.f32.mrf.mxu0
        %v877 = vadd.f32 0.0, %v876
        %v878 = vpop.f32.mrf.mxu0
        %v879 = vpop.f32.mrf.mxu0
        %v880 = vadd.f32 0.0, %v879
        %v881 = vpop.f32.mrf.mxu0
        %882 = vmatprep.mubr.bf16.mxu0 0
        %883 = vmatmul.mubr.bf16.gmra.mxu0 %v813
        %v884 = vpop.f32.mrf.mxu0
        %v885 = vadd.f32 0.0, %v884
        %v886 = vpop.f32.mrf.mxu0
        %v887 = vpop.f32.mrf.mxu0
        %v888 = vadd.f32 0.0, %v887
        %v889 = vpop.f32.mrf.mxu0
        %890 = vmatprep.mubr.bf16.mxu0 0
        %891 = vmatmul.mubr.bf16.gmra.mxu0 %v816
        %v892 = vpop.f32.mrf.mxu0
        %v893 = vadd.f32 0.0, %v892
        %v894 = vpop.f32.mrf.mxu0
        %v895 = vpop.f32.mrf.mxu0
        %v896 = vadd.f32 0.0, %v895
        %v897 = vpop.f32.mrf.mxu0
        %898 = vmatprep.mubr.bf16.mxu0 0
        %899 = vmatmul.mubr.bf16.gmra.mxu0 %v819
        %v900 = vpop.f32.mrf.mxu0
        %v901 = vadd.f32 0.0, %v900
        %v902 = vpop.f32.mrf.mxu0
        %v903 = vpop.f32.mrf.mxu0
        %v904 = vadd.f32 0.0, %v903
        %v905 = vpop.f32.mrf.mxu0
        %906 = vmatprep.mubr.bf16.mxu0 0
        %907 = vmatmul.mubr.bf16.gmra.mxu0 %v822
        %v908 = vpop.f32.mrf.mxu0
        %v909 = vadd.f32 0.0, %v908
        %v910 = vpop.f32.mrf.mxu0
        %v911 = vpop.f32.mrf.mxu0
        %v912 = vadd.f32 0.0, %v911
        %v913 = vpop.f32.mrf.mxu0
        %914 = vmatprep.mubr.bf16.mxu0 0
        %915 = vmatmul.mubr.bf16.gmra.mxu0 %v825
        %v916 = vpop.f32.mrf.mxu0
        %v917 = vadd.f32 0.0, %v916
        %v918 = vpop.f32.mrf.mxu0
        %v919 = vpop.f32.mrf.mxu0
        %v920 = vadd.f32 0.0, %v919
        %v921 = vpop.f32.mrf.mxu0
        %922 = vmatprep.mubr.bf16.mxu0 0
        %923 = vmatmul.mubr.bf16.gmra.mxu0 %v828
        %v924 = vpop.f32.mrf.mxu0
        %v925 = vadd.f32 0.0, %v924
        %v926 = vpop.f32.mrf.mxu0
        %v927 = vpop.f32.mrf.mxu0
        %v928 = vadd.f32 0.0, %v927
        %v929 = vpop.f32.mrf.mxu0
        %930 = vdwg.mxu0
        %v947 = vunpack.c.l.b16 %v340
        %v948 = vunpack.c.l.b16 %v341
        %v949 = vunpack.c.l.b16 %v342
        %v950 = vunpack.c.l.b16 %v343
        %v951 = vunpack.c.l.b16 %v344
        %v952 = vunpack.c.l.b16 %v345
        %v953 = vunpack.c.l.b16 %v346
        %v954 = vunpack.c.l.b16 %v347
        %v955 = vunpack.c.l.b16 %v348
        %v956 = vunpack.c.l.b16 %v349
        %v957 = vunpack.c.l.b16 %v350
        %v958 = vunpack.c.l.b16 %v351
        %v959 = vunpack.c.l.b16 %v352
        %v960 = vunpack.c.l.b16 %v353
        %v961 = vunpack.c.l.b16 %v354
        %v962 = vunpack.c.l.b16 %v355
        %v963 = vpack.c.b16 %v948, %v947
        %v964 = vpack.c.b16 %v950, %v949
        %v965 = vpack.c.b16 %v952, %v951
        %v966 = vpack.c.b16 %v954, %v953
        %v967 = vpack.c.b16 %v956, %v955
        %v968 = vpack.c.b16 %v958, %v957
        %v969 = vpack.c.b16 %v960, %v959
        %v970 = vpack.c.b16 %v962, %v961
        %v972 = vsel %vm805, %v963, 0
        %v975 = vsel %vm805, %v964, 0
        %v978 = vsel %vm805, %v965, 0
        %v981 = vsel %vm805, %v966, 0
        %v984 = vsel %vm805, %v967, 0
        %v987 = vsel %vm805, %v968, 0
        %v990 = vsel %vm805, %v969, 0
        %v993 = vsel %vm805, %v970, 0
        %v996 = vsel %vm830, %v374, 0
        %998 = vmatprep.subr.bf16.mxu0 0
        %999 = vmatpush1.bf16.msra.mxu0 0
        %1000 = vmatprep.subr.bf16.mxu0 0
        %1001 = vmatpush1.bf16.msra.mxu0 0
        %1002 = vmatprep.subr.bf16.mxu0 0
        %1003 = vmatpush1.bf16.msra.mxu0 0
        %1004 = vmatprep.subr.bf16.mxu0 0
        %1005 = vmatpush1.bf16.msra.mxu0 0
        %1006 = vmatprep.subr.bf16.mxu0 0
        %1007 = vmatpush1.bf16.msra.mxu0 0
        %1008 = vmatprep.subr.bf16.mxu0 0
        %1009 = vmatpush1.bf16.msra.mxu0 0
        %1010 = vmatprep.subr.bf16.mxu0 0
        %1011 = vmatpush1.bf16.msra.mxu0 0
        %1012 = vmatprep.subr.bf16.mxu0 0
        %1013 = vmatpush1.bf16.msra.mxu0 %v996
        %1014 = vmatprep.subr.bf16.mxu0 0
        %1015 = vmatpush2.bf16.msra.mxu0 0
        %1016 = vmatprep.subr.bf16.mxu0 0
        %1017 = vmatpush2.bf16.msra.mxu0 0
        %1018 = vmatprep.subr.bf16.mxu0 0
        %1019 = vmatpush2.bf16.msra.mxu0 0
        %1020 = vmatprep.subr.bf16.mxu0 0
        %1021 = vmatpush2.bf16.msra.mxu0 0
        %1022 = vmatprep.subr.bf16.mxu0 0
        %1023 = vmatpush2.bf16.msra.mxu0 0
        %1024 = vmatprep.subr.bf16.mxu0 0
        %1025 = vmatpush2.bf16.msra.mxu0 0
        %1026 = vmatprep.subr.bf16.mxu0 0
        %1027 = vmatpush2.bf16.msra.mxu0 0
        %1028 = vmatprep.subr.bf16.mxu0 0
        %1029 = vmatpush2.bf16.msra.mxu0 0
        %1030 = vmatprep.mubr.bf16.mxu0 0
        %1031 = vmatmul.mubr.bf16.gmra.mxu0 %v972
        %v1032 = vpop.f32.mrf.mxu0
        %v1033 = vadd.f32 %v869, %v1032
        %v1034 = vpop.f32.mrf.mxu0
        %v1035 = vpop.f32.mrf.mxu0
        %v1036 = vadd.f32 %v872, %v1035
        %v1037 = vpop.f32.mrf.mxu0
        %1038 = vmatprep.mubr.bf16.mxu0 0
        %1039 = vmatmul.mubr.bf16.gmra.mxu0 %v975
        %v1040 = vpop.f32.mrf.mxu0
        %v1041 = vadd.f32 %v877, %v1040
        %v1042 = vpop.f32.mrf.mxu0
        %v1043 = vpop.f32.mrf.mxu0
        %v1044 = vadd.f32 %v880, %v1043
        %v1045 = vpop.f32.mrf.mxu0
        %1046 = vmatprep.mubr.bf16.mxu0 0
        %1047 = vmatmul.mubr.bf16.gmra.mxu0 %v978
        %v1048 = vpop.f32.mrf.mxu0
        %v1049 = vadd.f32 %v885, %v1048
        %v1050 = vpop.f32.mrf.mxu0
        %v1051 = vpop.f32.mrf.mxu0
        %v1052 = vadd.f32 %v888, %v1051
        %v1053 = vpop.f32.mrf.mxu0
        %1054 = vmatprep.mubr.bf16.mxu0 0
        %1055 = vmatmul.mubr.bf16.gmra.mxu0 %v981
        %v1056 = vpop.f32.mrf.mxu0
        %v1057 = vadd.f32 %v893, %v1056
        %v1058 = vpop.f32.mrf.mxu0
        %v1059 = vpop.f32.mrf.mxu0
        %v1060 = vadd.f32 %v896, %v1059
        %v1061 = vpop.f32.mrf.mxu0
        %1062 = vmatprep.mubr.bf16.mxu0 0
        %1063 = vmatmul.mubr.bf16.gmra.mxu0 %v984
        %v1064 = vpop.f32.mrf.mxu0
        %v1065 = vadd.f32 %v901, %v1064
        %v1066 = vpop.f32.mrf.mxu0
        %v1067 = vpop.f32.mrf.mxu0
        %v1068 = vadd.f32 %v904, %v1067
        %v1069 = vpop.f32.mrf.mxu0
        %1070 = vmatprep.mubr.bf16.mxu0 0
        %1071 = vmatmul.mubr.bf16.gmra.mxu0 %v987
        %v1072 = vpop.f32.mrf.mxu0
        %v1073 = vadd.f32 %v909, %v1072
        %v1074 = vpop.f32.mrf.mxu0
        %v1075 = vpop.f32.mrf.mxu0
        %v1076 = vadd.f32 %v912, %v1075
        %v1077 = vpop.f32.mrf.mxu0
        %1078 = vmatprep.mubr.bf16.mxu0 0
        %1079 = vmatmul.mubr.bf16.gmra.mxu0 %v990
        %v1080 = vpop.f32.mrf.mxu0
        %v1081 = vadd.f32 %v917, %v1080
        %v1082 = vpop.f32.mrf.mxu0
        %v1083 = vpop.f32.mrf.mxu0
        %v1084 = vadd.f32 %v920, %v1083
        %v1085 = vpop.f32.mrf.mxu0
        %1086 = vmatprep.mubr.bf16.mxu0 0
        %1087 = vmatmul.mubr.bf16.gmra.mxu0 %v993
        %v1088 = vpop.f32.mrf.mxu0
        %v1089 = vadd.f32 %v925, %v1088
        %v1090 = vpop.f32.mrf.mxu0
        %v1091 = vpop.f32.mrf.mxu0
        %v1092 = vadd.f32 %v928, %v1091
        %v1093 = vpop.f32.mrf.mxu0
        %1094 = vdwg.mxu0
        %s1095 = scalar_lea.vmem %s3, 2
        %v1096 = vld [vmem:[%s1095] sm:$0x3]
        %v1097 = vunpack.c.l.b16 %v600
        %v1098 = vunpack.c.l.b16 %v610
        %v1099 = vunpack.c.l.b16 %v624
        %v1100 = vunpack.c.l.b16 %v634
        %v1101 = vunpack.c.l.b16 %v648
        %v1102 = vunpack.c.l.b16 %v658
        %v1103 = vunpack.c.l.b16 %v672
        %v1104 = vunpack.c.l.b16 %v682
        %v1105 = vunpack.c.l.b16 %v696
        %v1106 = vunpack.c.l.b16 %v706
        %v1107 = vunpack.c.l.b16 %v720
        %v1108 = vunpack.c.l.b16 %v730
        %v1109 = vunpack.c.l.b16 %v744
        %v1110 = vunpack.c.l.b16 %v754
        %v1111 = vunpack.c.l.b16 %v768
        %v1112 = vunpack.c.l.b16 %v778
        %v1113 = vpack.c.b16 %v1098, %v1097
        %v1114 = vpack.c.b16 %v1100, %v1099
        %v1115 = vpack.c.b16 %v1102, %v1101
        %v1116 = vpack.c.b16 %v1104, %v1103
        %v1117 = vpack.c.b16 %v1106, %v1105
        %v1118 = vpack.c.b16 %v1108, %v1107
        %v1119 = vpack.c.b16 %v1110, %v1109
        %v1120 = vpack.c.b16 %v1112, %v1111
        %v1122 = vsel %vm805, %v1113, 0
        %v1125 = vsel %vm805, %v1114, 0
        %v1128 = vsel %vm805, %v1115, 0
        %v1131 = vsel %vm805, %v1116, 0
        %v1134 = vsel %vm805, %v1117, 0
        %v1137 = vsel %vm805, %v1118, 0
        %v1140 = vsel %vm805, %v1119, 0
        %v1143 = vsel %vm805, %v1120, 0
        %v1146 = vsel %vm830, %v1096, 0
        %1148 = vmatprep.subr.bf16.mxu0 0
        %1149 = vmatpush1.bf16.msra.mxu0 0
        %1150 = vmatprep.subr.bf16.mxu0 0
        %1151 = vmatpush1.bf16.msra.mxu0 0
        %1152 = vmatprep.subr.bf16.mxu0 0
        %1153 = vmatpush1.bf16.msra.mxu0 0
        %1154 = vmatprep.subr.bf16.mxu0 0
        %1155 = vmatpush1.bf16.msra.mxu0 0
        %1156 = vmatprep.subr.bf16.mxu0 0
        %1157 = vmatpush1.bf16.msra.mxu0 0
        %1158 = vmatprep.subr.bf16.mxu0 0
        %1159 = vmatpush1.bf16.msra.mxu0 0
        %1160 = vmatprep.subr.bf16.mxu0 0
        %1161 = vmatpush1.bf16.msra.mxu0 0
        %1162 = vmatprep.subr.bf16.mxu0 0
        %1163 = vmatpush1.bf16.msra.mxu0 %v1146
        %1164 = vmatprep.subr.bf16.mxu0 0
        %1165 = vmatpush2.bf16.msra.mxu0 0
        %1166 = vmatprep.subr.bf16.mxu0 0
        %1167 = vmatpush2.bf16.msra.mxu0 0
        %1168 = vmatprep.subr.bf16.mxu0 0
        %1169 = vmatpush2.bf16.msra.mxu0 0
        %1170 = vmatprep.subr.bf16.mxu0 0
        %1171 = vmatpush2.bf16.msra.mxu0 0
        %1172 = vmatprep.subr.bf16.mxu0 0
        %1173 = vmatpush2.bf16.msra.mxu0 0
        %1174 = vmatprep.subr.bf16.mxu0 0
        %1175 = vmatpush2.bf16.msra.mxu0 0
        %1176 = vmatprep.subr.bf16.mxu0 0
        %1177 = vmatpush2.bf16.msra.mxu0 0
        %1178 = vmatprep.subr.bf16.mxu0 0
        %1179 = vmatpush2.bf16.msra.mxu0 0
        %1180 = vmatprep.mubr.bf16.mxu0 0
        %1181 = vmatmul.mubr.bf16.gmra.mxu0 %v1122
        %v1182 = vpop.f32.mrf.mxu0
        %v1183 = vadd.f32 0.0, %v1182
        %v1184 = vpop.f32.mrf.mxu0
        %v1185 = vpop.f32.mrf.mxu0
        %v1186 = vadd.f32 0.0, %v1185
        %v1187 = vpop.f32.mrf.mxu0
        %1188 = vmatprep.mubr.bf16.mxu0 0
        %1189 = vmatmul.mubr.bf16.gmra.mxu0 %v1125
        %v1190 = vpop.f32.mrf.mxu0
        %v1191 = vadd.f32 0.0, %v1190
        %v1192 = vpop.f32.mrf.mxu0
        %v1193 = vpop.f32.mrf.mxu0
        %v1194 = vadd.f32 0.0, %v1193
        %v1195 = vpop.f32.mrf.mxu0
        %1196 = vmatprep.mubr.bf16.mxu0 0
        %1197 = vmatmul.mubr.bf16.gmra.mxu0 %v1128
        %v1198 = vpop.f32.mrf.mxu0
        %v1199 = vadd.f32 0.0, %v1198
        %v1200 = vpop.f32.mrf.mxu0
        %v1201 = vpop.f32.mrf.mxu0
        %v1202 = vadd.f32 0.0, %v1201
        %v1203 = vpop.f32.mrf.mxu0
        %1204 = vmatprep.mubr.bf16.mxu0 0
        %1205 = vmatmul.mubr.bf16.gmra.mxu0 %v1131
        %v1206 = vpop.f32.mrf.mxu0
        %v1207 = vadd.f32 0.0, %v1206
        %v1208 = vpop.f32.mrf.mxu0
        %v1209 = vpop.f32.mrf.mxu0
        %v1210 = vadd.f32 0.0, %v1209
        %v1211 = vpop.f32.mrf.mxu0
        %1212 = vmatprep.mubr.bf16.mxu0 0
        %1213 = vmatmul.mubr.bf16.gmra.mxu0 %v1134
        %v1214 = vpop.f32.mrf.mxu0
        %v1215 = vadd.f32 0.0, %v1214
        %v1216 = vpop.f32.mrf.mxu0
        %v1217 = vpop.f32.mrf.mxu0
        %v1218 = vadd.f32 0.0, %v1217
        %v1219 = vpop.f32.mrf.mxu0
        %1220 = vmatprep.mubr.bf16.mxu0 0
        %1221 = vmatmul.mubr.bf16.gmra.mxu0 %v1137
        %v1222 = vpop.f32.mrf.mxu0
        %v1223 = vadd.f32 0.0, %v1222
        %v1224 = vpop.f32.mrf.mxu0
        %v1225 = vpop.f32.mrf.mxu0
        %v1226 = vadd.f32 0.0, %v1225
        %v1227 = vpop.f32.mrf.mxu0
        %1228 = vmatprep.mubr.bf16.mxu0 0
        %1229 = vmatmul.mubr.bf16.gmra.mxu0 %v1140
        %v1230 = vpop.f32.mrf.mxu0
        %v1231 = vadd.f32 0.0, %v1230
        %v1232 = vpop.f32.mrf.mxu0
        %v1233 = vpop.f32.mrf.mxu0
        %v1234 = vadd.f32 0.0, %v1233
        %v1235 = vpop.f32.mrf.mxu0
        %1236 = vmatprep.mubr.bf16.mxu0 0
        %1237 = vmatmul.mubr.bf16.gmra.mxu0 %v1143
        %v1238 = vpop.f32.mrf.mxu0
        %v1239 = vadd.f32 0.0, %v1238
        %v1240 = vpop.f32.mrf.mxu0
        %v1241 = vpop.f32.mrf.mxu0
        %v1242 = vadd.f32 0.0, %v1241
        %v1243 = vpop.f32.mrf.mxu0
        %1244 = vdwg.mxu0
        %v1261 = vunpack.c.l.b16 %v358
        %v1262 = vunpack.c.l.b16 %v359
        %v1263 = vunpack.c.l.b16 %v360
        %v1264 = vunpack.c.l.b16 %v361
        %v1265 = vunpack.c.l.b16 %v362
        %v1266 = vunpack.c.l.b16 %v363
        %v1267 = vunpack.c.l.b16 %v364
        %v1268 = vunpack.c.l.b16 %v365
        %v1269 = vunpack.c.l.b16 %v366
        %v1270 = vunpack.c.l.b16 %v367
        %v1271 = vunpack.c.l.b16 %v368
        %v1272 = vunpack.c.l.b16 %v369
        %v1273 = vunpack.c.l.b16 %v370
        %v1274 = vunpack.c.l.b16 %v371
        %v1275 = vunpack.c.l.b16 %v372
        %v1276 = vunpack.c.l.b16 %v373
        %v1277 = vpack.c.b16 %v1262, %v1261
        %v1278 = vpack.c.b16 %v1264, %v1263
        %v1279 = vpack.c.b16 %v1266, %v1265
        %v1280 = vpack.c.b16 %v1268, %v1267
        %v1281 = vpack.c.b16 %v1270, %v1269
        %v1282 = vpack.c.b16 %v1272, %v1271
        %v1283 = vpack.c.b16 %v1274, %v1273
        %v1284 = vpack.c.b16 %v1276, %v1275
        %v1286 = vsel %vm805, %v1277, 0
        %v1289 = vsel %vm805, %v1278, 0
        %v1292 = vsel %vm805, %v1279, 0
        %v1295 = vsel %vm805, %v1280, 0
        %v1298 = vsel %vm805, %v1281, 0
        %v1301 = vsel %vm805, %v1282, 0
        %v1304 = vsel %vm805, %v1283, 0
        %v1307 = vsel %vm805, %v1284, 0
        %v1310 = vsel %vm830, %v375, 0
        %1312 = vmatprep.subr.bf16.mxu0 0
        %1313 = vmatpush1.bf16.msra.mxu0 0
        %1314 = vmatprep.subr.bf16.mxu0 0
        %1315 = vmatpush1.bf16.msra.mxu0 0
        %1316 = vmatprep.subr.bf16.mxu0 0
        %1317 = vmatpush1.bf16.msra.mxu0 0
        %1318 = vmatprep.subr.bf16.mxu0 0
        %1319 = vmatpush1.bf16.msra.mxu0 0
        %1320 = vmatprep.subr.bf16.mxu0 0
        %1321 = vmatpush1.bf16.msra.mxu0 0
        %1322 = vmatprep.subr.bf16.mxu0 0
        %1323 = vmatpush1.bf16.msra.mxu0 0
        %1324 = vmatprep.subr.bf16.mxu0 0
        %1325 = vmatpush1.bf16.msra.mxu0 0
        %1326 = vmatprep.subr.bf16.mxu0 0
        %1327 = vmatpush1.bf16.msra.mxu0 %v1310
        %1328 = vmatprep.subr.bf16.mxu0 0
        %1329 = vmatpush2.bf16.msra.mxu0 0
        %1330 = vmatprep.subr.bf16.mxu0 0
        %1331 = vmatpush2.bf16.msra.mxu0 0
        %1332 = vmatprep.subr.bf16.mxu0 0
        %1333 = vmatpush2.bf16.msra.mxu0 0
        %1334 = vmatprep.subr.bf16.mxu0 0
        %1335 = vmatpush2.bf16.msra.mxu0 0
        %1336 = vmatprep.subr.bf16.mxu0 0
        %1337 = vmatpush2.bf16.msra.mxu0 0
        %1338 = vmatprep.subr.bf16.mxu0 0
        %1339 = vmatpush2.bf16.msra.mxu0 0
        %1340 = vmatprep.subr.bf16.mxu0 0
        %1341 = vmatpush2.bf16.msra.mxu0 0
        %1342 = vmatprep.subr.bf16.mxu0 0
        %1343 = vmatpush2.bf16.msra.mxu0 0
        %1344 = vmatprep.mubr.bf16.mxu0 0
        %1345 = vmatmul.mubr.bf16.gmra.mxu0 %v1286
        %v1346 = vpop.f32.mrf.mxu0
        %v1347 = vadd.f32 %v1183, %v1346
        %v1348 = vpop.f32.mrf.mxu0
        %v1349 = vpop.f32.mrf.mxu0
        %v1350 = vadd.f32 %v1186, %v1349
        %v1351 = vpop.f32.mrf.mxu0
        %1352 = vmatprep.mubr.bf16.mxu0 0
        %1353 = vmatmul.mubr.bf16.gmra.mxu0 %v1289
        %v1354 = vpop.f32.mrf.mxu0
        %v1355 = vadd.f32 %v1191, %v1354
        %v1356 = vpop.f32.mrf.mxu0
        %v1357 = vpop.f32.mrf.mxu0
        %v1358 = vadd.f32 %v1194, %v1357
        %v1359 = vpop.f32.mrf.mxu0
        %1360 = vmatprep.mubr.bf16.mxu0 0
        %1361 = vmatmul.mubr.bf16.gmra.mxu0 %v1292
        %v1362 = vpop.f32.mrf.mxu0
        %v1363 = vadd.f32 %v1199, %v1362
        %v1364 = vpop.f32.mrf.mxu0
        %v1365 = vpop.f32.mrf.mxu0
        %v1366 = vadd.f32 %v1202, %v1365
        %v1367 = vpop.f32.mrf.mxu0
        %1368 = vmatprep.mubr.bf16.mxu0 0
        %1369 = vmatmul.mubr.bf16.gmra.mxu0 %v1295
        %v1370 = vpop.f32.mrf.mxu0
        %v1371 = vadd.f32 %v1207, %v1370
        %v1372 = vpop.f32.mrf.mxu0
        %v1373 = vpop.f32.mrf.mxu0
        %v1374 = vadd.f32 %v1210, %v1373
        %v1375 = vpop.f32.mrf.mxu0
        %1376 = vmatprep.mubr.bf16.mxu0 0
        %1377 = vmatmul.mubr.bf16.gmra.mxu0 %v1298
        %v1378 = vpop.f32.mrf.mxu0
        %v1379 = vadd.f32 %v1215, %v1378
        %v1380 = vpop.f32.mrf.mxu0
        %v1381 = vpop.f32.mrf.mxu0
        %v1382 = vadd.f32 %v1218, %v1381
        %v1383 = vpop.f32.mrf.mxu0
        %1384 = vmatprep.mubr.bf16.mxu0 0
        %1385 = vmatmul.mubr.bf16.gmra.mxu0 %v1301
        %v1386 = vpop.f32.mrf.mxu0
        %v1387 = vadd.f32 %v1223, %v1386
        %v1388 = vpop.f32.mrf.mxu0
        %v1389 = vpop.f32.mrf.mxu0
        %v1390 = vadd.f32 %v1226, %v1389
        %v1391 = vpop.f32.mrf.mxu0
        %1392 = vmatprep.mubr.bf16.mxu0 0
        %1393 = vmatmul.mubr.bf16.gmra.mxu0 %v1304
        %v1394 = vpop.f32.mrf.mxu0
        %v1395 = vadd.f32 %v1231, %v1394
        %v1396 = vpop.f32.mrf.mxu0
        %v1397 = vpop.f32.mrf.mxu0
        %v1398 = vadd.f32 %v1234, %v1397
        %v1399 = vpop.f32.mrf.mxu0
        %1400 = vmatprep.mubr.bf16.mxu0 0
        %1401 = vmatmul.mubr.bf16.gmra.mxu0 %v1307
        %v1402 = vpop.f32.mrf.mxu0
        %v1403 = vadd.f32 %v1239, %v1402
        %v1404 = vpop.f32.mrf.mxu0
        %v1405 = vpop.f32.mrf.mxu0
        %v1406 = vadd.f32 %v1242, %v1405
        %v1407 = vpop.f32.mrf.mxu0
        %1408 = vdwg.mxu0
        %v1409 = vld [vmem:[%s339] sm:$0xe]
        %v1410 = vld [vmem:[%s339 + $0xc] sm:$0xe]
        %v1411 = vld [vmem:[%s339 + $0x18] sm:$0xe]
        %v1412 = vld [vmem:[%s339 + $0x24] sm:$0xe]
        %v1413 = vld [vmem:[%s339 + $0x30] sm:$0xe]
        %v1414 = vld [vmem:[%s339 + $0x3c] sm:$0xe]
        %v1415 = vld [vmem:[%s339 + $0x48] sm:$0xe]
        %v1416 = vld [vmem:[%s339 + $0x54] sm:$0xe]
        %v1417 = vld [vmem:[%s357] sm:$0xe]
        %v1418 = vld [vmem:[%s357 + $0xc] sm:$0xe]
        %v1419 = vld [vmem:[%s357 + $0x18] sm:$0xe]
        %v1420 = vld [vmem:[%s357 + $0x24] sm:$0xe]
        %v1421 = vld [vmem:[%s357 + $0x30] sm:$0xe]
        %v1422 = vld [vmem:[%s357 + $0x3c] sm:$0xe]
        %v1423 = vld [vmem:[%s357 + $0x48] sm:$0xe]
        %v1424 = vld [vmem:[%s357 + $0x54] sm:$0xe]
        %vm1441 = vcmask 1042432
        %vm1442 = vcmask 1046532
        %vm1443 = vmor %vm1441, %vm1442
        %v1444 = vrot.slane %v1409, 5
        %v1445 = vrot.slane %v1444, 4
        %v1446 = vrot.slane %v341, 5
        %v1447 = vsel %vm1443, %v1445, %v1446
        %v1448 = vrot.slane %v1446, 4
        %v1449 = vrot.slane %v376, 5
        %v1450 = vsel %vm1443, %v1448, %v1449
        %v1451 = vrot.slane %v1410, 5
        %v1452 = vrot.slane %v1451, 4
        %v1453 = vrot.slane %v343, 5
        %v1454 = vsel %vm1443, %v1452, %v1453
        %v1455 = vrot.slane %v1453, 4
        %v1456 = vrot.slane %v377, 5
        %v1457 = vsel %vm1443, %v1455, %v1456
        %v1458 = vrot.slane %v1411, 5
        %v1459 = vrot.slane %v1458, 4
        %v1460 = vrot.slane %v345, 5
        %v1461 = vsel %vm1443, %v1459, %v1460
        %v1462 = vrot.slane %v1460, 4
        %v1463 = vrot.slane %v378, 5
        %v1464 = vsel %vm1443, %v1462, %v1463
        %v1465 = vrot.slane %v1412, 5
        %v1466 = vrot.slane %v1465, 4
        %v1467 = vrot.slane %v347, 5
        %v1468 = vsel %vm1443, %v1466, %v1467
        %v1469 = vrot.slane %v1467, 4
        %v1470 = vrot.slane %v379, 5
        %v1471 = vsel %vm1443, %v1469, %v1470
        %v1472 = vrot.slane %v1413, 5
        %v1473 = vrot.slane %v1472, 4
        %v1474 = vrot.slane %v349, 5
        %v1475 = vsel %vm1443, %v1473, %v1474
        %v1476 = vrot.slane %v1474, 4
        %v1477 = vrot.slane %v380, 5
        %v1478 = vsel %vm1443, %v1476, %v1477
        %v1479 = vrot.slane %v1414, 5
        %v1480 = vrot.slane %v1479, 4
        %v1481 = vrot.slane %v351, 5
        %v1482 = vsel %vm1443, %v1480, %v1481
        %v1483 = vrot.slane %v1481, 4
        %v1484 = vrot.slane %v381, 5
        %v1485 = vsel %vm1443, %v1483, %v1484
        %v1486 = vrot.slane %v1415, 5
        %v1487 = vrot.slane %v1486, 4
        %v1488 = vrot.slane %v353, 5
        %v1489 = vsel %vm1443, %v1487, %v1488
        %v1490 = vrot.slane %v1488, 4
        %v1491 = vrot.slane %v382, 5
        %v1492 = vsel %vm1443, %v1490, %v1491
        %v1493 = vrot.slane %v1416, 5
        %v1494 = vrot.slane %v1493, 4
        %v1495 = vrot.slane %v355, 5
        %v1496 = vsel %vm1443, %v1494, %v1495
        %v1497 = vrot.slane %v1495, 4
        %v1498 = vrot.slane %v383, 5
        %v1499 = vsel %vm1443, %v1497, %v1498
        %v1516 = vrot.slane %v1417, 5
        %v1517 = vrot.slane %v1516, 4
        %v1518 = vrot.slane %v359, 5
        %v1519 = vsel %vm1443, %v1517, %v1518
        %v1520 = vrot.slane %v1518, 4
        %v1521 = vrot.slane %v384, 5
        %v1522 = vsel %vm1443, %v1520, %v1521
        %v1523 = vrot.slane %v1418, 5
        %v1524 = vrot.slane %v1523, 4
        %v1525 = vrot.slane %v361, 5
        %v1526 = vsel %vm1443, %v1524, %v1525
        %v1527 = vrot.slane %v1525, 4
        %v1528 = vrot.slane %v385, 5
        %v1529 = vsel %vm1443, %v1527, %v1528
        %v1530 = vrot.slane %v1419, 5
        %v1531 = vrot.slane %v1530, 4
        %v1532 = vrot.slane %v363, 5
        %v1533 = vsel %vm1443, %v1531, %v1532
        %v1534 = vrot.slane %v1532, 4
        %v1535 = vrot.slane %v386, 5
        %v1536 = vsel %vm1443, %v1534, %v1535
        %v1537 = vrot.slane %v1420, 5
        %v1538 = vrot.slane %v1537, 4
        %v1539 = vrot.slane %v365, 5
        %v1540 = vsel %vm1443, %v1538, %v1539
        %v1541 = vrot.slane %v1539, 4
        %v1542 = vrot.slane %v387, 5
        %v1543 = vsel %vm1443, %v1541, %v1542
        %v1544 = vrot.slane %v1421, 5
        %v1545 = vrot.slane %v1544, 4
        %v1546 = vrot.slane %v367, 5
        %v1547 = vsel %vm1443, %v1545, %v1546
        %v1548 = vrot.slane %v1546, 4
        %v1549 = vrot.slane %v388, 5
        %v1550 = vsel %vm1443, %v1548, %v1549
        %v1551 = vrot.slane %v1422, 5
        %v1552 = vrot.slane %v1551, 4
        %v1553 = vrot.slane %v369, 5
        %v1554 = vsel %vm1443, %v1552, %v1553
        %v1555 = vrot.slane %v1553, 4
        %v1556 = vrot.slane %v389, 5
        %v1557 = vsel %vm1443, %v1555, %v1556
        %v1558 = vrot.slane %v1423, 5
        %v1559 = vrot.slane %v1558, 4
        %v1560 = vrot.slane %v371, 5
        %v1561 = vsel %vm1443, %v1559, %v1560
        %v1562 = vrot.slane %v1560, 4
        %v1563 = vrot.slane %v390, 5
        %v1564 = vsel %vm1443, %v1562, %v1563
        %v1565 = vrot.slane %v1424, 5
        %v1566 = vrot.slane %v1565, 4
        %v1567 = vrot.slane %v373, 5
        %v1568 = vsel %vm1443, %v1566, %v1567
        %v1569 = vrot.slane %v1567, 4
        %v1570 = vrot.slane %v391, 5
        %v1571 = vsel %vm1443, %v1569, %v1570
        %s1572 = scalar_lea.vmem %s2, 4
        %v1573 = vld [vmem:[%s1572] sm:$0x3]
        %v1574 = vunpack.c.l.b16 %v1447
        %v1575 = vunpack.c.l.b16 %v1450
        %v1576 = vunpack.c.l.b16 %v1454
        %v1577 = vunpack.c.l.b16 %v1457
        %v1578 = vunpack.c.l.b16 %v1461
        %v1579 = vunpack.c.l.b16 %v1464
        %v1580 = vunpack.c.l.b16 %v1468
        %v1581 = vunpack.c.l.b16 %v1471
        %v1582 = vunpack.c.l.b16 %v1475
        %v1583 = vunpack.c.l.b16 %v1478
        %v1584 = vunpack.c.l.b16 %v1482
        %v1585 = vunpack.c.l.b16 %v1485
        %v1586 = vunpack.c.l.b16 %v1489
        %v1587 = vunpack.c.l.b16 %v1492
        %v1588 = vunpack.c.l.b16 %v1496
        %v1589 = vunpack.c.l.b16 %v1499
        %v1590 = vpack.c.b16 %v1575, %v1574
        %v1591 = vpack.c.b16 %v1577, %v1576
        %v1592 = vpack.c.b16 %v1579, %v1578
        %v1593 = vpack.c.b16 %v1581, %v1580
        %v1594 = vpack.c.b16 %v1583, %v1582
        %v1595 = vpack.c.b16 %v1585, %v1584
        %v1596 = vpack.c.b16 %v1587, %v1586
        %v1597 = vpack.c.b16 %v1589, %v1588
        %v1599 = vsel %vm805, %v1590, 0
        %v1602 = vsel %vm805, %v1591, 0
        %v1605 = vsel %vm805, %v1592, 0
        %v1608 = vsel %vm805, %v1593, 0
        %v1611 = vsel %vm805, %v1594, 0
        %v1614 = vsel %vm805, %v1595, 0
        %v1617 = vsel %vm805, %v1596, 0
        %v1620 = vsel %vm805, %v1597, 0
        %v1623 = vsel %vm830, %v1573, 0
        %1625 = vmatprep.subr.bf16.mxu0 0
        %1626 = vmatpush1.bf16.msra.mxu0 0
        %1627 = vmatprep.subr.bf16.mxu0 0
        %1628 = vmatpush1.bf16.msra.mxu0 0
        %1629 = vmatprep.subr.bf16.mxu0 0
        %1630 = vmatpush1.bf16.msra.mxu0 0
        %1631 = vmatprep.subr.bf16.mxu0 0
        %1632 = vmatpush1.bf16.msra.mxu0 0
        %1633 = vmatprep.subr.bf16.mxu0 0
        %1634 = vmatpush1.bf16.msra.mxu0 0
        %1635 = vmatprep.subr.bf16.mxu0 0
        %1636 = vmatpush1.bf16.msra.mxu0 0
        %1637 = vmatprep.subr.bf16.mxu0 0
        %1638 = vmatpush1.bf16.msra.mxu0 0
        %1639 = vmatprep.subr.bf16.mxu0 0
        %1640 = vmatpush1.bf16.msra.mxu0 %v1623
        %1641 = vmatprep.subr.bf16.mxu0 0
        %1642 = vmatpush2.bf16.msra.mxu0 0
        %1643 = vmatprep.subr.bf16.mxu0 0
        %1644 = vmatpush2.bf16.msra.mxu0 0
        %1645 = vmatprep.subr.bf16.mxu0 0
        %1646 = vmatpush2.bf16.msra.mxu0 0
        %1647 = vmatprep.subr.bf16.mxu0 0
        %1648 = vmatpush2.bf16.msra.mxu0 0
        %1649 = vmatprep.subr.bf16.mxu0 0
        %1650 = vmatpush2.bf16.msra.mxu0 0
        %1651 = vmatprep.subr.bf16.mxu0 0
        %1652 = vmatpush2.bf16.msra.mxu0 0
        %1653 = vmatprep.subr.bf16.mxu0 0
        %1654 = vmatpush2.bf16.msra.mxu0 0
        %1655 = vmatprep.subr.bf16.mxu0 0
        %1656 = vmatpush2.bf16.msra.mxu0 0
        %1657 = vmatprep.mubr.bf16.mxu0 0
        %1658 = vmatmul.mubr.bf16.gmra.mxu0 %v1599
        %v1659 = vpop.f32.mrf.mxu0
        %v1660 = vadd.f32 0.0, %v1659
        %v1661 = vpop.f32.mrf.mxu0
        %v1662 = vpop.f32.mrf.mxu0
        %v1663 = vadd.f32 0.0, %v1662
        %v1664 = vpop.f32.mrf.mxu0
        %1665 = vmatprep.mubr.bf16.mxu0 0
        %1666 = vmatmul.mubr.bf16.gmra.mxu0 %v1602
        %v1667 = vpop.f32.mrf.mxu0
        %v1668 = vadd.f32 0.0, %v1667
        %v1669 = vpop.f32.mrf.mxu0
        %v1670 = vpop.f32.mrf.mxu0
        %v1671 = vadd.f32 0.0, %v1670
        %v1672 = vpop.f32.mrf.mxu0
        %1673 = vmatprep.mubr.bf16.mxu0 0
        %1674 = vmatmul.mubr.bf16.gmra.mxu0 %v1605
        %v1675 = vpop.f32.mrf.mxu0
        %v1676 = vadd.f32 0.0, %v1675
        %v1677 = vpop.f32.mrf.mxu0
        %v1678 = vpop.f32.mrf.mxu0
        %v1679 = vadd.f32 0.0, %v1678
        %v1680 = vpop.f32.mrf.mxu0
        %1681 = vmatprep.mubr.bf16.mxu0 0
        %1682 = vmatmul.mubr.bf16.gmra.mxu0 %v1608
        %v1683 = vpop.f32.mrf.mxu0
        %v1684 = vadd.f32 0.0, %v1683
        %v1685 = vpop.f32.mrf.mxu0
        %v1686 = vpop.f32.mrf.mxu0
        %v1687 = vadd.f32 0.0, %v1686
        %v1688 = vpop.f32.mrf.mxu0
        %1689 = vmatprep.mubr.bf16.mxu0 0
        %1690 = vmatmul.mubr.bf16.gmra.mxu0 %v1611
        %v1691 = vpop.f32.mrf.mxu0
        %v1692 = vadd.f32 0.0, %v1691
        %v1693 = vpop.f32.mrf.mxu0
        %v1694 = vpop.f32.mrf.mxu0
        %v1695 = vadd.f32 0.0, %v1694
        %v1696 = vpop.f32.mrf.mxu0
        %1697 = vmatprep.mubr.bf16.mxu0 0
        %1698 = vmatmul.mubr.bf16.gmra.mxu0 %v1614
        %v1699 = vpop.f32.mrf.mxu0
        %v1700 = vadd.f32 0.0, %v1699
        %v1701 = vpop.f32.mrf.mxu0
        %v1702 = vpop.f32.mrf.mxu0
        %v1703 = vadd.f32 0.0, %v1702
        %v1704 = vpop.f32.mrf.mxu0
        %1705 = vmatprep.mubr.bf16.mxu0 0
        %1706 = vmatmul.mubr.bf16.gmra.mxu0 %v1617
        %v1707 = vpop.f32.mrf.mxu0
        %v1708 = vadd.f32 0.0, %v1707
        %v1709 = vpop.f32.mrf.mxu0
        %v1710 = vpop.f32.mrf.mxu0
        %v1711 = vadd.f32 0.0, %v1710
        %v1712 = vpop.f32.mrf.mxu0
        %1713 = vmatprep.mubr.bf16.mxu0 0
        %1714 = vmatmul.mubr.bf16.gmra.mxu0 %v1620
        %v1715 = vpop.f32.mrf.mxu0
        %v1716 = vadd.f32 0.0, %v1715
        %v1717 = vpop.f32.mrf.mxu0
        %v1718 = vpop.f32.mrf.mxu0
        %v1719 = vadd.f32 0.0, %v1718
        %v1720 = vpop.f32.mrf.mxu0
        %1721 = vdwg.mxu0
        %v1722 = vadd.f32 %v1033, %v1660
        %v1723 = vadd.f32 %v1036, %v1663
        %v1724 = vadd.f32 %v1041, %v1668
        %v1725 = vadd.f32 %v1044, %v1671
        %v1726 = vadd.f32 %v1049, %v1676
        %v1727 = vadd.f32 %v1052, %v1679
        %v1728 = vadd.f32 %v1057, %v1684
        %v1729 = vadd.f32 %v1060, %v1687
        %v1730 = vadd.f32 %v1065, %v1692
        %v1731 = vadd.f32 %v1068, %v1695
        %v1732 = vadd.f32 %v1073, %v1700
        %v1733 = vadd.f32 %v1076, %v1703
        %v1734 = vadd.f32 %v1081, %v1708
        %v1735 = vadd.f32 %v1084, %v1711
        %v1736 = vadd.f32 %v1089, %v1716
        %v1737 = vadd.f32 %v1092, %v1719
        %s1738 = scalar_lea.vmem %s3, 4
        %v1739 = vld [vmem:[%s1738] sm:$0x3]
        %v1740 = vunpack.c.l.b16 %v1519
        %v1741 = vunpack.c.l.b16 %v1522
        %v1742 = vunpack.c.l.b16 %v1526
        %v1743 = vunpack.c.l.b16 %v1529
        %v1744 = vunpack.c.l.b16 %v1533
        %v1745 = vunpack.c.l.b16 %v1536
        %v1746 = vunpack.c.l.b16 %v1540
        %v1747 = vunpack.c.l.b16 %v1543
        %v1748 = vunpack.c.l.b16 %v1547
        %v1749 = vunpack.c.l.b16 %v1550
        %v1750 = vunpack.c.l.b16 %v1554
        %v1751 = vunpack.c.l.b16 %v1557
        %v1752 = vunpack.c.l.b16 %v1561
        %v1753 = vunpack.c.l.b16 %v1564
        %v1754 = vunpack.c.l.b16 %v1568
        %v1755 = vunpack.c.l.b16 %v1571
        %v1756 = vpack.c.b16 %v1741, %v1740
        %v1757 = vpack.c.b16 %v1743, %v1742
        %v1758 = vpack.c.b16 %v1745, %v1744
        %v1759 = vpack.c.b16 %v1747, %v1746
        %v1760 = vpack.c.b16 %v1749, %v1748
        %v1761 = vpack.c.b16 %v1751, %v1750
        %v1762 = vpack.c.b16 %v1753, %v1752
        %v1763 = vpack.c.b16 %v1755, %v1754
        %v1765 = vsel %vm805, %v1756, 0
        %v1768 = vsel %vm805, %v1757, 0
        %v1771 = vsel %vm805, %v1758, 0
        %v1774 = vsel %vm805, %v1759, 0
        %v1777 = vsel %vm805, %v1760, 0
        %v1780 = vsel %vm805, %v1761, 0
        %v1783 = vsel %vm805, %v1762, 0
        %v1786 = vsel %vm805, %v1763, 0
        %v1789 = vsel %vm830, %v1739, 0
        %1791 = vmatprep.subr.bf16.mxu0 0
        %1792 = vmatpush1.bf16.msra.mxu0 0
        %1793 = vmatprep.subr.bf16.mxu0 0
        %1794 = vmatpush1.bf16.msra.mxu0 0
        %1795 = vmatprep.subr.bf16.mxu0 0
        %1796 = vmatpush1.bf16.msra.mxu0 0
        %1797 = vmatprep.subr.bf16.mxu0 0
        %1798 = vmatpush1.bf16.msra.mxu0 0
        %1799 = vmatprep.subr.bf16.mxu0 0
        %1800 = vmatpush1.bf16.msra.mxu0 0
        %1801 = vmatprep.subr.bf16.mxu0 0
        %1802 = vmatpush1.bf16.msra.mxu0 0
        %1803 = vmatprep.subr.bf16.mxu0 0
        %1804 = vmatpush1.bf16.msra.mxu0 0
        %1805 = vmatprep.subr.bf16.mxu0 0
        %1806 = vmatpush1.bf16.msra.mxu0 %v1789
        %1807 = vmatprep.subr.bf16.mxu0 0
        %1808 = vmatpush2.bf16.msra.mxu0 0
        %1809 = vmatprep.subr.bf16.mxu0 0
        %1810 = vmatpush2.bf16.msra.mxu0 0
        %1811 = vmatprep.subr.bf16.mxu0 0
        %1812 = vmatpush2.bf16.msra.mxu0 0
        %1813 = vmatprep.subr.bf16.mxu0 0
        %1814 = vmatpush2.bf16.msra.mxu0 0
        %1815 = vmatprep.subr.bf16.mxu0 0
        %1816 = vmatpush2.bf16.msra.mxu0 0
        %1817 = vmatprep.subr.bf16.mxu0 0
        %1818 = vmatpush2.bf16.msra.mxu0 0
        %1819 = vmatprep.subr.bf16.mxu0 0
        %1820 = vmatpush2.bf16.msra.mxu0 0
        %1821 = vmatprep.subr.bf16.mxu0 0
        %1822 = vmatpush2.bf16.msra.mxu0 0
        %1823 = vmatprep.mubr.bf16.mxu0 0
        %1824 = vmatmul.mubr.bf16.gmra.mxu0 %v1765
        %v1825 = vpop.f32.mrf.mxu0
        %v1826 = vadd.f32 0.0, %v1825
        %v1827 = vpop.f32.mrf.mxu0
        %v1828 = vpop.f32.mrf.mxu0
        %v1829 = vadd.f32 0.0, %v1828
        %v1830 = vpop.f32.mrf.mxu0
        %1831 = vmatprep.mubr.bf16.mxu0 0
        %1832 = vmatmul.mubr.bf16.gmra.mxu0 %v1768
        %v1833 = vpop.f32.mrf.mxu0
        %v1834 = vadd.f32 0.0, %v1833
        %v1835 = vpop.f32.mrf.mxu0
        %v1836 = vpop.f32.mrf.mxu0
        %v1837 = vadd.f32 0.0, %v1836
        %v1838 = vpop.f32.mrf.mxu0
        %1839 = vmatprep.mubr.bf16.mxu0 0
        %1840 = vmatmul.mubr.bf16.gmra.mxu0 %v1771
        %v1841 = vpop.f32.mrf.mxu0
        %v1842 = vadd.f32 0.0, %v1841
        %v1843 = vpop.f32.mrf.mxu0
        %v1844 = vpop.f32.mrf.mxu0
        %v1845 = vadd.f32 0.0, %v1844
        %v1846 = vpop.f32.mrf.mxu0
        %1847 = vmatprep.mubr.bf16.mxu0 0
        %1848 = vmatmul.mubr.bf16.gmra.mxu0 %v1774
        %v1849 = vpop.f32.mrf.mxu0
        %v1850 = vadd.f32 0.0, %v1849
        %v1851 = vpop.f32.mrf.mxu0
        %v1852 = vpop.f32.mrf.mxu0
        %v1853 = vadd.f32 0.0, %v1852
        %v1854 = vpop.f32.mrf.mxu0
        %1855 = vmatprep.mubr.bf16.mxu0 0
        %1856 = vmatmul.mubr.bf16.gmra.mxu0 %v1777
        %v1857 = vpop.f32.mrf.mxu0
        %v1858 = vadd.f32 0.0, %v1857
        %v1859 = vpop.f32.mrf.mxu0
        %v1860 = vpop.f32.mrf.mxu0
        %v1861 = vadd.f32 0.0, %v1860
        %v1862 = vpop.f32.mrf.mxu0
        %1863 = vmatprep.mubr.bf16.mxu0 0
        %1864 = vmatmul.mubr.bf16.gmra.mxu0 %v1780
        %v1865 = vpop.f32.mrf.mxu0
        %v1866 = vadd.f32 0.0, %v1865
        %v1867 = vpop.f32.mrf.mxu0
        %v1868 = vpop.f32.mrf.mxu0
        %v1869 = vadd.f32 0.0, %v1868
        %v1870 = vpop.f32.mrf.mxu0
        %1871 = vmatprep.mubr.bf16.mxu0 0
        %1872 = vmatmul.mubr.bf16.gmra.mxu0 %v1783
        %v1873 = vpop.f32.mrf.mxu0
        %v1874 = vadd.f32 0.0, %v1873
        %v1875 = vpop.f32.mrf.mxu0
        %v1876 = vpop.f32.mrf.mxu0
        %v1877 = vadd.f32 0.0, %v1876
        %v1878 = vpop.f32.mrf.mxu0
        %1879 = vmatprep.mubr.bf16.mxu0 0
        %1880 = vmatmul.mubr.bf16.gmra.mxu0 %v1786
        %v1881 = vpop.f32.mrf.mxu0
        %v1882 = vadd.f32 0.0, %v1881
        %v1883 = vpop.f32.mrf.mxu0
        %v1884 = vpop.f32.mrf.mxu0
        %v1885 = vadd.f32 0.0, %v1884
        %v1886 = vpop.f32.mrf.mxu0
        %1887 = vdwg.mxu0
        %v1888 = vadd.f32 %v1347, %v1826
        %v1889 = vadd.f32 %v1350, %v1829
        %v1890 = vadd.f32 %v1355, %v1834
        %v1891 = vadd.f32 %v1358, %v1837
        %v1892 = vadd.f32 %v1363, %v1842
        %v1893 = vadd.f32 %v1366, %v1845
        %v1894 = vadd.f32 %v1371, %v1850
        %v1895 = vadd.f32 %v1374, %v1853
        %v1896 = vadd.f32 %v1379, %v1858
        %v1897 = vadd.f32 %v1382, %v1861
        %v1898 = vadd.f32 %v1387, %v1866
        %v1899 = vadd.f32 %v1390, %v1869
        %v1900 = vadd.f32 %v1395, %v1874
        %v1901 = vadd.f32 %v1398, %v1877
        %v1902 = vadd.f32 %v1403, %v1882
        %v1903 = vadd.f32 %v1406, %v1885
        %s1904 = sadd.s32 %s336, 1
        %s1905 = smul.u32 %s1904, 3
        %s1906 = smul.addr %s1905, 4
        %s1907 = scalar_lea.vmem %s327, %s1906
        %v1908 = vld [vmem:[%s1907] sm:$0xf]
        %v1909 = vld [vmem:[%s1907 + $0x4] sm:$0xf]
        %v1910 = vld [vmem:[%s1907 + $0xc] sm:$0xf]
        %v1911 = vld [vmem:[%s1907 + $0x10] sm:$0xf]
        %v1912 = vld [vmem:[%s1907 + $0x18] sm:$0xf]
        %v1913 = vld [vmem:[%s1907 + $0x1c] sm:$0xf]
        %v1914 = vld [vmem:[%s1907 + $0x24] sm:$0xf]
        %v1915 = vld [vmem:[%s1907 + $0x28] sm:$0xf]
        %v1916 = vld [vmem:[%s1907 + $0x30] sm:$0xf]
        %v1917 = vld [vmem:[%s1907 + $0x34] sm:$0xf]
        %v1918 = vld [vmem:[%s1907 + $0x3c] sm:$0xf]
        %v1919 = vld [vmem:[%s1907 + $0x40] sm:$0xf]
        %v1920 = vld [vmem:[%s1907 + $0x48] sm:$0xf]
        %v1921 = vld [vmem:[%s1907 + $0x4c] sm:$0xf]
        %v1922 = vld [vmem:[%s1907 + $0x54] sm:$0xf]
        %v1923 = vld [vmem:[%s1907 + $0x58] sm:$0xf]
        %s1924 = smul.addr %s1905, 4
        %s1925 = scalar_lea.vmem %s332, %s1924
        %v1926 = vld [vmem:[%s1925] sm:$0xf]
        %v1927 = vld [vmem:[%s1925 + $0x4] sm:$0xf]
        %v1928 = vld [vmem:[%s1925 + $0xc] sm:$0xf]
        %v1929 = vld [vmem:[%s1925 + $0x10] sm:$0xf]
        %v1930 = vld [vmem:[%s1925 + $0x18] sm:$0xf]
        %v1931 = vld [vmem:[%s1925 + $0x1c] sm:$0xf]
        %v1932 = vld [vmem:[%s1925 + $0x24] sm:$0xf]
        %v1933 = vld [vmem:[%s1925 + $0x28] sm:$0xf]
        %v1934 = vld [vmem:[%s1925 + $0x30] sm:$0xf]
        %v1935 = vld [vmem:[%s1925 + $0x34] sm:$0xf]
        %v1936 = vld [vmem:[%s1925 + $0x3c] sm:$0xf]
        %v1937 = vld [vmem:[%s1925 + $0x40] sm:$0xf]
        %v1938 = vld [vmem:[%s1925 + $0x48] sm:$0xf]
        %v1939 = vld [vmem:[%s1925 + $0x4c] sm:$0xf]
        %v1940 = vld [vmem:[%s1925 + $0x54] sm:$0xf]
        %v1941 = vld [vmem:[%s1925 + $0x58] sm:$0xf]
        %s1942 = scalar_lea.vmem %s2, 6
        %v1943 = vld [vmem:[%s1942] sm:$0x3]
        %v1960 = vunpack.c.l.b16 %v1908
        %v1961 = vunpack.c.l.b16 %v1909
        %v1962 = vunpack.c.l.b16 %v1910
        %v1963 = vunpack.c.l.b16 %v1911
        %v1964 = vunpack.c.l.b16 %v1912
        %v1965 = vunpack.c.l.b16 %v1913
        %v1966 = vunpack.c.l.b16 %v1914
        %v1967 = vunpack.c.l.b16 %v1915
        %v1968 = vunpack.c.l.b16 %v1916
        %v1969 = vunpack.c.l.b16 %v1917
        %v1970 = vunpack.c.l.b16 %v1918
        %v1971 = vunpack.c.l.b16 %v1919
        %v1972 = vunpack.c.l.b16 %v1920
        %v1973 = vunpack.c.l.b16 %v1921
        %v1974 = vunpack.c.l.b16 %v1922
        %v1975 = vunpack.c.l.b16 %v1923
        %v1976 = vpack.c.b16 %v1961, %v1960
        %v1977 = vpack.c.b16 %v1963, %v1962
        %v1978 = vpack.c.b16 %v1965, %v1964
        %v1979 = vpack.c.b16 %v1967, %v1966
        %v1980 = vpack.c.b16 %v1969, %v1968
        %v1981 = vpack.c.b16 %v1971, %v1970
        %v1982 = vpack.c.b16 %v1973, %v1972
        %v1983 = vpack.c.b16 %v1975, %v1974
        %v1985 = vsel %vm805, %v1976, 0
        %v1988 = vsel %vm805, %v1977, 0
        %v1991 = vsel %vm805, %v1978, 0
        %v1994 = vsel %vm805, %v1979, 0
        %v1997 = vsel %vm805, %v1980, 0
        %v2000 = vsel %vm805, %v1981, 0
        %v2003 = vsel %vm805, %v1982, 0
        %v2006 = vsel %vm805, %v1983, 0
        %v2009 = vsel %vm830, %v1943, 0
        %2011 = vmatprep.subr.bf16.mxu0 0
        %2012 = vmatpush1.bf16.msra.mxu0 0
        %2013 = vmatprep.subr.bf16.mxu0 0
        %2014 = vmatpush1.bf16.msra.mxu0 0
        %2015 = vmatprep.subr.bf16.mxu0 0
        %2016 = vmatpush1.bf16.msra.mxu0 0
        %2017 = vmatprep.subr.bf16.mxu0 0
        %2018 = vmatpush1.bf16.msra.mxu0 0
        %2019 = vmatprep.subr.bf16.mxu0 0
        %2020 = vmatpush1.bf16.msra.mxu0 0
        %2021 = vmatprep.subr.bf16.mxu0 0
        %2022 = vmatpush1.bf16.msra.mxu0 0
        %2023 = vmatprep.subr.bf16.mxu0 0
        %2024 = vmatpush1.bf16.msra.mxu0 0
        %2025 = vmatprep.subr.bf16.mxu0 0
        %2026 = vmatpush1.bf16.msra.mxu0 %v2009
        %2027 = vmatprep.subr.bf16.mxu0 0
        %2028 = vmatpush2.bf16.msra.mxu0 0
        %2029 = vmatprep.subr.bf16.mxu0 0
        %2030 = vmatpush2.bf16.msra.mxu0 0
        %2031 = vmatprep.subr.bf16.mxu0 0
        %2032 = vmatpush2.bf16.msra.mxu0 0
        %2033 = vmatprep.subr.bf16.mxu0 0
        %2034 = vmatpush2.bf16.msra.mxu0 0
        %2035 = vmatprep.subr.bf16.mxu0 0
        %2036 = vmatpush2.bf16.msra.mxu0 0
        %2037 = vmatprep.subr.bf16.mxu0 0
        %2038 = vmatpush2.bf16.msra.mxu0 0
        %2039 = vmatprep.subr.bf16.mxu0 0
        %2040 = vmatpush2.bf16.msra.mxu0 0
        %2041 = vmatprep.subr.bf16.mxu0 0
        %2042 = vmatpush2.bf16.msra.mxu0 0
        %2043 = vmatprep.mubr.bf16.mxu0 0
        %2044 = vmatmul.mubr.bf16.gmra.mxu0 %v1985
        %v2045 = vpop.f32.mrf.mxu0
        %v2046 = vadd.f32 0.0, %v2045
        %v2047 = vpop.f32.mrf.mxu0
        %v2048 = vpop.f32.mrf.mxu0
        %v2049 = vadd.f32 0.0, %v2048
        %v2050 = vpop.f32.mrf.mxu0
        %2051 = vmatprep.mubr.bf16.mxu0 0
        %2052 = vmatmul.mubr.bf16.gmra.mxu0 %v1988
        %v2053 = vpop.f32.mrf.mxu0
        %v2054 = vadd.f32 0.0, %v2053
        %v2055 = vpop.f32.mrf.mxu0
        %v2056 = vpop.f32.mrf.mxu0
        %v2057 = vadd.f32 0.0, %v2056
        %v2058 = vpop.f32.mrf.mxu0
        %2059 = vmatprep.mubr.bf16.mxu0 0
        %2060 = vmatmul.mubr.bf16.gmra.mxu0 %v1991
        %v2061 = vpop.f32.mrf.mxu0
        %v2062 = vadd.f32 0.0, %v2061
        %v2063 = vpop.f32.mrf.mxu0
        %v2064 = vpop.f32.mrf.mxu0
        %v2065 = vadd.f32 0.0, %v2064
        %v2066 = vpop.f32.mrf.mxu0
        %2067 = vmatprep.mubr.bf16.mxu0 0
        %2068 = vmatmul.mubr.bf16.gmra.mxu0 %v1994
        %v2069 = vpop.f32.mrf.mxu0
        %v2070 = vadd.f32 0.0, %v2069
        %v2071 = vpop.f32.mrf.mxu0
        %v2072 = vpop.f32.mrf.mxu0
        %v2073 = vadd.f32 0.0, %v2072
        %v2074 = vpop.f32.mrf.mxu0
        %2075 = vmatprep.mubr.bf16.mxu0 0
        %2076 = vmatmul.mubr.bf16.gmra.mxu0 %v1997
        %v2077 = vpop.f32.mrf.mxu0
        %v2078 = vadd.f32 0.0, %v2077
        %v2079 = vpop.f32.mrf.mxu0
        %v2080 = vpop.f32.mrf.mxu0
        %v2081 = vadd.f32 0.0, %v2080
        %v2082 = vpop.f32.mrf.mxu0
        %2083 = vmatprep.mubr.bf16.mxu0 0
        %2084 = vmatmul.mubr.bf16.gmra.mxu0 %v2000
        %v2085 = vpop.f32.mrf.mxu0
        %v2086 = vadd.f32 0.0, %v2085
        %v2087 = vpop.f32.mrf.mxu0
        %v2088 = vpop.f32.mrf.mxu0
        %v2089 = vadd.f32 0.0, %v2088
        %v2090 = vpop.f32.mrf.mxu0
        %2091 = vmatprep.mubr.bf16.mxu0 0
        %2092 = vmatmul.mubr.bf16.gmra.mxu0 %v2003
        %v2093 = vpop.f32.mrf.mxu0
        %v2094 = vadd.f32 0.0, %v2093
        %v2095 = vpop.f32.mrf.mxu0
        %v2096 = vpop.f32.mrf.mxu0
        %v2097 = vadd.f32 0.0, %v2096
        %v2098 = vpop.f32.mrf.mxu0
        %2099 = vmatprep.mubr.bf16.mxu0 0
        %2100 = vmatmul.mubr.bf16.gmra.mxu0 %v2006
        %v2101 = vpop.f32.mrf.mxu0
        %v2102 = vadd.f32 0.0, %v2101
        %v2103 = vpop.f32.mrf.mxu0
        %v2104 = vpop.f32.mrf.mxu0
        %v2105 = vadd.f32 0.0, %v2104
        %v2106 = vpop.f32.mrf.mxu0
        %2107 = vdwg.mxu0
        %v2108 = vadd.f32 %v1722, %v2046
        %v2109 = vadd.f32 %v1723, %v2049
        %v2110 = vadd.f32 %v1724, %v2054
        %v2111 = vadd.f32 %v1725, %v2057
        %v2112 = vadd.f32 %v1726, %v2062
        %v2113 = vadd.f32 %v1727, %v2065
        %v2114 = vadd.f32 %v1728, %v2070
        %v2115 = vadd.f32 %v1729, %v2073
        %v2116 = vadd.f32 %v1730, %v2078
        %v2117 = vadd.f32 %v1731, %v2081
        %v2118 = vadd.f32 %v1732, %v2086
        %v2119 = vadd.f32 %v1733, %v2089
        %v2120 = vadd.f32 %v1734, %v2094
        %v2121 = vadd.f32 %v1735, %v2097
        %v2122 = vadd.f32 %v1736, %v2102
        %v2123 = vadd.f32 %v1737, %v2105
        %s2124 = scalar_lea.vmem %s3, 6
        %v2125 = vld [vmem:[%s2124] sm:$0x3]
        %v2142 = vunpack.c.l.b16 %v1926
        %v2143 = vunpack.c.l.b16 %v1927
        %v2144 = vunpack.c.l.b16 %v1928
        %v2145 = vunpack.c.l.b16 %v1929
        %v2146 = vunpack.c.l.b16 %v1930
        %v2147 = vunpack.c.l.b16 %v1931
        %v2148 = vunpack.c.l.b16 %v1932
        %v2149 = vunpack.c.l.b16 %v1933
        %v2150 = vunpack.c.l.b16 %v1934
        %v2151 = vunpack.c.l.b16 %v1935
        %v2152 = vunpack.c.l.b16 %v1936
        %v2153 = vunpack.c.l.b16 %v1937
        %v2154 = vunpack.c.l.b16 %v1938
        %v2155 = vunpack.c.l.b16 %v1939
        %v2156 = vunpack.c.l.b16 %v1940
        %v2157 = vunpack.c.l.b16 %v1941
        %v2158 = vpack.c.b16 %v2143, %v2142
        %v2159 = vpack.c.b16 %v2145, %v2144
        %v2160 = vpack.c.b16 %v2147, %v2146
        %v2161 = vpack.c.b16 %v2149, %v2148
        %v2162 = vpack.c.b16 %v2151, %v2150
        %v2163 = vpack.c.b16 %v2153, %v2152
        %v2164 = vpack.c.b16 %v2155, %v2154
        %v2165 = vpack.c.b16 %v2157, %v2156
        %v2167 = vsel %vm805, %v2158, 0
        %v2170 = vsel %vm805, %v2159, 0
        %v2173 = vsel %vm805, %v2160, 0
        %v2176 = vsel %vm805, %v2161, 0
        %v2179 = vsel %vm805, %v2162, 0
        %v2182 = vsel %vm805, %v2163, 0
        %v2185 = vsel %vm805, %v2164, 0
        %v2188 = vsel %vm805, %v2165, 0
        %v2191 = vsel %vm830, %v2125, 0
        %2193 = vmatprep.subr.bf16.mxu0 0
        %2194 = vmatpush1.bf16.msra.mxu0 0
        %2195 = vmatprep.subr.bf16.mxu0 0
        %2196 = vmatpush1.bf16.msra.mxu0 0
        %2197 = vmatprep.subr.bf16.mxu0 0
        %2198 = vmatpush1.bf16.msra.mxu0 0
        %2199 = vmatprep.subr.bf16.mxu0 0
        %2200 = vmatpush1.bf16.msra.mxu0 0
        %2201 = vmatprep.subr.bf16.mxu0 0
        %2202 = vmatpush1.bf16.msra.mxu0 0
        %2203 = vmatprep.subr.bf16.mxu0 0
        %2204 = vmatpush1.bf16.msra.mxu0 0
        %2205 = vmatprep.subr.bf16.mxu0 0
        %2206 = vmatpush1.bf16.msra.mxu0 0
        %2207 = vmatprep.subr.bf16.mxu0 0
        %2208 = vmatpush1.bf16.msra.mxu0 %v2191
        %2209 = vmatprep.subr.bf16.mxu0 0
        %2210 = vmatpush2.bf16.msra.mxu0 0
        %2211 = vmatprep.subr.bf16.mxu0 0
        %2212 = vmatpush2.bf16.msra.mxu0 0
        %2213 = vmatprep.subr.bf16.mxu0 0
        %2214 = vmatpush2.bf16.msra.mxu0 0
        %2215 = vmatprep.subr.bf16.mxu0 0
        %2216 = vmatpush2.bf16.msra.mxu0 0
        %2217 = vmatprep.subr.bf16.mxu0 0
        %2218 = vmatpush2.bf16.msra.mxu0 0
        %2219 = vmatprep.subr.bf16.mxu0 0
        %2220 = vmatpush2.bf16.msra.mxu0 0
        %2221 = vmatprep.subr.bf16.mxu0 0
        %2222 = vmatpush2.bf16.msra.mxu0 0
        %2223 = vmatprep.subr.bf16.mxu0 0
        %2224 = vmatpush2.bf16.msra.mxu0 0
        %2225 = vmatprep.mubr.bf16.mxu0 0
        %2226 = vmatmul.mubr.bf16.gmra.mxu0 %v2167
        %v2227 = vpop.f32.mrf.mxu0
        %v2228 = vadd.f32 0.0, %v2227
        %v2229 = vpop.f32.mrf.mxu0
        %v2230 = vpop.f32.mrf.mxu0
        %v2231 = vadd.f32 0.0, %v2230
        %v2232 = vpop.f32.mrf.mxu0
        %2233 = vmatprep.mubr.bf16.mxu0 0
        %2234 = vmatmul.mubr.bf16.gmra.mxu0 %v2170
        %v2235 = vpop.f32.mrf.mxu0
        %v2236 = vadd.f32 0.0, %v2235
        %v2237 = vpop.f32.mrf.mxu0
        %v2238 = vpop.f32.mrf.mxu0
        %v2239 = vadd.f32 0.0, %v2238
        %v2240 = vpop.f32.mrf.mxu0
        %2241 = vmatprep.mubr.bf16.mxu0 0
        %2242 = vmatmul.mubr.bf16.gmra.mxu0 %v2173
        %v2243 = vpop.f32.mrf.mxu0
        %v2244 = vadd.f32 0.0, %v2243
        %v2245 = vpop.f32.mrf.mxu0
        %v2246 = vpop.f32.mrf.mxu0
        %v2247 = vadd.f32 0.0, %v2246
        %v2248 = vpop.f32.mrf.mxu0
        %2249 = vmatprep.mubr.bf16.mxu0 0
        %2250 = vmatmul.mubr.bf16.gmra.mxu0 %v2176
        %v2251 = vpop.f32.mrf.mxu0
        %v2252 = vadd.f32 0.0, %v2251
        %v2253 = vpop.f32.mrf.mxu0
        %v2254 = vpop.f32.mrf.mxu0
        %v2255 = vadd.f32 0.0, %v2254
        %v2256 = vpop.f32.mrf.mxu0
        %2257 = vmatprep.mubr.bf16.mxu0 0
        %2258 = vmatmul.mubr.bf16.gmra.mxu0 %v2179
        %v2259 = vpop.f32.mrf.mxu0
        %v2260 = vadd.f32 0.0, %v2259
        %v2261 = vpop.f32.mrf.mxu0
        %v2262 = vpop.f32.mrf.mxu0
        %v2263 = vadd.f32 0.0, %v2262
        %v2264 = vpop.f32.mrf.mxu0
        %2265 = vmatprep.mubr.bf16.mxu0 0
        %2266 = vmatmul.mubr.bf16.gmra.mxu0 %v2182
        %v2267 = vpop.f32.mrf.mxu0
        %v2268 = vadd.f32 0.0, %v2267
        %v2269 = vpop.f32.mrf.mxu0
        %v2270 = vpop.f32.mrf.mxu0
        %v2271 = vadd.f32 0.0, %v2270
        %v2272 = vpop.f32.mrf.mxu0
        %2273 = vmatprep.mubr.bf16.mxu0 0
        %2274 = vmatmul.mubr.bf16.gmra.mxu0 %v2185
        %v2275 = vpop.f32.mrf.mxu0
        %v2276 = vadd.f32 0.0, %v2275
        %v2277 = vpop.f32.mrf.mxu0
        %v2278 = vpop.f32.mrf.mxu0
        %v2279 = vadd.f32 0.0, %v2278
        %v2280 = vpop.f32.mrf.mxu0
        %2281 = vmatprep.mubr.bf16.mxu0 0
        %2282 = vmatmul.mubr.bf16.gmra.mxu0 %v2188
        %v2283 = vpop.f32.mrf.mxu0
        %v2284 = vadd.f32 0.0, %v2283
        %v2285 = vpop.f32.mrf.mxu0
        %v2286 = vpop.f32.mrf.mxu0
        %v2287 = vadd.f32 0.0, %v2286
        %v2288 = vpop.f32.mrf.mxu0
        %2289 = vdwg.mxu0
        %v2290 = vadd.f32 %v1888, %v2228
        %v2291 = vadd.f32 %v1889, %v2231
        %v2292 = vadd.f32 %v1890, %v2236
        %v2293 = vadd.f32 %v1891, %v2239
        %v2294 = vadd.f32 %v1892, %v2244
        %v2295 = vadd.f32 %v1893, %v2247
        %v2296 = vadd.f32 %v1894, %v2252
        %v2297 = vadd.f32 %v1895, %v2255
        %v2298 = vadd.f32 %v1896, %v2260
        %v2299 = vadd.f32 %v1897, %v2263
        %v2300 = vadd.f32 %v1898, %v2268
        %v2301 = vadd.f32 %v1899, %v2271
        %v2302 = vadd.f32 %v1900, %v2276
        %v2303 = vadd.f32 %v1901, %v2279
        %v2304 = vadd.f32 %v1902, %v2284
        %v2305 = vadd.f32 %v1903, %v2287
        %v2306 = vld [vmem:[%s1907] sm:$0xf]
        %v2307 = vld [vmem:[%s1907 + $0x4] sm:$0xf]
        %v2308 = vld [vmem:[%s1907 + $0x8] sm:$0x1]
        %v2309 = vld [vmem:[%s1907 + $0xc] sm:$0xf]
        %v2310 = vld [vmem:[%s1907 + $0x10] sm:$0xf]
        %v2311 = vld [vmem:[%s1907 + $0x14] sm:$0x1]
        %v2312 = vld [vmem:[%s1907 + $0x18] sm:$0xf]
        %v2313 = vld [vmem:[%s1907 + $0x1c] sm:$0xf]
        %v2314 = vld [vmem:[%s1907 + $0x20] sm:$0x1]
        %v2315 = vld [vmem:[%s1907 + $0x24] sm:$0xf]
        %v2316 = vld [vmem:[%s1907 + $0x28] sm:$0xf]
        %v2317 = vld [vmem:[%s1907 + $0x2c] sm:$0x1]
        %v2318 = vld [vmem:[%s1907 + $0x30] sm:$0xf]
        %v2319 = vld [vmem:[%s1907 + $0x34] sm:$0xf]
        %v2320 = vld [vmem:[%s1907 + $0x38] sm:$0x1]
        %v2321 = vld [vmem:[%s1907 + $0x3c] sm:$0xf]
        %v2322 = vld [vmem:[%s1907 + $0x40] sm:$0xf]
        %v2323 = vld [vmem:[%s1907 + $0x44] sm:$0x1]
        %v2324 = vld [vmem:[%s1907 + $0x48] sm:$0xf]
        %v2325 = vld [vmem:[%s1907 + $0x4c] sm:$0xf]
        %v2326 = vld [vmem:[%s1907 + $0x50] sm:$0x1]
        %v2327 = vld [vmem:[%s1907 + $0x54] sm:$0xf]
        %v2328 = vld [vmem:[%s1907 + $0x58] sm:$0xf]
        %v2329 = vld [vmem:[%s1907 + $0x5c] sm:$0x1]
        %v2330 = vld [vmem:[%s1925] sm:$0xf]
        %v2331 = vld [vmem:[%s1925 + $0x4] sm:$0xf]
        %v2332 = vld [vmem:[%s1925 + $0x8] sm:$0x1]
        %v2333 = vld [vmem:[%s1925 + $0xc] sm:$0xf]
        %v2334 = vld [vmem:[%s1925 + $0x10] sm:$0xf]
        %v2335 = vld [vmem:[%s1925 + $0x14] sm:$0x1]
        %v2336 = vld [vmem:[%s1925 + $0x18] sm:$0xf]
        %v2337 = vld [vmem:[%s1925 + $0x1c] sm:$0xf]
        %v2338 = vld [vmem:[%s1925 + $0x20] sm:$0x1]
        %v2339 = vld [vmem:[%s1925 + $0x24] sm:$0xf]
        %v2340 = vld [vmem:[%s1925 + $0x28] sm:$0xf]
        %v2341 = vld [vmem:[%s1925 + $0x2c] sm:$0x1]
        %v2342 = vld [vmem:[%s1925 + $0x30] sm:$0xf]
        %v2343 = vld [vmem:[%s1925 + $0x34] sm:$0xf]
        %v2344 = vld [vmem:[%s1925 + $0x38] sm:$0x1]
        %v2345 = vld [vmem:[%s1925 + $0x3c] sm:$0xf]
        %v2346 = vld [vmem:[%s1925 + $0x40] sm:$0xf]
        %v2347 = vld [vmem:[%s1925 + $0x44] sm:$0x1]
        %v2348 = vld [vmem:[%s1925 + $0x48] sm:$0xf]
        %v2349 = vld [vmem:[%s1925 + $0x4c] sm:$0xf]
        %v2350 = vld [vmem:[%s1925 + $0x50] sm:$0x1]
        %v2351 = vld [vmem:[%s1925 + $0x54] sm:$0xf]
        %v2352 = vld [vmem:[%s1925 + $0x58] sm:$0xf]
        %v2353 = vld [vmem:[%s1925 + $0x5c] sm:$0x1]
        %v2355 = vshrl.u32 %v2306, 16
        %v2357 = vrot.slane %v2355, 4
        %v2358 = vshll.u32 %v2306, 16
        %v2360 = vrot.slane %v2358, 5
        %v2361 = vor.u32 %v2357, %v2360
        %v2362 = vrot.slane %v2361, 4
        %v2364 = vshll.u32 %v2307, 16
        %v2366 = vrot.slane %v2364, 5
        %v2367 = vsel %vm394, %v2362, %v2366
        %v2368 = vshrl.u32 %v2307, 16
        %v2370 = vrot.slane %v2368, 4
        %v2371 = vor.u32 %v2370, %v2366
        %v2372 = vrot.slane %v2371, 4
        %v2374 = vshll.u32 %v2308, 16
        %v2376 = vrot.slane %v2374, 5
        %v2377 = vsel %vm394, %v2372, %v2376
        %v2379 = vshrl.u32 %v2309, 16
        %v2381 = vrot.slane %v2379, 4
        %v2382 = vshll.u32 %v2309, 16
        %v2384 = vrot.slane %v2382, 5
        %v2385 = vor.u32 %v2381, %v2384
        %v2386 = vrot.slane %v2385, 4
        %v2388 = vshll.u32 %v2310, 16
        %v2390 = vrot.slane %v2388, 5
        %v2391 = vsel %vm394, %v2386, %v2390
        %v2392 = vshrl.u32 %v2310, 16
        %v2394 = vrot.slane %v2392, 4
        %v2395 = vor.u32 %v2394, %v2390
        %v2396 = vrot.slane %v2395, 4
        %v2398 = vshll.u32 %v2311, 16
        %v2400 = vrot.slane %v2398, 5
        %v2401 = vsel %vm394, %v2396, %v2400
        %v2403 = vshrl.u32 %v2312, 16
        %v2405 = vrot.slane %v2403, 4
        %v2406 = vshll.u32 %v2312, 16
        %v2408 = vrot.slane %v2406, 5
        %v2409 = vor.u32 %v2405, %v2408
        %v2410 = vrot.slane %v2409, 4
        %v2412 = vshll.u32 %v2313, 16
        %v2414 = vrot.slane %v2412, 5
        %v2415 = vsel %vm394, %v2410, %v2414
        %v2416 = vshrl.u32 %v2313, 16
        %v2418 = vrot.slane %v2416, 4
        %v2419 = vor.u32 %v2418, %v2414
        %v2420 = vrot.slane %v2419, 4
        %v2422 = vshll.u32 %v2314, 16
        %v2424 = vrot.slane %v2422, 5
        %v2425 = vsel %vm394, %v2420, %v2424
        %v2427 = vshrl.u32 %v2315, 16
        %v2429 = vrot.slane %v2427, 4
        %v2430 = vshll.u32 %v2315, 16
        %v2432 = vrot.slane %v2430, 5
        %v2433 = vor.u32 %v2429, %v2432
        %v2434 = vrot.slane %v2433, 4
        %v2436 = vshll.u32 %v2316, 16
        %v2438 = vrot.slane %v2436, 5
        %v2439 = vsel %vm394, %v2434, %v2438
        %v2440 = vshrl.u32 %v2316, 16
        %v2442 = vrot.slane %v2440, 4
        %v2443 = vor.u32 %v2442, %v2438
        %v2444 = vrot.slane %v2443, 4
        %v2446 = vshll.u32 %v2317, 16
        %v2448 = vrot.slane %v2446, 5
        %v2449 = vsel %vm394, %v2444, %v2448
        %v2451 = vshrl.u32 %v2318, 16
        %v2453 = vrot.slane %v2451, 4
        %v2454 = vshll.u32 %v2318, 16
        %v2456 = vrot.slane %v2454, 5
        %v2457 = vor.u32 %v2453, %v2456
        %v2458 = vrot.slane %v2457, 4
        %v2460 = vshll.u32 %v2319, 16
        %v2462 = vrot.slane %v2460, 5
        %v2463 = vsel %vm394, %v2458, %v2462
        %v2464 = vshrl.u32 %v2319, 16
        %v2466 = vrot.slane %v2464, 4
        %v2467 = vor.u32 %v2466, %v2462
        %v2468 = vrot.slane %v2467, 4
        %v2470 = vshll.u32 %v2320, 16
        %v2472 = vrot.slane %v2470, 5
        %v2473 = vsel %vm394, %v2468, %v2472
        %v2475 = vshrl.u32 %v2321, 16
        %v2477 = vrot.slane %v2475, 4
        %v2478 = vshll.u32 %v2321, 16
        %v2480 = vrot.slane %v2478, 5
        %v2481 = vor.u32 %v2477, %v2480
        %v2482 = vrot.slane %v2481, 4
        %v2484 = vshll.u32 %v2322, 16
        %v2486 = vrot.slane %v2484, 5
        %v2487 = vsel %vm394, %v2482, %v2486
        %v2488 = vshrl.u32 %v2322, 16
        %v2490 = vrot.slane %v2488, 4
        %v2491 = vor.u32 %v2490, %v2486
        %v2492 = vrot.slane %v2491, 4
        %v2494 = vshll.u32 %v2323, 16
        %v2496 = vrot.slane %v2494, 5
        %v2497 = vsel %vm394, %v2492, %v2496
        %v2499 = vshrl.u32 %v2324, 16
        %v2501 = vrot.slane %v2499, 4
        %v2502 = vshll.u32 %v2324, 16
        %v2504 = vrot.slane %v2502, 5
        %v2505 = vor.u32 %v2501, %v2504
        %v2506 = vrot.slane %v2505, 4
        %v2508 = vshll.u32 %v2325, 16
        %v2510 = vrot.slane %v2508, 5
        %v2511 = vsel %vm394, %v2506, %v2510
        %v2512 = vshrl.u32 %v2325, 16
        %v2514 = vrot.slane %v2512, 4
        %v2515 = vor.u32 %v2514, %v2510
        %v2516 = vrot.slane %v2515, 4
        %v2518 = vshll.u32 %v2326, 16
        %v2520 = vrot.slane %v2518, 5
        %v2521 = vsel %vm394, %v2516, %v2520
        %v2523 = vshrl.u32 %v2327, 16
        %v2525 = vrot.slane %v2523, 4
        %v2526 = vshll.u32 %v2327, 16
        %v2528 = vrot.slane %v2526, 5
        %v2529 = vor.u32 %v2525, %v2528
        %v2530 = vrot.slane %v2529, 4
        %v2532 = vshll.u32 %v2328, 16
        %v2534 = vrot.slane %v2532, 5
        %v2535 = vsel %vm394, %v2530, %v2534
        %v2536 = vshrl.u32 %v2328, 16
        %v2538 = vrot.slane %v2536, 4
        %v2539 = vor.u32 %v2538, %v2534
        %v2540 = vrot.slane %v2539, 4
        %v2542 = vshll.u32 %v2329, 16
        %v2544 = vrot.slane %v2542, 5
        %v2545 = vsel %vm394, %v2540, %v2544
        %v2547 = vshrl.u32 %v2330, 16
        %v2549 = vrot.slane %v2547, 4
        %v2550 = vshll.u32 %v2330, 16
        %v2552 = vrot.slane %v2550, 5
        %v2553 = vor.u32 %v2549, %v2552
        %v2554 = vrot.slane %v2553, 4
        %v2556 = vshll.u32 %v2331, 16
        %v2558 = vrot.slane %v2556, 5
        %v2559 = vsel %vm394, %v2554, %v2558
        %v2560 = vshrl.u32 %v2331, 16
        %v2562 = vrot.slane %v2560, 4
        %v2563 = vor.u32 %v2562, %v2558
        %v2564 = vrot.slane %v2563, 4
        %v2566 = vshll.u32 %v2332, 16
        %v2568 = vrot.slane %v2566, 5
        %v2569 = vsel %vm394, %v2564, %v2568
        %v2571 = vshrl.u32 %v2333, 16
        %v2573 = vrot.slane %v2571, 4
        %v2574 = vshll.u32 %v2333, 16
        %v2576 = vrot.slane %v2574, 5
        %v2577 = vor.u32 %v2573, %v2576
        %v2578 = vrot.slane %v2577, 4
        %v2580 = vshll.u32 %v2334, 16
        %v2582 = vrot.slane %v2580, 5
        %v2583 = vsel %vm394, %v2578, %v2582
        %v2584 = vshrl.u32 %v2334, 16
        %v2586 = vrot.slane %v2584, 4
        %v2587 = vor.u32 %v2586, %v2582
        %v2588 = vrot.slane %v2587, 4
        %v2590 = vshll.u32 %v2335, 16
        %v2592 = vrot.slane %v2590, 5
        %v2593 = vsel %vm394, %v2588, %v2592
        %v2595 = vshrl.u32 %v2336, 16
        %v2597 = vrot.slane %v2595, 4
        %v2598 = vshll.u32 %v2336, 16
        %v2600 = vrot.slane %v2598, 5
        %v2601 = vor.u32 %v2597, %v2600
        %v2602 = vrot.slane %v2601, 4
        %v2604 = vshll.u32 %v2337, 16
        %v2606 = vrot.slane %v2604, 5
        %v2607 = vsel %vm394, %v2602, %v2606
        %v2608 = vshrl.u32 %v2337, 16
        %v2610 = vrot.slane %v2608, 4
        %v2611 = vor.u32 %v2610, %v2606
        %v2612 = vrot.slane %v2611, 4
        %v2614 = vshll.u32 %v2338, 16
        %v2616 = vrot.slane %v2614, 5
        %v2617 = vsel %vm394, %v2612, %v2616
        %v2619 = vshrl.u32 %v2339, 16
        %v2621 = vrot.slane %v2619, 4
        %v2622 = vshll.u32 %v2339, 16
        %v2624 = vrot.slane %v2622, 5
        %v2625 = vor.u32 %v2621, %v2624
        %v2626 = vrot.slane %v2625, 4
        %v2628 = vshll.u32 %v2340, 16
        %v2630 = vrot.slane %v2628, 5
        %v2631 = vsel %vm394, %v2626, %v2630
        %v2632 = vshrl.u32 %v2340, 16
        %v2634 = vrot.slane %v2632, 4
        %v2635 = vor.u32 %v2634, %v2630
        %v2636 = vrot.slane %v2635, 4
        %v2638 = vshll.u32 %v2341, 16
        %v2640 = vrot.slane %v2638, 5
        %v2641 = vsel %vm394, %v2636, %v2640
        %v2643 = vshrl.u32 %v2342, 16
        %v2645 = vrot.slane %v2643, 4
        %v2646 = vshll.u32 %v2342, 16
        %v2648 = vrot.slane %v2646, 5
        %v2649 = vor.u32 %v2645, %v2648
        %v2650 = vrot.slane %v2649, 4
        %v2652 = vshll.u32 %v2343, 16
        %v2654 = vrot.slane %v2652, 5
        %v2655 = vsel %vm394, %v2650, %v2654
        %v2656 = vshrl.u32 %v2343, 16
        %v2658 = vrot.slane %v2656, 4
        %v2659 = vor.u32 %v2658, %v2654
        %v2660 = vrot.slane %v2659, 4
        %v2662 = vshll.u32 %v2344, 16
        %v2664 = vrot.slane %v2662, 5
        %v2665 = vsel %vm394, %v2660, %v2664
        %v2667 = vshrl.u32 %v2345, 16
        %v2669 = vrot.slane %v2667, 4
        %v2670 = vshll.u32 %v2345, 16
        %v2672 = vrot.slane %v2670, 5
        %v2673 = vor.u32 %v2669, %v2672
        %v2674 = vrot.slane %v2673, 4
        %v2676 = vshll.u32 %v2346, 16
        %v2678 = vrot.slane %v2676, 5
        %v2679 = vsel %vm394, %v2674, %v2678
        %v2680 = vshrl.u32 %v2346, 16
        %v2682 = vrot.slane %v2680, 4
        %v2683 = vor.u32 %v2682, %v2678
        %v2684 = vrot.slane %v2683, 4
        %v2686 = vshll.u32 %v2347, 16
        %v2688 = vrot.slane %v2686, 5
        %v2689 = vsel %vm394, %v2684, %v2688
        %v2691 = vshrl.u32 %v2348, 16
        %v2693 = vrot.slane %v2691, 4
        %v2694 = vshll.u32 %v2348, 16
        %v2696 = vrot.slane %v2694, 5
        %v2697 = vor.u32 %v2693, %v2696
        %v2698 = vrot.slane %v2697, 4
        %v2700 = vshll.u32 %v2349, 16
        %v2702 = vrot.slane %v2700, 5
        %v2703 = vsel %vm394, %v2698, %v2702
        %v2704 = vshrl.u32 %v2349, 16
        %v2706 = vrot.slane %v2704, 4
        %v2707 = vor.u32 %v2706, %v2702
        %v2708 = vrot.slane %v2707, 4
        %v2710 = vshll.u32 %v2350, 16
        %v2712 = vrot.slane %v2710, 5
        %v2713 = vsel %vm394, %v2708, %v2712
        %v2715 = vshrl.u32 %v2351, 16
        %v2717 = vrot.slane %v2715, 4
        %v2718 = vshll.u32 %v2351, 16
        %v2720 = vrot.slane %v2718, 5
        %v2721 = vor.u32 %v2717, %v2720
        %v2722 = vrot.slane %v2721, 4
        %v2724 = vshll.u32 %v2352, 16
        %v2726 = vrot.slane %v2724, 5
        %v2727 = vsel %vm394, %v2722, %v2726
        %v2728 = vshrl.u32 %v2352, 16
        %v2730 = vrot.slane %v2728, 4
        %v2731 = vor.u32 %v2730, %v2726
        %v2732 = vrot.slane %v2731, 4
        %v2734 = vshll.u32 %v2353, 16
        %v2736 = vrot.slane %v2734, 5
        %v2737 = vsel %vm394, %v2732, %v2736
        %s2738 = scalar_lea.vmem %s2, 8
        %v2739 = vld [vmem:[%s2738] sm:$0x3]
        %v2740 = vunpack.c.l.b16 %v2367
        %v2741 = vunpack.c.l.b16 %v2377
        %v2742 = vunpack.c.l.b16 %v2391
        %v2743 = vunpack.c.l.b16 %v2401
        %v2744 = vunpack.c.l.b16 %v2415
        %v2745 = vunpack.c.l.b16 %v2425
        %v2746 = vunpack.c.l.b16 %v2439
        %v2747 = vunpack.c.l.b16 %v2449
        %v2748 = vunpack.c.l.b16 %v2463
        %v2749 = vunpack.c.l.b16 %v2473
        %v2750 = vunpack.c.l.b16 %v2487
        %v2751 = vunpack.c.l.b16 %v2497
        %v2752 = vunpack.c.l.b16 %v2511
        %v2753 = vunpack.c.l.b16 %v2521
        %v2754 = vunpack.c.l.b16 %v2535
        %v2755 = vunpack.c.l.b16 %v2545
        %v2756 = vpack.c.b16 %v2741, %v2740
        %v2757 = vpack.c.b16 %v2743, %v2742
        %v2758 = vpack.c.b16 %v2745, %v2744
        %v2759 = vpack.c.b16 %v2747, %v2746
        %v2760 = vpack.c.b16 %v2749, %v2748
        %v2761 = vpack.c.b16 %v2751, %v2750
        %v2762 = vpack.c.b16 %v2753, %v2752
        %v2763 = vpack.c.b16 %v2755, %v2754
        %v2765 = vsel %vm805, %v2756, 0
        %v2768 = vsel %vm805, %v2757, 0
        %v2771 = vsel %vm805, %v2758, 0
        %v2774 = vsel %vm805, %v2759, 0
        %v2777 = vsel %vm805, %v2760, 0
        %v2780 = vsel %vm805, %v2761, 0
        %v2783 = vsel %vm805, %v2762, 0
        %v2786 = vsel %vm805, %v2763, 0
        %v2789 = vsel %vm830, %v2739, 0
        %2791 = vmatprep.subr.bf16.mxu0 0
        %2792 = vmatpush1.bf16.msra.mxu0 0
        %2793 = vmatprep.subr.bf16.mxu0 0
        %2794 = vmatpush1.bf16.msra.mxu0 0
        %2795 = vmatprep.subr.bf16.mxu0 0
        %2796 = vmatpush1.bf16.msra.mxu0 0
        %2797 = vmatprep.subr.bf16.mxu0 0
        %2798 = vmatpush1.bf16.msra.mxu0 0
        %2799 = vmatprep.subr.bf16.mxu0 0
        %2800 = vmatpush1.bf16.msra.mxu0 0
        %2801 = vmatprep.subr.bf16.mxu0 0
        %2802 = vmatpush1.bf16.msra.mxu0 0
        %2803 = vmatprep.subr.bf16.mxu0 0
        %2804 = vmatpush1.bf16.msra.mxu0 0
        %2805 = vmatprep.subr.bf16.mxu0 0
        %2806 = vmatpush1.bf16.msra.mxu0 %v2789
        %2807 = vmatprep.subr.bf16.mxu0 0
        %2808 = vmatpush2.bf16.msra.mxu0 0
        %2809 = vmatprep.subr.bf16.mxu0 0
        %2810 = vmatpush2.bf16.msra.mxu0 0
        %2811 = vmatprep.subr.bf16.mxu0 0
        %2812 = vmatpush2.bf16.msra.mxu0 0
        %2813 = vmatprep.subr.bf16.mxu0 0
        %2814 = vmatpush2.bf16.msra.mxu0 0
        %2815 = vmatprep.subr.bf16.mxu0 0
        %2816 = vmatpush2.bf16.msra.mxu0 0
        %2817 = vmatprep.subr.bf16.mxu0 0
        %2818 = vmatpush2.bf16.msra.mxu0 0
        %2819 = vmatprep.subr.bf16.mxu0 0
        %2820 = vmatpush2.bf16.msra.mxu0 0
        %2821 = vmatprep.subr.bf16.mxu0 0
        %2822 = vmatpush2.bf16.msra.mxu0 0
        %2823 = vmatprep.mubr.bf16.mxu0 0
        %2824 = vmatmul.mubr.bf16.gmra.mxu0 %v2765
        %v2825 = vpop.f32.mrf.mxu0
        %v2826 = vadd.f32 0.0, %v2825
        %v2827 = vpop.f32.mrf.mxu0
        %v2828 = vpop.f32.mrf.mxu0
        %v2829 = vadd.f32 0.0, %v2828
        %v2830 = vpop.f32.mrf.mxu0
        %2831 = vmatprep.mubr.bf16.mxu0 0
        %2832 = vmatmul.mubr.bf16.gmra.mxu0 %v2768
        %v2833 = vpop.f32.mrf.mxu0
        %v2834 = vadd.f32 0.0, %v2833
        %v2835 = vpop.f32.mrf.mxu0
        %v2836 = vpop.f32.mrf.mxu0
        %v2837 = vadd.f32 0.0, %v2836
        %v2838 = vpop.f32.mrf.mxu0
        %2839 = vmatprep.mubr.bf16.mxu0 0
        %2840 = vmatmul.mubr.bf16.gmra.mxu0 %v2771
        %v2841 = vpop.f32.mrf.mxu0
        %v2842 = vadd.f32 0.0, %v2841
        %v2843 = vpop.f32.mrf.mxu0
        %v2844 = vpop.f32.mrf.mxu0
        %v2845 = vadd.f32 0.0, %v2844
        %v2846 = vpop.f32.mrf.mxu0
        %2847 = vmatprep.mubr.bf16.mxu0 0
        %2848 = vmatmul.mubr.bf16.gmra.mxu0 %v2774
        %v2849 = vpop.f32.mrf.mxu0
        %v2850 = vadd.f32 0.0, %v2849
        %v2851 = vpop.f32.mrf.mxu0
        %v2852 = vpop.f32.mrf.mxu0
        %v2853 = vadd.f32 0.0, %v2852
        %v2854 = vpop.f32.mrf.mxu0
        %2855 = vmatprep.mubr.bf16.mxu0 0
        %2856 = vmatmul.mubr.bf16.gmra.mxu0 %v2777
        %v2857 = vpop.f32.mrf.mxu0
        %v2858 = vadd.f32 0.0, %v2857
        %v2859 = vpop.f32.mrf.mxu0
        %v2860 = vpop.f32.mrf.mxu0
        %v2861 = vadd.f32 0.0, %v2860
        %v2862 = vpop.f32.mrf.mxu0
        %2863 = vmatprep.mubr.bf16.mxu0 0
        %2864 = vmatmul.mubr.bf16.gmra.mxu0 %v2780
        %v2865 = vpop.f32.mrf.mxu0
        %v2866 = vadd.f32 0.0, %v2865
        %v2867 = vpop.f32.mrf.mxu0
        %v2868 = vpop.f32.mrf.mxu0
        %v2869 = vadd.f32 0.0, %v2868
        %v2870 = vpop.f32.mrf.mxu0
        %2871 = vmatprep.mubr.bf16.mxu0 0
        %2872 = vmatmul.mubr.bf16.gmra.mxu0 %v2783
        %v2873 = vpop.f32.mrf.mxu0
        %v2874 = vadd.f32 0.0, %v2873
        %v2875 = vpop.f32.mrf.mxu0
        %v2876 = vpop.f32.mrf.mxu0
        %v2877 = vadd.f32 0.0, %v2876
        %v2878 = vpop.f32.mrf.mxu0
        %2879 = vmatprep.mubr.bf16.mxu0 0
        %2880 = vmatmul.mubr.bf16.gmra.mxu0 %v2786
        %v2881 = vpop.f32.mrf.mxu0
        %v2882 = vadd.f32 0.0, %v2881
        %v2883 = vpop.f32.mrf.mxu0
        %v2884 = vpop.f32.mrf.mxu0
        %v2885 = vadd.f32 0.0, %v2884
        %v2886 = vpop.f32.mrf.mxu0
        %2887 = vdwg.mxu0
        %v2888 = vadd.f32 %v2108, %v2826
        %v2889 = vadd.f32 %v2109, %v2829
        %v2890 = vadd.f32 %v2110, %v2834
        %v2891 = vadd.f32 %v2111, %v2837
        %v2892 = vadd.f32 %v2112, %v2842
        %v2893 = vadd.f32 %v2113, %v2845
        %v2894 = vadd.f32 %v2114, %v2850
        %v2895 = vadd.f32 %v2115, %v2853
        %v2896 = vadd.f32 %v2116, %v2858
        %v2897 = vadd.f32 %v2117, %v2861
        %v2898 = vadd.f32 %v2118, %v2866
        %v2899 = vadd.f32 %v2119, %v2869
        %v2900 = vadd.f32 %v2120, %v2874
        %v2901 = vadd.f32 %v2121, %v2877
        %v2902 = vadd.f32 %v2122, %v2882
        %v2903 = vadd.f32 %v2123, %v2885
        %s2904 = scalar_lea.vmem %s3, 8
        %v2905 = vld [vmem:[%s2904] sm:$0x3]
        %v2906 = vunpack.c.l.b16 %v2559
        %v2907 = vunpack.c.l.b16 %v2569
        %v2908 = vunpack.c.l.b16 %v2583
        %v2909 = vunpack.c.l.b16 %v2593
        %v2910 = vunpack.c.l.b16 %v2607
        %v2911 = vunpack.c.l.b16 %v2617
        %v2912 = vunpack.c.l.b16 %v2631
        %v2913 = vunpack.c.l.b16 %v2641
        %v2914 = vunpack.c.l.b16 %v2655
        %v2915 = vunpack.c.l.b16 %v2665
        %v2916 = vunpack.c.l.b16 %v2679
        %v2917 = vunpack.c.l.b16 %v2689
        %v2918 = vunpack.c.l.b16 %v2703
        %v2919 = vunpack.c.l.b16 %v2713
        %v2920 = vunpack.c.l.b16 %v2727
        %v2921 = vunpack.c.l.b16 %v2737
        %v2922 = vpack.c.b16 %v2907, %v2906
        %v2923 = vpack.c.b16 %v2909, %v2908
        %v2924 = vpack.c.b16 %v2911, %v2910
        %v2925 = vpack.c.b16 %v2913, %v2912
        %v2926 = vpack.c.b16 %v2915, %v2914
        %v2927 = vpack.c.b16 %v2917, %v2916
        %v2928 = vpack.c.b16 %v2919, %v2918
        %v2929 = vpack.c.b16 %v2921, %v2920
        %v2931 = vsel %vm805, %v2922, 0
        %v2934 = vsel %vm805, %v2923, 0
        %v2937 = vsel %vm805, %v2924, 0
        %v2940 = vsel %vm805, %v2925, 0
        %v2943 = vsel %vm805, %v2926, 0
        %v2946 = vsel %vm805, %v2927, 0
        %v2949 = vsel %vm805, %v2928, 0
        %v2952 = vsel %vm805, %v2929, 0
        %v2955 = vsel %vm830, %v2905, 0
        %2957 = vmatprep.subr.bf16.mxu0 0
        %2958 = vmatpush1.bf16.msra.mxu0 0
        %2959 = vmatprep.subr.bf16.mxu0 0
        %2960 = vmatpush1.bf16.msra.mxu0 0
        %2961 = vmatprep.subr.bf16.mxu0 0
        %2962 = vmatpush1.bf16.msra.mxu0 0
        %2963 = vmatprep.subr.bf16.mxu0 0
        %2964 = vmatpush1.bf16.msra.mxu0 0
        %2965 = vmatprep.subr.bf16.mxu0 0
        %2966 = vmatpush1.bf16.msra.mxu0 0
        %2967 = vmatprep.subr.bf16.mxu0 0
        %2968 = vmatpush1.bf16.msra.mxu0 0
        %2969 = vmatprep.subr.bf16.mxu0 0
        %2970 = vmatpush1.bf16.msra.mxu0 0
        %2971 = vmatprep.subr.bf16.mxu0 0
        %2972 = vmatpush1.bf16.msra.mxu0 %v2955
        %2973 = vmatprep.subr.bf16.mxu0 0
        %2974 = vmatpush2.bf16.msra.mxu0 0
        %2975 = vmatprep.subr.bf16.mxu0 0
        %2976 = vmatpush2.bf16.msra.mxu0 0
        %2977 = vmatprep.subr.bf16.mxu0 0
        %2978 = vmatpush2.bf16.msra.mxu0 0
        %2979 = vmatprep.subr.bf16.mxu0 0
        %2980 = vmatpush2.bf16.msra.mxu0 0
        %2981 = vmatprep.subr.bf16.mxu0 0
        %2982 = vmatpush2.bf16.msra.mxu0 0
        %2983 = vmatprep.subr.bf16.mxu0 0
        %2984 = vmatpush2.bf16.msra.mxu0 0
        %2985 = vmatprep.subr.bf16.mxu0 0
        %2986 = vmatpush2.bf16.msra.mxu0 0
        %2987 = vmatprep.subr.bf16.mxu0 0
        %2988 = vmatpush2.bf16.msra.mxu0 0
        %2989 = vmatprep.mubr.bf16.mxu0 0
        %2990 = vmatmul.mubr.bf16.gmra.mxu0 %v2931
        %v2991 = vpop.f32.mrf.mxu0
        %v2992 = vadd.f32 0.0, %v2991
        %v2993 = vpop.f32.mrf.mxu0
        %v2994 = vpop.f32.mrf.mxu0
        %v2995 = vadd.f32 0.0, %v2994
        %v2996 = vpop.f32.mrf.mxu0
        %2997 = vmatprep.mubr.bf16.mxu0 0
        %2998 = vmatmul.mubr.bf16.gmra.mxu0 %v2934
        %v2999 = vpop.f32.mrf.mxu0
        %v3000 = vadd.f32 0.0, %v2999
        %v3001 = vpop.f32.mrf.mxu0
        %v3002 = vpop.f32.mrf.mxu0
        %v3003 = vadd.f32 0.0, %v3002
        %v3004 = vpop.f32.mrf.mxu0
        %3005 = vmatprep.mubr.bf16.mxu0 0
        %3006 = vmatmul.mubr.bf16.gmra.mxu0 %v2937
        %v3007 = vpop.f32.mrf.mxu0
        %v3008 = vadd.f32 0.0, %v3007
        %v3009 = vpop.f32.mrf.mxu0
        %v3010 = vpop.f32.mrf.mxu0
        %v3011 = vadd.f32 0.0, %v3010
        %v3012 = vpop.f32.mrf.mxu0
        %3013 = vmatprep.mubr.bf16.mxu0 0
        %3014 = vmatmul.mubr.bf16.gmra.mxu0 %v2940
        %v3015 = vpop.f32.mrf.mxu0
        %v3016 = vadd.f32 0.0, %v3015
        %v3017 = vpop.f32.mrf.mxu0
        %v3018 = vpop.f32.mrf.mxu0
        %v3019 = vadd.f32 0.0, %v3018
        %v3020 = vpop.f32.mrf.mxu0
        %3021 = vmatprep.mubr.bf16.mxu0 0
        %3022 = vmatmul.mubr.bf16.gmra.mxu0 %v2943
        %v3023 = vpop.f32.mrf.mxu0
        %v3024 = vadd.f32 0.0, %v3023
        %v3025 = vpop.f32.mrf.mxu0
        %v3026 = vpop.f32.mrf.mxu0
        %v3027 = vadd.f32 0.0, %v3026
        %v3028 = vpop.f32.mrf.mxu0
        %3029 = vmatprep.mubr.bf16.mxu0 0
        %3030 = vmatmul.mubr.bf16.gmra.mxu0 %v2946
        %v3031 = vpop.f32.mrf.mxu0
        %v3032 = vadd.f32 0.0, %v3031
        %v3033 = vpop.f32.mrf.mxu0
        %v3034 = vpop.f32.mrf.mxu0
        %v3035 = vadd.f32 0.0, %v3034
        %v3036 = vpop.f32.mrf.mxu0
        %3037 = vmatprep.mubr.bf16.mxu0 0
        %3038 = vmatmul.mubr.bf16.gmra.mxu0 %v2949
        %v3039 = vpop.f32.mrf.mxu0
        %v3040 = vadd.f32 0.0, %v3039
        %v3041 = vpop.f32.mrf.mxu0
        %v3042 = vpop.f32.mrf.mxu0
        %v3043 = vadd.f32 0.0, %v3042
        %v3044 = vpop.f32.mrf.mxu0
        %3045 = vmatprep.mubr.bf16.mxu0 0
        %3046 = vmatmul.mubr.bf16.gmra.mxu0 %v2952
        %v3047 = vpop.f32.mrf.mxu0
        %v3048 = vadd.f32 0.0, %v3047
        %v3049 = vpop.f32.mrf.mxu0
        %v3050 = vpop.f32.mrf.mxu0
        %v3051 = vadd.f32 0.0, %v3050
        %v3052 = vpop.f32.mrf.mxu0
        %3053 = vdwg.mxu0
        %v3054 = vadd.f32 %v2290, %v2992
        %v3055 = vadd.f32 %v2291, %v2995
        %v3056 = vadd.f32 %v2292, %v3000
        %v3057 = vadd.f32 %v2293, %v3003
        %v3058 = vadd.f32 %v2294, %v3008
        %v3059 = vadd.f32 %v2295, %v3011
        %v3060 = vadd.f32 %v2296, %v3016
        %v3061 = vadd.f32 %v2297, %v3019
        %v3062 = vadd.f32 %v2298, %v3024
        %v3063 = vadd.f32 %v2299, %v3027
        %v3064 = vadd.f32 %v2300, %v3032
        %v3065 = vadd.f32 %v2301, %v3035
        %v3066 = vadd.f32 %v2302, %v3040
        %v3067 = vadd.f32 %v2303, %v3043
        %v3068 = vadd.f32 %v2304, %v3048
        %v3069 = vadd.f32 %v2305, %v3051
        %v3070 = vld [vmem:[%s1907] sm:$0xe]
        %v3071 = vld [vmem:[%s1907 + $0xc] sm:$0xe]
        %v3072 = vld [vmem:[%s1907 + $0x18] sm:$0xe]
        %v3073 = vld [vmem:[%s1907 + $0x24] sm:$0xe]
        %v3074 = vld [vmem:[%s1907 + $0x30] sm:$0xe]
        %v3075 = vld [vmem:[%s1907 + $0x3c] sm:$0xe]
        %v3076 = vld [vmem:[%s1907 + $0x48] sm:$0xe]
        %v3077 = vld [vmem:[%s1907 + $0x54] sm:$0xe]
        %v3078 = vld [vmem:[%s1925] sm:$0xe]
        %v3079 = vld [vmem:[%s1925 + $0xc] sm:$0xe]
        %v3080 = vld [vmem:[%s1925 + $0x18] sm:$0xe]
        %v3081 = vld [vmem:[%s1925 + $0x24] sm:$0xe]
        %v3082 = vld [vmem:[%s1925 + $0x30] sm:$0xe]
        %v3083 = vld [vmem:[%s1925 + $0x3c] sm:$0xe]
        %v3084 = vld [vmem:[%s1925 + $0x48] sm:$0xe]
        %v3085 = vld [vmem:[%s1925 + $0x54] sm:$0xe]
        %v3110 = vrot.slane %v3070, 5
        %v3111 = vrot.slane %v3110, 4
        %v3112 = vrot.slane %v2307, 5
        %v3113 = vsel %vm1443, %v3111, %v3112
        %v3114 = vrot.slane %v3112, 4
        %v3115 = vrot.slane %v2308, 5
        %v3116 = vsel %vm1443, %v3114, %v3115
        %v3117 = vrot.slane %v3071, 5
        %v3118 = vrot.slane %v3117, 4
        %v3119 = vrot.slane %v2310, 5
        %v3120 = vsel %vm1443, %v3118, %v3119
        %v3121 = vrot.slane %v3119, 4
        %v3122 = vrot.slane %v2311, 5
        %v3123 = vsel %vm1443, %v3121, %v3122
        %v3124 = vrot.slane %v3072, 5
        %v3125 = vrot.slane %v3124, 4
        %v3126 = vrot.slane %v2313, 5
        %v3127 = vsel %vm1443, %v3125, %v3126
        %v3128 = vrot.slane %v3126, 4
        %v3129 = vrot.slane %v2314, 5
        %v3130 = vsel %vm1443, %v3128, %v3129
        %v3131 = vrot.slane %v3073, 5
        %v3132 = vrot.slane %v3131, 4
        %v3133 = vrot.slane %v2316, 5
        %v3134 = vsel %vm1443, %v3132, %v3133
        %v3135 = vrot.slane %v3133, 4
        %v3136 = vrot.slane %v2317, 5
        %v3137 = vsel %vm1443, %v3135, %v3136
        %v3138 = vrot.slane %v3074, 5
        %v3139 = vrot.slane %v3138, 4
        %v3140 = vrot.slane %v2319, 5
        %v3141 = vsel %vm1443, %v3139, %v3140
        %v3142 = vrot.slane %v3140, 4
        %v3143 = vrot.slane %v2320, 5
        %v3144 = vsel %vm1443, %v3142, %v3143
        %v3145 = vrot.slane %v3075, 5
        %v3146 = vrot.slane %v3145, 4
        %v3147 = vrot.slane %v2322, 5
        %v3148 = vsel %vm1443, %v3146, %v3147
        %v3149 = vrot.slane %v3147, 4
        %v3150 = vrot.slane %v2323, 5
        %v3151 = vsel %vm1443, %v3149, %v3150
        %v3152 = vrot.slane %v3076, 5
        %v3153 = vrot.slane %v3152, 4
        %v3154 = vrot.slane %v2325, 5
        %v3155 = vsel %vm1443, %v3153, %v3154
        %v3156 = vrot.slane %v3154, 4
        %v3157 = vrot.slane %v2326, 5
        %v3158 = vsel %vm1443, %v3156, %v3157
        %v3159 = vrot.slane %v3077, 5
        %v3160 = vrot.slane %v3159, 4
        %v3161 = vrot.slane %v2328, 5
        %v3162 = vsel %vm1443, %v3160, %v3161
        %v3163 = vrot.slane %v3161, 4
        %v3164 = vrot.slane %v2329, 5
        %v3165 = vsel %vm1443, %v3163, %v3164
        %v3190 = vrot.slane %v3078, 5
        %v3191 = vrot.slane %v3190, 4
        %v3192 = vrot.slane %v2331, 5
        %v3193 = vsel %vm1443, %v3191, %v3192
        %v3194 = vrot.slane %v3192, 4
        %v3195 = vrot.slane %v2332, 5
        %v3196 = vsel %vm1443, %v3194, %v3195
        %v3197 = vrot.slane %v3079, 5
        %v3198 = vrot.slane %v3197, 4
        %v3199 = vrot.slane %v2334, 5
        %v3200 = vsel %vm1443, %v3198, %v3199
        %v3201 = vrot.slane %v3199, 4
        %v3202 = vrot.slane %v2335, 5
        %v3203 = vsel %vm1443, %v3201, %v3202
        %v3204 = vrot.slane %v3080, 5
        %v3205 = vrot.slane %v3204, 4
        %v3206 = vrot.slane %v2337, 5
        %v3207 = vsel %vm1443, %v3205, %v3206
        %v3208 = vrot.slane %v3206, 4
        %v3209 = vrot.slane %v2338, 5
        %v3210 = vsel %vm1443, %v3208, %v3209
        %v3211 = vrot.slane %v3081, 5
        %v3212 = vrot.slane %v3211, 4
        %v3213 = vrot.slane %v2340, 5
        %v3214 = vsel %vm1443, %v3212, %v3213
        %v3215 = vrot.slane %v3213, 4
        %v3216 = vrot.slane %v2341, 5
        %v3217 = vsel %vm1443, %v3215, %v3216
        %v3218 = vrot.slane %v3082, 5
        %v3219 = vrot.slane %v3218, 4
        %v3220 = vrot.slane %v2343, 5
        %v3221 = vsel %vm1443, %v3219, %v3220
        %v3222 = vrot.slane %v3220, 4
        %v3223 = vrot.slane %v2344, 5
        %v3224 = vsel %vm1443, %v3222, %v3223
        %v3225 = vrot.slane %v3083, 5
        %v3226 = vrot.slane %v3225, 4
        %v3227 = vrot.slane %v2346, 5
        %v3228 = vsel %vm1443, %v3226, %v3227
        %v3229 = vrot.slane %v3227, 4
        %v3230 = vrot.slane %v2347, 5
        %v3231 = vsel %vm1443, %v3229, %v3230
        %v3232 = vrot.slane %v3084, 5
        %v3233 = vrot.slane %v3232, 4
        %v3234 = vrot.slane %v2349, 5
        %v3235 = vsel %vm1443, %v3233, %v3234
        %v3236 = vrot.slane %v3234, 4
        %v3237 = vrot.slane %v2350, 5
        %v3238 = vsel %vm1443, %v3236, %v3237
        %v3239 = vrot.slane %v3085, 5
        %v3240 = vrot.slane %v3239, 4
        %v3241 = vrot.slane %v2352, 5
        %v3242 = vsel %vm1443, %v3240, %v3241
        %v3243 = vrot.slane %v3241, 4
        %v3244 = vrot.slane %v2353, 5
        %v3245 = vsel %vm1443, %v3243, %v3244
        %s3246 = scalar_lea.vmem %s2, 10
        %v3247 = vld [vmem:[%s3246] sm:$0x3]
        %v3248 = vunpack.c.l.b16 %v3113
        %v3249 = vunpack.c.l.b16 %v3116
        %v3250 = vunpack.c.l.b16 %v3120
        %v3251 = vunpack.c.l.b16 %v3123
        %v3252 = vunpack.c.l.b16 %v3127
        %v3253 = vunpack.c.l.b16 %v3130
        %v3254 = vunpack.c.l.b16 %v3134
        %v3255 = vunpack.c.l.b16 %v3137
        %v3256 = vunpack.c.l.b16 %v3141
        %v3257 = vunpack.c.l.b16 %v3144
        %v3258 = vunpack.c.l.b16 %v3148
        %v3259 = vunpack.c.l.b16 %v3151
        %v3260 = vunpack.c.l.b16 %v3155
        %v3261 = vunpack.c.l.b16 %v3158
        %v3262 = vunpack.c.l.b16 %v3162
        %v3263 = vunpack.c.l.b16 %v3165
        %v3264 = vpack.c.b16 %v3249, %v3248
        %v3265 = vpack.c.b16 %v3251, %v3250
        %v3266 = vpack.c.b16 %v3253, %v3252
        %v3267 = vpack.c.b16 %v3255, %v3254
        %v3268 = vpack.c.b16 %v3257, %v3256
        %v3269 = vpack.c.b16 %v3259, %v3258
        %v3270 = vpack.c.b16 %v3261, %v3260
        %v3271 = vpack.c.b16 %v3263, %v3262
        %v3273 = vsel %vm805, %v3264, 0
        %v3276 = vsel %vm805, %v3265, 0
        %v3279 = vsel %vm805, %v3266, 0
        %v3282 = vsel %vm805, %v3267, 0
        %v3285 = vsel %vm805, %v3268, 0
        %v3288 = vsel %vm805, %v3269, 0
        %v3291 = vsel %vm805, %v3270, 0
        %v3294 = vsel %vm805, %v3271, 0
        %v3297 = vsel %vm830, %v3247, 0
        %3299 = vmatprep.subr.bf16.mxu0 0
        %3300 = vmatpush1.bf16.msra.mxu0 0
        %3301 = vmatprep.subr.bf16.mxu0 0
        %3302 = vmatpush1.bf16.msra.mxu0 0
        %3303 = vmatprep.subr.bf16.mxu0 0
        %3304 = vmatpush1.bf16.msra.mxu0 0
        %3305 = vmatprep.subr.bf16.mxu0 0
        %3306 = vmatpush1.bf16.msra.mxu0 0
        %3307 = vmatprep.subr.bf16.mxu0 0
        %3308 = vmatpush1.bf16.msra.mxu0 0
        %3309 = vmatprep.subr.bf16.mxu0 0
        %3310 = vmatpush1.bf16.msra.mxu0 0
        %3311 = vmatprep.subr.bf16.mxu0 0
        %3312 = vmatpush1.bf16.msra.mxu0 0
        %3313 = vmatprep.subr.bf16.mxu0 0
        %3314 = vmatpush1.bf16.msra.mxu0 %v3297
        %3315 = vmatprep.subr.bf16.mxu0 0
        %3316 = vmatpush2.bf16.msra.mxu0 0
        %3317 = vmatprep.subr.bf16.mxu0 0
        %3318 = vmatpush2.bf16.msra.mxu0 0
        %3319 = vmatprep.subr.bf16.mxu0 0
        %3320 = vmatpush2.bf16.msra.mxu0 0
        %3321 = vmatprep.subr.bf16.mxu0 0
        %3322 = vmatpush2.bf16.msra.mxu0 0
        %3323 = vmatprep.subr.bf16.mxu0 0
        %3324 = vmatpush2.bf16.msra.mxu0 0
        %3325 = vmatprep.subr.bf16.mxu0 0
        %3326 = vmatpush2.bf16.msra.mxu0 0
        %3327 = vmatprep.subr.bf16.mxu0 0
        %3328 = vmatpush2.bf16.msra.mxu0 0
        %3329 = vmatprep.subr.bf16.mxu0 0
        %3330 = vmatpush2.bf16.msra.mxu0 0
        %3331 = vmatprep.mubr.bf16.mxu0 0
        %3332 = vmatmul.mubr.bf16.gmra.mxu0 %v3273
        %v3333 = vpop.f32.mrf.mxu0
        %v3334 = vadd.f32 0.0, %v3333
        %v3335 = vpop.f32.mrf.mxu0
        %v3336 = vpop.f32.mrf.mxu0
        %v3337 = vadd.f32 0.0, %v3336
        %v3338 = vpop.f32.mrf.mxu0
        %3339 = vmatprep.mubr.bf16.mxu0 0
        %3340 = vmatmul.mubr.bf16.gmra.mxu0 %v3276
        %v3341 = vpop.f32.mrf.mxu0
        %v3342 = vadd.f32 0.0, %v3341
        %v3343 = vpop.f32.mrf.mxu0
        %v3344 = vpop.f32.mrf.mxu0
        %v3345 = vadd.f32 0.0, %v3344
        %v3346 = vpop.f32.mrf.mxu0
        %3347 = vmatprep.mubr.bf16.mxu0 0
        %3348 = vmatmul.mubr.bf16.gmra.mxu0 %v3279
        %v3349 = vpop.f32.mrf.mxu0
        %v3350 = vadd.f32 0.0, %v3349
        %v3351 = vpop.f32.mrf.mxu0
        %v3352 = vpop.f32.mrf.mxu0
        %v3353 = vadd.f32 0.0, %v3352
        %v3354 = vpop.f32.mrf.mxu0
        %3355 = vmatprep.mubr.bf16.mxu0 0
        %3356 = vmatmul.mubr.bf16.gmra.mxu0 %v3282
        %v3357 = vpop.f32.mrf.mxu0
        %v3358 = vadd.f32 0.0, %v3357
        %v3359 = vpop.f32.mrf.mxu0
        %v3360 = vpop.f32.mrf.mxu0
        %v3361 = vadd.f32 0.0, %v3360
        %v3362 = vpop.f32.mrf.mxu0
        %3363 = vmatprep.mubr.bf16.mxu0 0
        %3364 = vmatmul.mubr.bf16.gmra.mxu0 %v3285
        %v3365 = vpop.f32.mrf.mxu0
        %v3366 = vadd.f32 0.0, %v3365
        %v3367 = vpop.f32.mrf.mxu0
        %v3368 = vpop.f32.mrf.mxu0
        %v3369 = vadd.f32 0.0, %v3368
        %v3370 = vpop.f32.mrf.mxu0
        %3371 = vmatprep.mubr.bf16.mxu0 0
        %3372 = vmatmul.mubr.bf16.gmra.mxu0 %v3288
        %v3373 = vpop.f32.mrf.mxu0
        %v3374 = vadd.f32 0.0, %v3373
        %v3375 = vpop.f32.mrf.mxu0
        %v3376 = vpop.f32.mrf.mxu0
        %v3377 = vadd.f32 0.0, %v3376
        %v3378 = vpop.f32.mrf.mxu0
        %3379 = vmatprep.mubr.bf16.mxu0 0
        %3380 = vmatmul.mubr.bf16.gmra.mxu0 %v3291
        %v3381 = vpop.f32.mrf.mxu0
        %v3382 = vadd.f32 0.0, %v3381
        %v3383 = vpop.f32.mrf.mxu0
        %v3384 = vpop.f32.mrf.mxu0
        %v3385 = vadd.f32 0.0, %v3384
        %v3386 = vpop.f32.mrf.mxu0
        %3387 = vmatprep.mubr.bf16.mxu0 0
        %3388 = vmatmul.mubr.bf16.gmra.mxu0 %v3294
        %v3389 = vpop.f32.mrf.mxu0
        %v3390 = vadd.f32 0.0, %v3389
        %v3391 = vpop.f32.mrf.mxu0
        %v3392 = vpop.f32.mrf.mxu0
        %v3393 = vadd.f32 0.0, %v3392
        %v3394 = vpop.f32.mrf.mxu0
        %3395 = vdwg.mxu0
        %v3396 = vadd.f32 %v2888, %v3334
        %v3397 = vadd.f32 %v2889, %v3337
        %v3398 = vadd.f32 %v2890, %v3342
        %v3399 = vadd.f32 %v2891, %v3345
        %v3400 = vadd.f32 %v2892, %v3350
        %v3401 = vadd.f32 %v2893, %v3353
        %v3402 = vadd.f32 %v2894, %v3358
        %v3403 = vadd.f32 %v2895, %v3361
        %v3404 = vadd.f32 %v2896, %v3366
        %v3405 = vadd.f32 %v2897, %v3369
        %v3406 = vadd.f32 %v2898, %v3374
        %v3407 = vadd.f32 %v2899, %v3377
        %v3408 = vadd.f32 %v2900, %v3382
        %v3409 = vadd.f32 %v2901, %v3385
        %v3410 = vadd.f32 %v2902, %v3390
        %v3411 = vadd.f32 %v2903, %v3393
        %s3412 = scalar_lea.vmem %s3, 10
        %v3413 = vld [vmem:[%s3412] sm:$0x3]
        %v3414 = vunpack.c.l.b16 %v3193
        %v3415 = vunpack.c.l.b16 %v3196
        %v3416 = vunpack.c.l.b16 %v3200
        %v3417 = vunpack.c.l.b16 %v3203
        %v3418 = vunpack.c.l.b16 %v3207
        %v3419 = vunpack.c.l.b16 %v3210
        %v3420 = vunpack.c.l.b16 %v3214
        %v3421 = vunpack.c.l.b16 %v3217
        %v3422 = vunpack.c.l.b16 %v3221
        %v3423 = vunpack.c.l.b16 %v3224
        %v3424 = vunpack.c.l.b16 %v3228
        %v3425 = vunpack.c.l.b16 %v3231
        %v3426 = vunpack.c.l.b16 %v3235
        %v3427 = vunpack.c.l.b16 %v3238
        %v3428 = vunpack.c.l.b16 %v3242
        %v3429 = vunpack.c.l.b16 %v3245
        %v3430 = vpack.c.b16 %v3415, %v3414
        %v3431 = vpack.c.b16 %v3417, %v3416
        %v3432 = vpack.c.b16 %v3419, %v3418
        %v3433 = vpack.c.b16 %v3421, %v3420
        %v3434 = vpack.c.b16 %v3423, %v3422
        %v3435 = vpack.c.b16 %v3425, %v3424
        %v3436 = vpack.c.b16 %v3427, %v3426
        %v3437 = vpack.c.b16 %v3429, %v3428
        %v3439 = vsel %vm805, %v3430, 0
        %v3442 = vsel %vm805, %v3431, 0
        %v3445 = vsel %vm805, %v3432, 0
        %v3448 = vsel %vm805, %v3433, 0
        %v3451 = vsel %vm805, %v3434, 0
        %v3454 = vsel %vm805, %v3435, 0
        %v3457 = vsel %vm805, %v3436, 0
        %v3460 = vsel %vm805, %v3437, 0
        %v3463 = vsel %vm830, %v3413, 0
        %3465 = vmatprep.subr.bf16.mxu0 0
        %3466 = vmatpush1.bf16.msra.mxu0 0
        %3467 = vmatprep.subr.bf16.mxu0 0
        %3468 = vmatpush1.bf16.msra.mxu0 0
        %3469 = vmatprep.subr.bf16.mxu0 0
        %3470 = vmatpush1.bf16.msra.mxu0 0
        %3471 = vmatprep.subr.bf16.mxu0 0
        %3472 = vmatpush1.bf16.msra.mxu0 0
        %3473 = vmatprep.subr.bf16.mxu0 0
        %3474 = vmatpush1.bf16.msra.mxu0 0
        %3475 = vmatprep.subr.bf16.mxu0 0
        %3476 = vmatpush1.bf16.msra.mxu0 0
        %3477 = vmatprep.subr.bf16.mxu0 0
        %3478 = vmatpush1.bf16.msra.mxu0 0
        %3479 = vmatprep.subr.bf16.mxu0 0
        %3480 = vmatpush1.bf16.msra.mxu0 %v3463
        %3481 = vmatprep.subr.bf16.mxu0 0
        %3482 = vmatpush2.bf16.msra.mxu0 0
        %3483 = vmatprep.subr.bf16.mxu0 0
        %3484 = vmatpush2.bf16.msra.mxu0 0
        %3485 = vmatprep.subr.bf16.mxu0 0
        %3486 = vmatpush2.bf16.msra.mxu0 0
        %3487 = vmatprep.subr.bf16.mxu0 0
        %3488 = vmatpush2.bf16.msra.mxu0 0
        %3489 = vmatprep.subr.bf16.mxu0 0
        %3490 = vmatpush2.bf16.msra.mxu0 0
        %3491 = vmatprep.subr.bf16.mxu0 0
        %3492 = vmatpush2.bf16.msra.mxu0 0
        %3493 = vmatprep.subr.bf16.mxu0 0
        %3494 = vmatpush2.bf16.msra.mxu0 0
        %3495 = vmatprep.subr.bf16.mxu0 0
        %3496 = vmatpush2.bf16.msra.mxu0 0
        %3497 = vmatprep.mubr.bf16.mxu0 0
        %3498 = vmatmul.mubr.bf16.gmra.mxu0 %v3439
        %v3499 = vpop.f32.mrf.mxu0
        %v3500 = vadd.f32 0.0, %v3499
        %v3501 = vpop.f32.mrf.mxu0
        %v3502 = vpop.f32.mrf.mxu0
        %v3503 = vadd.f32 0.0, %v3502
        %v3504 = vpop.f32.mrf.mxu0
        %3505 = vmatprep.mubr.bf16.mxu0 0
        %3506 = vmatmul.mubr.bf16.gmra.mxu0 %v3442
        %v3507 = vpop.f32.mrf.mxu0
        %v3508 = vadd.f32 0.0, %v3507
        %v3509 = vpop.f32.mrf.mxu0
        %v3510 = vpop.f32.mrf.mxu0
        %v3511 = vadd.f32 0.0, %v3510
        %v3512 = vpop.f32.mrf.mxu0
        %3513 = vmatprep.mubr.bf16.mxu0 0
        %3514 = vmatmul.mubr.bf16.gmra.mxu0 %v3445
        %v3515 = vpop.f32.mrf.mxu0
        %v3516 = vadd.f32 0.0, %v3515
        %v3517 = vpop.f32.mrf.mxu0
        %v3518 = vpop.f32.mrf.mxu0
        %v3519 = vadd.f32 0.0, %v3518
        %v3520 = vpop.f32.mrf.mxu0
        %3521 = vmatprep.mubr.bf16.mxu0 0
        %3522 = vmatmul.mubr.bf16.gmra.mxu0 %v3448
        %v3523 = vpop.f32.mrf.mxu0
        %v3524 = vadd.f32 0.0, %v3523
        %v3525 = vpop.f32.mrf.mxu0
        %v3526 = vpop.f32.mrf.mxu0
        %v3527 = vadd.f32 0.0, %v3526
        %v3528 = vpop.f32.mrf.mxu0
        %3529 = vmatprep.mubr.bf16.mxu0 0
        %3530 = vmatmul.mubr.bf16.gmra.mxu0 %v3451
        %v3531 = vpop.f32.mrf.mxu0
        %v3532 = vadd.f32 0.0, %v3531
        %v3533 = vpop.f32.mrf.mxu0
        %v3534 = vpop.f32.mrf.mxu0
        %v3535 = vadd.f32 0.0, %v3534
        %v3536 = vpop.f32.mrf.mxu0
        %3537 = vmatprep.mubr.bf16.mxu0 0
        %3538 = vmatmul.mubr.bf16.gmra.mxu0 %v3454
        %v3539 = vpop.f32.mrf.mxu0
        %v3540 = vadd.f32 0.0, %v3539
        %v3541 = vpop.f32.mrf.mxu0
        %v3542 = vpop.f32.mrf.mxu0
        %v3543 = vadd.f32 0.0, %v3542
        %v3544 = vpop.f32.mrf.mxu0
        %3545 = vmatprep.mubr.bf16.mxu0 0
        %3546 = vmatmul.mubr.bf16.gmra.mxu0 %v3457
        %v3547 = vpop.f32.mrf.mxu0
        %v3548 = vadd.f32 0.0, %v3547
        %v3549 = vpop.f32.mrf.mxu0
        %v3550 = vpop.f32.mrf.mxu0
        %v3551 = vadd.f32 0.0, %v3550
        %v3552 = vpop.f32.mrf.mxu0
        %3553 = vmatprep.mubr.bf16.mxu0 0
        %3554 = vmatmul.mubr.bf16.gmra.mxu0 %v3460
        %v3555 = vpop.f32.mrf.mxu0
        %v3556 = vadd.f32 0.0, %v3555
        %v3557 = vpop.f32.mrf.mxu0
        %v3558 = vpop.f32.mrf.mxu0
        %v3559 = vadd.f32 0.0, %v3558
        %v3560 = vpop.f32.mrf.mxu0
        %3561 = vdwg.mxu0
        %v3562 = vadd.f32 %v3054, %v3500
        %v3563 = vadd.f32 %v3055, %v3503
        %v3564 = vadd.f32 %v3056, %v3508
        %v3565 = vadd.f32 %v3057, %v3511
        %v3566 = vadd.f32 %v3058, %v3516
        %v3567 = vadd.f32 %v3059, %v3519
        %v3568 = vadd.f32 %v3060, %v3524
        %v3569 = vadd.f32 %v3061, %v3527
        %v3570 = vadd.f32 %v3062, %v3532
        %v3571 = vadd.f32 %v3063, %v3535
        %v3572 = vadd.f32 %v3064, %v3540
        %v3573 = vadd.f32 %v3065, %v3543
        %v3574 = vadd.f32 %v3066, %v3548
        %v3575 = vadd.f32 %v3067, %v3551
        %v3576 = vadd.f32 %v3068, %v3556
        %v3577 = vadd.f32 %v3069, %v3559
        %s3578 = sadd.s32 %s336, 2
        %s3579 = smul.u32 %s3578, 3
        %s3580 = smul.addr %s3579, 4
        %s3581 = scalar_lea.vmem %s327, %s3580
        %v3582 = vld [vmem:[%s3581] sm:$0xf]
        %v3583 = vld [vmem:[%s3581 + $0x4] sm:$0xf]
        %v3584 = vld [vmem:[%s3581 + $0xc] sm:$0xf]
        %v3585 = vld [vmem:[%s3581 + $0x10] sm:$0xf]
        %v3586 = vld [vmem:[%s3581 + $0x18] sm:$0xf]
        %v3587 = vld [vmem:[%s3581 + $0x1c] sm:$0xf]
        %v3588 = vld [vmem:[%s3581 + $0x24] sm:$0xf]
        %v3589 = vld [vmem:[%s3581 + $0x28] sm:$0xf]
        %v3590 = vld [vmem:[%s3581 + $0x30] sm:$0xf]
        %v3591 = vld [vmem:[%s3581 + $0x34] sm:$0xf]
        %v3592 = vld [vmem:[%s3581 + $0x3c] sm:$0xf]
        %v3593 = vld [vmem:[%s3581 + $0x40] sm:$0xf]
        %v3594 = vld [vmem:[%s3581 + $0x48] sm:$0xf]
        %v3595 = vld [vmem:[%s3581 + $0x4c] sm:$0xf]
        %v3596 = vld [vmem:[%s3581 + $0x54] sm:$0xf]
        %v3597 = vld [vmem:[%s3581 + $0x58] sm:$0xf]
        %s3598 = smul.addr %s3579, 4
        %s3599 = scalar_lea.vmem %s332, %s3598
        %v3600 = vld [vmem:[%s3599] sm:$0xf]
        %v3601 = vld [vmem:[%s3599 + $0x4] sm:$0xf]
        %v3602 = vld [vmem:[%s3599 + $0xc] sm:$0xf]
        %v3603 = vld [vmem:[%s3599 + $0x10] sm:$0xf]
        %v3604 = vld [vmem:[%s3599 + $0x18] sm:$0xf]
        %v3605 = vld [vmem:[%s3599 + $0x1c] sm:$0xf]
        %v3606 = vld [vmem:[%s3599 + $0x24] sm:$0xf]
        %v3607 = vld [vmem:[%s3599 + $0x28] sm:$0xf]
        %v3608 = vld [vmem:[%s3599 + $0x30] sm:$0xf]
        %v3609 = vld [vmem:[%s3599 + $0x34] sm:$0xf]
        %v3610 = vld [vmem:[%s3599 + $0x3c] sm:$0xf]
        %v3611 = vld [vmem:[%s3599 + $0x40] sm:$0xf]
        %v3612 = vld [vmem:[%s3599 + $0x48] sm:$0xf]
        %v3613 = vld [vmem:[%s3599 + $0x4c] sm:$0xf]
        %v3614 = vld [vmem:[%s3599 + $0x54] sm:$0xf]
        %v3615 = vld [vmem:[%s3599 + $0x58] sm:$0xf]
        %s3616 = scalar_lea.vmem %s2, 12
        %v3617 = vld [vmem:[%s3616] sm:$0x3]
        %v3634 = vunpack.c.l.b16 %v3582
        %v3635 = vunpack.c.l.b16 %v3583
        %v3636 = vunpack.c.l.b16 %v3584
        %v3637 = vunpack.c.l.b16 %v3585
        %v3638 = vunpack.c.l.b16 %v3586
        %v3639 = vunpack.c.l.b16 %v3587
        %v3640 = vunpack.c.l.b16 %v3588
        %v3641 = vunpack.c.l.b16 %v3589
        %v3642 = vunpack.c.l.b16 %v3590
        %v3643 = vunpack.c.l.b16 %v3591
        %v3644 = vunpack.c.l.b16 %v3592
        %v3645 = vunpack.c.l.b16 %v3593
        %v3646 = vunpack.c.l.b16 %v3594
        %v3647 = vunpack.c.l.b16 %v3595
        %v3648 = vunpack.c.l.b16 %v3596
        %v3649 = vunpack.c.l.b16 %v3597
        %v3650 = vpack.c.b16 %v3635, %v3634
        %v3651 = vpack.c.b16 %v3637, %v3636
        %v3652 = vpack.c.b16 %v3639, %v3638
        %v3653 = vpack.c.b16 %v3641, %v3640
        %v3654 = vpack.c.b16 %v3643, %v3642
        %v3655 = vpack.c.b16 %v3645, %v3644
        %v3656 = vpack.c.b16 %v3647, %v3646
        %v3657 = vpack.c.b16 %v3649, %v3648
        %v3659 = vsel %vm805, %v3650, 0
        %v3662 = vsel %vm805, %v3651, 0
        %v3665 = vsel %vm805, %v3652, 0
        %v3668 = vsel %vm805, %v3653, 0
        %v3671 = vsel %vm805, %v3654, 0
        %v3674 = vsel %vm805, %v3655, 0
        %v3677 = vsel %vm805, %v3656, 0
        %v3680 = vsel %vm805, %v3657, 0
        %v3683 = vsel %vm830, %v3617, 0
        %3685 = vmatprep.subr.bf16.mxu0 0
        %3686 = vmatpush1.bf16.msra.mxu0 0
        %3687 = vmatprep.subr.bf16.mxu0 0
        %3688 = vmatpush1.bf16.msra.mxu0 0
        %3689 = vmatprep.subr.bf16.mxu0 0
        %3690 = vmatpush1.bf16.msra.mxu0 0
        %3691 = vmatprep.subr.bf16.mxu0 0
        %3692 = vmatpush1.bf16.msra.mxu0 0
        %3693 = vmatprep.subr.bf16.mxu0 0
        %3694 = vmatpush1.bf16.msra.mxu0 0
        %3695 = vmatprep.subr.bf16.mxu0 0
        %3696 = vmatpush1.bf16.msra.mxu0 0
        %3697 = vmatprep.subr.bf16.mxu0 0
        %3698 = vmatpush1.bf16.msra.mxu0 0
        %3699 = vmatprep.subr.bf16.mxu0 0
        %3700 = vmatpush1.bf16.msra.mxu0 %v3683
        %3701 = vmatprep.subr.bf16.mxu0 0
        %3702 = vmatpush2.bf16.msra.mxu0 0
        %3703 = vmatprep.subr.bf16.mxu0 0
        %3704 = vmatpush2.bf16.msra.mxu0 0
        %3705 = vmatprep.subr.bf16.mxu0 0
        %3706 = vmatpush2.bf16.msra.mxu0 0
        %3707 = vmatprep.subr.bf16.mxu0 0
        %3708 = vmatpush2.bf16.msra.mxu0 0
        %3709 = vmatprep.subr.bf16.mxu0 0
        %3710 = vmatpush2.bf16.msra.mxu0 0
        %3711 = vmatprep.subr.bf16.mxu0 0
        %3712 = vmatpush2.bf16.msra.mxu0 0
        %3713 = vmatprep.subr.bf16.mxu0 0
        %3714 = vmatpush2.bf16.msra.mxu0 0
        %3715 = vmatprep.subr.bf16.mxu0 0
        %3716 = vmatpush2.bf16.msra.mxu0 0
        %3717 = vmatprep.mubr.bf16.mxu0 0
        %3718 = vmatmul.mubr.bf16.gmra.mxu0 %v3659
        %v3719 = vpop.f32.mrf.mxu0
        %v3720 = vadd.f32 0.0, %v3719
        %v3721 = vpop.f32.mrf.mxu0
        %v3722 = vpop.f32.mrf.mxu0
        %v3723 = vadd.f32 0.0, %v3722
        %v3724 = vpop.f32.mrf.mxu0
        %3725 = vmatprep.mubr.bf16.mxu0 0
        %3726 = vmatmul.mubr.bf16.gmra.mxu0 %v3662
        %v3727 = vpop.f32.mrf.mxu0
        %v3728 = vadd.f32 0.0, %v3727
        %v3729 = vpop.f32.mrf.mxu0
        %v3730 = vpop.f32.mrf.mxu0
        %v3731 = vadd.f32 0.0, %v3730
        %v3732 = vpop.f32.mrf.mxu0
        %3733 = vmatprep.mubr.bf16.mxu0 0
        %3734 = vmatmul.mubr.bf16.gmra.mxu0 %v3665
        %v3735 = vpop.f32.mrf.mxu0
        %v3736 = vadd.f32 0.0, %v3735
        %v3737 = vpop.f32.mrf.mxu0
        %v3738 = vpop.f32.mrf.mxu0
        %v3739 = vadd.f32 0.0, %v3738
        %v3740 = vpop.f32.mrf.mxu0
        %3741 = vmatprep.mubr.bf16.mxu0 0
        %3742 = vmatmul.mubr.bf16.gmra.mxu0 %v3668
        %v3743 = vpop.f32.mrf.mxu0
        %v3744 = vadd.f32 0.0, %v3743
        %v3745 = vpop.f32.mrf.mxu0
        %v3746 = vpop.f32.mrf.mxu0
        %v3747 = vadd.f32 0.0, %v3746
        %v3748 = vpop.f32.mrf.mxu0
        %3749 = vmatprep.mubr.bf16.mxu0 0
        %3750 = vmatmul.mubr.bf16.gmra.mxu0 %v3671
        %v3751 = vpop.f32.mrf.mxu0
        %v3752 = vadd.f32 0.0, %v3751
        %v3753 = vpop.f32.mrf.mxu0
        %v3754 = vpop.f32.mrf.mxu0
        %v3755 = vadd.f32 0.0, %v3754
        %v3756 = vpop.f32.mrf.mxu0
        %3757 = vmatprep.mubr.bf16.mxu0 0
        %3758 = vmatmul.mubr.bf16.gmra.mxu0 %v3674
        %v3759 = vpop.f32.mrf.mxu0
        %v3760 = vadd.f32 0.0, %v3759
        %v3761 = vpop.f32.mrf.mxu0
        %v3762 = vpop.f32.mrf.mxu0
        %v3763 = vadd.f32 0.0, %v3762
        %v3764 = vpop.f32.mrf.mxu0
        %3765 = vmatprep.mubr.bf16.mxu0 0
        %3766 = vmatmul.mubr.bf16.gmra.mxu0 %v3677
        %v3767 = vpop.f32.mrf.mxu0
        %v3768 = vadd.f32 0.0, %v3767
        %v3769 = vpop.f32.mrf.mxu0
        %v3770 = vpop.f32.mrf.mxu0
        %v3771 = vadd.f32 0.0, %v3770
        %v3772 = vpop.f32.mrf.mxu0
        %3773 = vmatprep.mubr.bf16.mxu0 0
        %3774 = vmatmul.mubr.bf16.gmra.mxu0 %v3680
        %v3775 = vpop.f32.mrf.mxu0
        %v3776 = vadd.f32 0.0, %v3775
        %v3777 = vpop.f32.mrf.mxu0
        %v3778 = vpop.f32.mrf.mxu0
        %v3779 = vadd.f32 0.0, %v3778
        %v3780 = vpop.f32.mrf.mxu0
        %3781 = vdwg.mxu0
        %v3782 = vadd.f32 %v3396, %v3720
        %v3783 = vadd.f32 %v3397, %v3723
        %v3784 = vadd.f32 %v3398, %v3728
        %v3785 = vadd.f32 %v3399, %v3731
        %v3786 = vadd.f32 %v3400, %v3736
        %v3787 = vadd.f32 %v3401, %v3739
        %v3788 = vadd.f32 %v3402, %v3744
        %v3789 = vadd.f32 %v3403, %v3747
        %v3790 = vadd.f32 %v3404, %v3752
        %v3791 = vadd.f32 %v3405, %v3755
        %v3792 = vadd.f32 %v3406, %v3760
        %v3793 = vadd.f32 %v3407, %v3763
        %v3794 = vadd.f32 %v3408, %v3768
        %v3795 = vadd.f32 %v3409, %v3771
        %v3796 = vadd.f32 %v3410, %v3776
        %v3797 = vadd.f32 %v3411, %v3779
        %s3798 = scalar_lea.vmem %s3, 12
        %v3799 = vld [vmem:[%s3798] sm:$0x3]
        %v3816 = vunpack.c.l.b16 %v3600
        %v3817 = vunpack.c.l.b16 %v3601
        %v3818 = vunpack.c.l.b16 %v3602
        %v3819 = vunpack.c.l.b16 %v3603
        %v3820 = vunpack.c.l.b16 %v3604
        %v3821 = vunpack.c.l.b16 %v3605
        %v3822 = vunpack.c.l.b16 %v3606
        %v3823 = vunpack.c.l.b16 %v3607
        %v3824 = vunpack.c.l.b16 %v3608
        %v3825 = vunpack.c.l.b16 %v3609
        %v3826 = vunpack.c.l.b16 %v3610
        %v3827 = vunpack.c.l.b16 %v3611
        %v3828 = vunpack.c.l.b16 %v3612
        %v3829 = vunpack.c.l.b16 %v3613
        %v3830 = vunpack.c.l.b16 %v3614
        %v3831 = vunpack.c.l.b16 %v3615
        %v3832 = vpack.c.b16 %v3817, %v3816
        %v3833 = vpack.c.b16 %v3819, %v3818
        %v3834 = vpack.c.b16 %v3821, %v3820
        %v3835 = vpack.c.b16 %v3823, %v3822
        %v3836 = vpack.c.b16 %v3825, %v3824
        %v3837 = vpack.c.b16 %v3827, %v3826
        %v3838 = vpack.c.b16 %v3829, %v3828
        %v3839 = vpack.c.b16 %v3831, %v3830
        %v3841 = vsel %vm805, %v3832, 0
        %v3844 = vsel %vm805, %v3833, 0
        %v3847 = vsel %vm805, %v3834, 0
        %v3850 = vsel %vm805, %v3835, 0
        %v3853 = vsel %vm805, %v3836, 0
        %v3856 = vsel %vm805, %v3837, 0
        %v3859 = vsel %vm805, %v3838, 0
        %v3862 = vsel %vm805, %v3839, 0
        %v3865 = vsel %vm830, %v3799, 0
        %3867 = vmatprep.subr.bf16.mxu0 0
        %3868 = vmatpush1.bf16.msra.mxu0 0
        %3869 = vmatprep.subr.bf16.mxu0 0
        %3870 = vmatpush1.bf16.msra.mxu0 0
        %3871 = vmatprep.subr.bf16.mxu0 0
        %3872 = vmatpush1.bf16.msra.mxu0 0
        %3873 = vmatprep.subr.bf16.mxu0 0
        %3874 = vmatpush1.bf16.msra.mxu0 0
        %3875 = vmatprep.subr.bf16.mxu0 0
        %3876 = vmatpush1.bf16.msra.mxu0 0
        %3877 = vmatprep.subr.bf16.mxu0 0
        %3878 = vmatpush1.bf16.msra.mxu0 0
        %3879 = vmatprep.subr.bf16.mxu0 0
        %3880 = vmatpush1.bf16.msra.mxu0 0
        %3881 = vmatprep.subr.bf16.mxu0 0
        %3882 = vmatpush1.bf16.msra.mxu0 %v3865
        %3883 = vmatprep.subr.bf16.mxu0 0
        %3884 = vmatpush2.bf16.msra.mxu0 0
        %3885 = vmatprep.subr.bf16.mxu0 0
        %3886 = vmatpush2.bf16.msra.mxu0 0
        %3887 = vmatprep.subr.bf16.mxu0 0
        %3888 = vmatpush2.bf16.msra.mxu0 0
        %3889 = vmatprep.subr.bf16.mxu0 0
        %3890 = vmatpush2.bf16.msra.mxu0 0
        %3891 = vmatprep.subr.bf16.mxu0 0
        %3892 = vmatpush2.bf16.msra.mxu0 0
        %3893 = vmatprep.subr.bf16.mxu0 0
        %3894 = vmatpush2.bf16.msra.mxu0 0
        %3895 = vmatprep.subr.bf16.mxu0 0
        %3896 = vmatpush2.bf16.msra.mxu0 0
        %3897 = vmatprep.subr.bf16.mxu0 0
        %3898 = vmatpush2.bf16.msra.mxu0 0
        %3899 = vmatprep.mubr.bf16.mxu0 0
        %3900 = vmatmul.mubr.bf16.gmra.mxu0 %v3841
        %v3901 = vpop.f32.mrf.mxu0
        %v3902 = vadd.f32 0.0, %v3901
        %v3903 = vpop.f32.mrf.mxu0
        %v3904 = vpop.f32.mrf.mxu0
        %v3905 = vadd.f32 0.0, %v3904
        %v3906 = vpop.f32.mrf.mxu0
        %3907 = vmatprep.mubr.bf16.mxu0 0
        %3908 = vmatmul.mubr.bf16.gmra.mxu0 %v3844
        %v3909 = vpop.f32.mrf.mxu0
        %v3910 = vadd.f32 0.0, %v3909
        %v3911 = vpop.f32.mrf.mxu0
        %v3912 = vpop.f32.mrf.mxu0
        %v3913 = vadd.f32 0.0, %v3912
        %v3914 = vpop.f32.mrf.mxu0
        %3915 = vmatprep.mubr.bf16.mxu0 0
        %3916 = vmatmul.mubr.bf16.gmra.mxu0 %v3847
        %v3917 = vpop.f32.mrf.mxu0
        %v3918 = vadd.f32 0.0, %v3917
        %v3919 = vpop.f32.mrf.mxu0
        %v3920 = vpop.f32.mrf.mxu0
        %v3921 = vadd.f32 0.0, %v3920
        %v3922 = vpop.f32.mrf.mxu0
        %3923 = vmatprep.mubr.bf16.mxu0 0
        %3924 = vmatmul.mubr.bf16.gmra.mxu0 %v3850
        %v3925 = vpop.f32.mrf.mxu0
        %v3926 = vadd.f32 0.0, %v3925
        %v3927 = vpop.f32.mrf.mxu0
        %v3928 = vpop.f32.mrf.mxu0
        %v3929 = vadd.f32 0.0, %v3928
        %v3930 = vpop.f32.mrf.mxu0
        %3931 = vmatprep.mubr.bf16.mxu0 0
        %3932 = vmatmul.mubr.bf16.gmra.mxu0 %v3853
        %v3933 = vpop.f32.mrf.mxu0
        %v3934 = vadd.f32 0.0, %v3933
        %v3935 = vpop.f32.mrf.mxu0
        %v3936 = vpop.f32.mrf.mxu0
        %v3937 = vadd.f32 0.0, %v3936
        %v3938 = vpop.f32.mrf.mxu0
        %3939 = vmatprep.mubr.bf16.mxu0 0
        %3940 = vmatmul.mubr.bf16.gmra.mxu0 %v3856
        %v3941 = vpop.f32.mrf.mxu0
        %v3942 = vadd.f32 0.0, %v3941
        %v3943 = vpop.f32.mrf.mxu0
        %v3944 = vpop.f32.mrf.mxu0
        %v3945 = vadd.f32 0.0, %v3944
        %v3946 = vpop.f32.mrf.mxu0
        %3947 = vmatprep.mubr.bf16.mxu0 0
        %3948 = vmatmul.mubr.bf16.gmra.mxu0 %v3859
        %v3949 = vpop.f32.mrf.mxu0
        %v3950 = vadd.f32 0.0, %v3949
        %v3951 = vpop.f32.mrf.mxu0
        %v3952 = vpop.f32.mrf.mxu0
        %v3953 = vadd.f32 0.0, %v3952
        %v3954 = vpop.f32.mrf.mxu0
        %3955 = vmatprep.mubr.bf16.mxu0 0
        %3956 = vmatmul.mubr.bf16.gmra.mxu0 %v3862
        %v3957 = vpop.f32.mrf.mxu0
        %v3958 = vadd.f32 0.0, %v3957
        %v3959 = vpop.f32.mrf.mxu0
        %v3960 = vpop.f32.mrf.mxu0
        %v3961 = vadd.f32 0.0, %v3960
        %v3962 = vpop.f32.mrf.mxu0
        %3963 = vdwg.mxu0
        %v3964 = vadd.f32 %v3562, %v3902
        %v3965 = vadd.f32 %v3563, %v3905
        %v3966 = vadd.f32 %v3564, %v3910
        %v3967 = vadd.f32 %v3565, %v3913
        %v3968 = vadd.f32 %v3566, %v3918
        %v3969 = vadd.f32 %v3567, %v3921
        %v3970 = vadd.f32 %v3568, %v3926
        %v3971 = vadd.f32 %v3569, %v3929
        %v3972 = vadd.f32 %v3570, %v3934
        %v3973 = vadd.f32 %v3571, %v3937
        %v3974 = vadd.f32 %v3572, %v3942
        %v3975 = vadd.f32 %v3573, %v3945
        %v3976 = vadd.f32 %v3574, %v3950
        %v3977 = vadd.f32 %v3575, %v3953
        %v3978 = vadd.f32 %v3576, %v3958
        %v3979 = vadd.f32 %v3577, %v3961
        %v3980 = vld [vmem:[%s3581] sm:$0xf]
        %v3981 = vld [vmem:[%s3581 + $0x4] sm:$0xf]
        %v3982 = vld [vmem:[%s3581 + $0x8] sm:$0x1]
        %v3983 = vld [vmem:[%s3581 + $0xc] sm:$0xf]
        %v3984 = vld [vmem:[%s3581 + $0x10] sm:$0xf]
        %v3985 = vld [vmem:[%s3581 + $0x14] sm:$0x1]
        %v3986 = vld [vmem:[%s3581 + $0x18] sm:$0xf]
        %v3987 = vld [vmem:[%s3581 + $0x1c] sm:$0xf]
        %v3988 = vld [vmem:[%s3581 + $0x20] sm:$0x1]
        %v3989 = vld [vmem:[%s3581 + $0x24] sm:$0xf]
        %v3990 = vld [vmem:[%s3581 + $0x28] sm:$0xf]
        %v3991 = vld [vmem:[%s3581 + $0x2c] sm:$0x1]
        %v3992 = vld [vmem:[%s3581 + $0x30] sm:$0xf]
        %v3993 = vld [vmem:[%s3581 + $0x34] sm:$0xf]
        %v3994 = vld [vmem:[%s3581 + $0x38] sm:$0x1]
        %v3995 = vld [vmem:[%s3581 + $0x3c] sm:$0xf]
        %v3996 = vld [vmem:[%s3581 + $0x40] sm:$0xf]
        %v3997 = vld [vmem:[%s3581 + $0x44] sm:$0x1]
        %v3998 = vld [vmem:[%s3581 + $0x48] sm:$0xf]
        %v3999 = vld [vmem:[%s3581 + $0x4c] sm:$0xf]
        %v4000 = vld [vmem:[%s3581 + $0x50] sm:$0x1]
        %v4001 = vld [vmem:[%s3581 + $0x54] sm:$0xf]
        %v4002 = vld [vmem:[%s3581 + $0x58] sm:$0xf]
        %v4003 = vld [vmem:[%s3581 + $0x5c] sm:$0x1]
        %v4004 = vld [vmem:[%s3599] sm:$0xf]
        %v4005 = vld [vmem:[%s3599 + $0x4] sm:$0xf]
        %v4006 = vld [vmem:[%s3599 + $0x8] sm:$0x1]
        %v4007 = vld [vmem:[%s3599 + $0xc] sm:$0xf]
        %v4008 = vld [vmem:[%s3599 + $0x10] sm:$0xf]
        %v4009 = vld [vmem:[%s3599 + $0x14] sm:$0x1]
        %v4010 = vld [vmem:[%s3599 + $0x18] sm:$0xf]
        %v4011 = vld [vmem:[%s3599 + $0x1c] sm:$0xf]
        %v4012 = vld [vmem:[%s3599 + $0x20] sm:$0x1]
        %v4013 = vld [vmem:[%s3599 + $0x24] sm:$0xf]
        %v4014 = vld [vmem:[%s3599 + $0x28] sm:$0xf]
        %v4015 = vld [vmem:[%s3599 + $0x2c] sm:$0x1]
        %v4016 = vld [vmem:[%s3599 + $0x30] sm:$0xf]
        %v4017 = vld [vmem:[%s3599 + $0x34] sm:$0xf]
        %v4018 = vld [vmem:[%s3599 + $0x38] sm:$0x1]
        %v4019 = vld [vmem:[%s3599 + $0x3c] sm:$0xf]
        %v4020 = vld [vmem:[%s3599 + $0x40] sm:$0xf]
        %v4021 = vld [vmem:[%s3599 + $0x44] sm:$0x1]
        %v4022 = vld [vmem:[%s3599 + $0x48] sm:$0xf]
        %v4023 = vld [vmem:[%s3599 + $0x4c] sm:$0xf]
        %v4024 = vld [vmem:[%s3599 + $0x50] sm:$0x1]
        %v4025 = vld [vmem:[%s3599 + $0x54] sm:$0xf]
        %v4026 = vld [vmem:[%s3599 + $0x58] sm:$0xf]
        %v4027 = vld [vmem:[%s3599 + $0x5c] sm:$0x1]
        %v4029 = vshrl.u32 %v3980, 16
        %v4031 = vrot.slane %v4029, 4
        %v4032 = vshll.u32 %v3980, 16
        %v4034 = vrot.slane %v4032, 5
        %v4035 = vor.u32 %v4031, %v4034
        %v4036 = vrot.slane %v4035, 4
        %v4038 = vshll.u32 %v3981, 16
        %v4040 = vrot.slane %v4038, 5
        %v4041 = vsel %vm394, %v4036, %v4040
        %v4042 = vshrl.u32 %v3981, 16
        %v4044 = vrot.slane %v4042, 4
        %v4045 = vor.u32 %v4044, %v4040
        %v4046 = vrot.slane %v4045, 4
        %v4048 = vshll.u32 %v3982, 16
        %v4050 = vrot.slane %v4048, 5
        %v4051 = vsel %vm394, %v4046, %v4050
        %v4053 = vshrl.u32 %v3983, 16
        %v4055 = vrot.slane %v4053, 4
        %v4056 = vshll.u32 %v3983, 16
        %v4058 = vrot.slane %v4056, 5
        %v4059 = vor.u32 %v4055, %v4058
        %v4060 = vrot.slane %v4059, 4
        %v4062 = vshll.u32 %v3984, 16
        %v4064 = vrot.slane %v4062, 5
        %v4065 = vsel %vm394, %v4060, %v4064
        %v4066 = vshrl.u32 %v3984, 16
        %v4068 = vrot.slane %v4066, 4
        %v4069 = vor.u32 %v4068, %v4064
        %v4070 = vrot.slane %v4069, 4
        %v4072 = vshll.u32 %v3985, 16
        %v4074 = vrot.slane %v4072, 5
        %v4075 = vsel %vm394, %v4070, %v4074
        %v4077 = vshrl.u32 %v3986, 16
        %v4079 = vrot.slane %v4077, 4
        %v4080 = vshll.u32 %v3986, 16
        %v4082 = vrot.slane %v4080, 5
        %v4083 = vor.u32 %v4079, %v4082
        %v4084 = vrot.slane %v4083, 4
        %v4086 = vshll.u32 %v3987, 16
        %v4088 = vrot.slane %v4086, 5
        %v4089 = vsel %vm394, %v4084, %v4088
        %v4090 = vshrl.u32 %v3987, 16
        %v4092 = vrot.slane %v4090, 4
        %v4093 = vor.u32 %v4092, %v4088
        %v4094 = vrot.slane %v4093, 4
        %v4096 = vshll.u32 %v3988, 16
        %v4098 = vrot.slane %v4096, 5
        %v4099 = vsel %vm394, %v4094, %v4098
        %v4101 = vshrl.u32 %v3989, 16
        %v4103 = vrot.slane %v4101, 4
        %v4104 = vshll.u32 %v3989, 16
        %v4106 = vrot.slane %v4104, 5
        %v4107 = vor.u32 %v4103, %v4106
        %v4108 = vrot.slane %v4107, 4
        %v4110 = vshll.u32 %v3990, 16
        %v4112 = vrot.slane %v4110, 5
        %v4113 = vsel %vm394, %v4108, %v4112
        %v4114 = vshrl.u32 %v3990, 16
        %v4116 = vrot.slane %v4114, 4
        %v4117 = vor.u32 %v4116, %v4112
        %v4118 = vrot.slane %v4117, 4
        %v4120 = vshll.u32 %v3991, 16
        %v4122 = vrot.slane %v4120, 5
        %v4123 = vsel %vm394, %v4118, %v4122
        %v4125 = vshrl.u32 %v3992, 16
        %v4127 = vrot.slane %v4125, 4
        %v4128 = vshll.u32 %v3992, 16
        %v4130 = vrot.slane %v4128, 5
        %v4131 = vor.u32 %v4127, %v4130
        %v4132 = vrot.slane %v4131, 4
        %v4134 = vshll.u32 %v3993, 16
        %v4136 = vrot.slane %v4134, 5
        %v4137 = vsel %vm394, %v4132, %v4136
        %v4138 = vshrl.u32 %v3993, 16
        %v4140 = vrot.slane %v4138, 4
        %v4141 = vor.u32 %v4140, %v4136
        %v4142 = vrot.slane %v4141, 4
        %v4144 = vshll.u32 %v3994, 16
        %v4146 = vrot.slane %v4144, 5
        %v4147 = vsel %vm394, %v4142, %v4146
        %v4149 = vshrl.u32 %v3995, 16
        %v4151 = vrot.slane %v4149, 4
        %v4152 = vshll.u32 %v3995, 16
        %v4154 = vrot.slane %v4152, 5
        %v4155 = vor.u32 %v4151, %v4154
        %v4156 = vrot.slane %v4155, 4
        %v4158 = vshll.u32 %v3996, 16
        %v4160 = vrot.slane %v4158, 5
        %v4161 = vsel %vm394, %v4156, %v4160
        %v4162 = vshrl.u32 %v3996, 16
        %v4164 = vrot.slane %v4162, 4
        %v4165 = vor.u32 %v4164, %v4160
        %v4166 = vrot.slane %v4165, 4
        %v4168 = vshll.u32 %v3997, 16
        %v4170 = vrot.slane %v4168, 5
        %v4171 = vsel %vm394, %v4166, %v4170
        %v4173 = vshrl.u32 %v3998, 16
        %v4175 = vrot.slane %v4173, 4
        %v4176 = vshll.u32 %v3998, 16
        %v4178 = vrot.slane %v4176, 5
        %v4179 = vor.u32 %v4175, %v4178
        %v4180 = vrot.slane %v4179, 4
        %v4182 = vshll.u32 %v3999, 16
        %v4184 = vrot.slane %v4182, 5
        %v4185 = vsel %vm394, %v4180, %v4184
        %v4186 = vshrl.u32 %v3999, 16
        %v4188 = vrot.slane %v4186, 4
        %v4189 = vor.u32 %v4188, %v4184
        %v4190 = vrot.slane %v4189, 4
        %v4192 = vshll.u32 %v4000, 16
        %v4194 = vrot.slane %v4192, 5
        %v4195 = vsel %vm394, %v4190, %v4194
        %v4197 = vshrl.u32 %v4001, 16
        %v4199 = vrot.slane %v4197, 4
        %v4200 = vshll.u32 %v4001, 16
        %v4202 = vrot.slane %v4200, 5
        %v4203 = vor.u32 %v4199, %v4202
        %v4204 = vrot.slane %v4203, 4
        %v4206 = vshll.u32 %v4002, 16
        %v4208 = vrot.slane %v4206, 5
        %v4209 = vsel %vm394, %v4204, %v4208
        %v4210 = vshrl.u32 %v4002, 16
        %v4212 = vrot.slane %v4210, 4
        %v4213 = vor.u32 %v4212, %v4208
        %v4214 = vrot.slane %v4213, 4
        %v4216 = vshll.u32 %v4003, 16
        %v4218 = vrot.slane %v4216, 5
        %v4219 = vsel %vm394, %v4214, %v4218
        %v4221 = vshrl.u32 %v4004, 16
        %v4223 = vrot.slane %v4221, 4
        %v4224 = vshll.u32 %v4004, 16
        %v4226 = vrot.slane %v4224, 5
        %v4227 = vor.u32 %v4223, %v4226
        %v4228 = vrot.slane %v4227, 4
        %v4230 = vshll.u32 %v4005, 16
        %v4232 = vrot.slane %v4230, 5
        %v4233 = vsel %vm394, %v4228, %v4232
        %v4234 = vshrl.u32 %v4005, 16
        %v4236 = vrot.slane %v4234, 4
        %v4237 = vor.u32 %v4236, %v4232
        %v4238 = vrot.slane %v4237, 4
        %v4240 = vshll.u32 %v4006, 16
        %v4242 = vrot.slane %v4240, 5
        %v4243 = vsel %vm394, %v4238, %v4242
        %v4245 = vshrl.u32 %v4007, 16
        %v4247 = vrot.slane %v4245, 4
        %v4248 = vshll.u32 %v4007, 16
        %v4250 = vrot.slane %v4248, 5
        %v4251 = vor.u32 %v4247, %v4250
        %v4252 = vrot.slane %v4251, 4
        %v4254 = vshll.u32 %v4008, 16
        %v4256 = vrot.slane %v4254, 5
        %v4257 = vsel %vm394, %v4252, %v4256
        %v4258 = vshrl.u32 %v4008, 16
        %v4260 = vrot.slane %v4258, 4
        %v4261 = vor.u32 %v4260, %v4256
        %v4262 = vrot.slane %v4261, 4
        %v4264 = vshll.u32 %v4009, 16
        %v4266 = vrot.slane %v4264, 5
        %v4267 = vsel %vm394, %v4262, %v4266
        %v4269 = vshrl.u32 %v4010, 16
        %v4271 = vrot.slane %v4269, 4
        %v4272 = vshll.u32 %v4010, 16
        %v4274 = vrot.slane %v4272, 5
        %v4275 = vor.u32 %v4271, %v4274
        %v4276 = vrot.slane %v4275, 4
        %v4278 = vshll.u32 %v4011, 16
        %v4280 = vrot.slane %v4278, 5
        %v4281 = vsel %vm394, %v4276, %v4280
        %v4282 = vshrl.u32 %v4011, 16
        %v4284 = vrot.slane %v4282, 4
        %v4285 = vor.u32 %v4284, %v4280
        %v4286 = vrot.slane %v4285, 4
        %v4288 = vshll.u32 %v4012, 16
        %v4290 = vrot.slane %v4288, 5
        %v4291 = vsel %vm394, %v4286, %v4290
        %v4293 = vshrl.u32 %v4013, 16
        %v4295 = vrot.slane %v4293, 4
        %v4296 = vshll.u32 %v4013, 16
        %v4298 = vrot.slane %v4296, 5
        %v4299 = vor.u32 %v4295, %v4298
        %v4300 = vrot.slane %v4299, 4
        %v4302 = vshll.u32 %v4014, 16
        %v4304 = vrot.slane %v4302, 5
        %v4305 = vsel %vm394, %v4300, %v4304
        %v4306 = vshrl.u32 %v4014, 16
        %v4308 = vrot.slane %v4306, 4
        %v4309 = vor.u32 %v4308, %v4304
        %v4310 = vrot.slane %v4309, 4
        %v4312 = vshll.u32 %v4015, 16
        %v4314 = vrot.slane %v4312, 5
        %v4315 = vsel %vm394, %v4310, %v4314
        %v4317 = vshrl.u32 %v4016, 16
        %v4319 = vrot.slane %v4317, 4
        %v4320 = vshll.u32 %v4016, 16
        %v4322 = vrot.slane %v4320, 5
        %v4323 = vor.u32 %v4319, %v4322
        %v4324 = vrot.slane %v4323, 4
        %v4326 = vshll.u32 %v4017, 16
        %v4328 = vrot.slane %v4326, 5
        %v4329 = vsel %vm394, %v4324, %v4328
        %v4330 = vshrl.u32 %v4017, 16
        %v4332 = vrot.slane %v4330, 4
        %v4333 = vor.u32 %v4332, %v4328
        %v4334 = vrot.slane %v4333, 4
        %v4336 = vshll.u32 %v4018, 16
        %v4338 = vrot.slane %v4336, 5
        %v4339 = vsel %vm394, %v4334, %v4338
        %v4341 = vshrl.u32 %v4019, 16
        %v4343 = vrot.slane %v4341, 4
        %v4344 = vshll.u32 %v4019, 16
        %v4346 = vrot.slane %v4344, 5
        %v4347 = vor.u32 %v4343, %v4346
        %v4348 = vrot.slane %v4347, 4
        %v4350 = vshll.u32 %v4020, 16
        %v4352 = vrot.slane %v4350, 5
        %v4353 = vsel %vm394, %v4348, %v4352
        %v4354 = vshrl.u32 %v4020, 16
        %v4356 = vrot.slane %v4354, 4
        %v4357 = vor.u32 %v4356, %v4352
        %v4358 = vrot.slane %v4357, 4
        %v4360 = vshll.u32 %v4021, 16
        %v4362 = vrot.slane %v4360, 5
        %v4363 = vsel %vm394, %v4358, %v4362
        %v4365 = vshrl.u32 %v4022, 16
        %v4367 = vrot.slane %v4365, 4
        %v4368 = vshll.u32 %v4022, 16
        %v4370 = vrot.slane %v4368, 5
        %v4371 = vor.u32 %v4367, %v4370
        %v4372 = vrot.slane %v4371, 4
        %v4374 = vshll.u32 %v4023, 16
        %v4376 = vrot.slane %v4374, 5
        %v4377 = vsel %vm394, %v4372, %v4376
        %v4378 = vshrl.u32 %v4023, 16
        %v4380 = vrot.slane %v4378, 4
        %v4381 = vor.u32 %v4380, %v4376
        %v4382 = vrot.slane %v4381, 4
        %v4384 = vshll.u32 %v4024, 16
        %v4386 = vrot.slane %v4384, 5
        %v4387 = vsel %vm394, %v4382, %v4386
        %v4389 = vshrl.u32 %v4025, 16
        %v4391 = vrot.slane %v4389, 4
        %v4392 = vshll.u32 %v4025, 16
        %v4394 = vrot.slane %v4392, 5
        %v4395 = vor.u32 %v4391, %v4394
        %v4396 = vrot.slane %v4395, 4
        %v4398 = vshll.u32 %v4026, 16
        %v4400 = vrot.slane %v4398, 5
        %v4401 = vsel %vm394, %v4396, %v4400
        %v4402 = vshrl.u32 %v4026, 16
        %v4404 = vrot.slane %v4402, 4
        %v4405 = vor.u32 %v4404, %v4400
        %v4406 = vrot.slane %v4405, 4
        %v4408 = vshll.u32 %v4027, 16
        %v4410 = vrot.slane %v4408, 5
        %v4411 = vsel %vm394, %v4406, %v4410
        %s4412 = scalar_lea.vmem %s2, 14
        %v4413 = vld [vmem:[%s4412] sm:$0x3]
        %v4414 = vunpack.c.l.b16 %v4041
        %v4415 = vunpack.c.l.b16 %v4051
        %v4416 = vunpack.c.l.b16 %v4065
        %v4417 = vunpack.c.l.b16 %v4075
        %v4418 = vunpack.c.l.b16 %v4089
        %v4419 = vunpack.c.l.b16 %v4099
        %v4420 = vunpack.c.l.b16 %v4113
        %v4421 = vunpack.c.l.b16 %v4123
        %v4422 = vunpack.c.l.b16 %v4137
        %v4423 = vunpack.c.l.b16 %v4147
        %v4424 = vunpack.c.l.b16 %v4161
        %v4425 = vunpack.c.l.b16 %v4171
        %v4426 = vunpack.c.l.b16 %v4185
        %v4427 = vunpack.c.l.b16 %v4195
        %v4428 = vunpack.c.l.b16 %v4209
        %v4429 = vunpack.c.l.b16 %v4219
        %v4430 = vpack.c.b16 %v4415, %v4414
        %v4431 = vpack.c.b16 %v4417, %v4416
        %v4432 = vpack.c.b16 %v4419, %v4418
        %v4433 = vpack.c.b16 %v4421, %v4420
        %v4434 = vpack.c.b16 %v4423, %v4422
        %v4435 = vpack.c.b16 %v4425, %v4424
        %v4436 = vpack.c.b16 %v4427, %v4426
        %v4437 = vpack.c.b16 %v4429, %v4428
        %v4439 = vsel %vm805, %v4430, 0
        %v4442 = vsel %vm805, %v4431, 0
        %v4445 = vsel %vm805, %v4432, 0
        %v4448 = vsel %vm805, %v4433, 0
        %v4451 = vsel %vm805, %v4434, 0
        %v4454 = vsel %vm805, %v4435, 0
        %v4457 = vsel %vm805, %v4436, 0
        %v4460 = vsel %vm805, %v4437, 0
        %v4463 = vsel %vm830, %v4413, 0
        %4465 = vmatprep.subr.bf16.mxu0 0
        %4466 = vmatpush1.bf16.msra.mxu0 0
        %4467 = vmatprep.subr.bf16.mxu0 0
        %4468 = vmatpush1.bf16.msra.mxu0 0
        %4469 = vmatprep.subr.bf16.mxu0 0
        %4470 = vmatpush1.bf16.msra.mxu0 0
        %4471 = vmatprep.subr.bf16.mxu0 0
        %4472 = vmatpush1.bf16.msra.mxu0 0
        %4473 = vmatprep.subr.bf16.mxu0 0
        %4474 = vmatpush1.bf16.msra.mxu0 0
        %4475 = vmatprep.subr.bf16.mxu0 0
        %4476 = vmatpush1.bf16.msra.mxu0 0
        %4477 = vmatprep.subr.bf16.mxu0 0
        %4478 = vmatpush1.bf16.msra.mxu0 0
        %4479 = vmatprep.subr.bf16.mxu0 0
        %4480 = vmatpush1.bf16.msra.mxu0 %v4463
        %4481 = vmatprep.subr.bf16.mxu0 0
        %4482 = vmatpush2.bf16.msra.mxu0 0
        %4483 = vmatprep.subr.bf16.mxu0 0
        %4484 = vmatpush2.bf16.msra.mxu0 0
        %4485 = vmatprep.subr.bf16.mxu0 0
        %4486 = vmatpush2.bf16.msra.mxu0 0
        %4487 = vmatprep.subr.bf16.mxu0 0
        %4488 = vmatpush2.bf16.msra.mxu0 0
        %4489 = vmatprep.subr.bf16.mxu0 0
        %4490 = vmatpush2.bf16.msra.mxu0 0
        %4491 = vmatprep.subr.bf16.mxu0 0
        %4492 = vmatpush2.bf16.msra.mxu0 0
        %4493 = vmatprep.subr.bf16.mxu0 0
        %4494 = vmatpush2.bf16.msra.mxu0 0
        %4495 = vmatprep.subr.bf16.mxu0 0
        %4496 = vmatpush2.bf16.msra.mxu0 0
        %4497 = vmatprep.mubr.bf16.mxu0 0
        %4498 = vmatmul.mubr.bf16.gmra.mxu0 %v4439
        %v4499 = vpop.f32.mrf.mxu0
        %v4500 = vadd.f32 0.0, %v4499
        %v4501 = vpop.f32.mrf.mxu0
        %v4502 = vpop.f32.mrf.mxu0
        %v4503 = vadd.f32 0.0, %v4502
        %v4504 = vpop.f32.mrf.mxu0
        %4505 = vmatprep.mubr.bf16.mxu0 0
        %4506 = vmatmul.mubr.bf16.gmra.mxu0 %v4442
        %v4507 = vpop.f32.mrf.mxu0
        %v4508 = vadd.f32 0.0, %v4507
        %v4509 = vpop.f32.mrf.mxu0
        %v4510 = vpop.f32.mrf.mxu0
        %v4511 = vadd.f32 0.0, %v4510
        %v4512 = vpop.f32.mrf.mxu0
        %4513 = vmatprep.mubr.bf16.mxu0 0
        %4514 = vmatmul.mubr.bf16.gmra.mxu0 %v4445
        %v4515 = vpop.f32.mrf.mxu0
        %v4516 = vadd.f32 0.0, %v4515
        %v4517 = vpop.f32.mrf.mxu0
        %v4518 = vpop.f32.mrf.mxu0
        %v4519 = vadd.f32 0.0, %v4518
        %v4520 = vpop.f32.mrf.mxu0
        %4521 = vmatprep.mubr.bf16.mxu0 0
        %4522 = vmatmul.mubr.bf16.gmra.mxu0 %v4448
        %v4523 = vpop.f32.mrf.mxu0
        %v4524 = vadd.f32 0.0, %v4523
        %v4525 = vpop.f32.mrf.mxu0
        %v4526 = vpop.f32.mrf.mxu0
        %v4527 = vadd.f32 0.0, %v4526
        %v4528 = vpop.f32.mrf.mxu0
        %4529 = vmatprep.mubr.bf16.mxu0 0
        %4530 = vmatmul.mubr.bf16.gmra.mxu0 %v4451
        %v4531 = vpop.f32.mrf.mxu0
        %v4532 = vadd.f32 0.0, %v4531
        %v4533 = vpop.f32.mrf.mxu0
        %v4534 = vpop.f32.mrf.mxu0
        %v4535 = vadd.f32 0.0, %v4534
        %v4536 = vpop.f32.mrf.mxu0
        %4537 = vmatprep.mubr.bf16.mxu0 0
        %4538 = vmatmul.mubr.bf16.gmra.mxu0 %v4454
        %v4539 = vpop.f32.mrf.mxu0
        %v4540 = vadd.f32 0.0, %v4539
        %v4541 = vpop.f32.mrf.mxu0
        %v4542 = vpop.f32.mrf.mxu0
        %v4543 = vadd.f32 0.0, %v4542
        %v4544 = vpop.f32.mrf.mxu0
        %4545 = vmatprep.mubr.bf16.mxu0 0
        %4546 = vmatmul.mubr.bf16.gmra.mxu0 %v4457
        %v4547 = vpop.f32.mrf.mxu0
        %v4548 = vadd.f32 0.0, %v4547
        %v4549 = vpop.f32.mrf.mxu0
        %v4550 = vpop.f32.mrf.mxu0
        %v4551 = vadd.f32 0.0, %v4550
        %v4552 = vpop.f32.mrf.mxu0
        %4553 = vmatprep.mubr.bf16.mxu0 0
        %4554 = vmatmul.mubr.bf16.gmra.mxu0 %v4460
        %v4555 = vpop.f32.mrf.mxu0
        %v4556 = vadd.f32 0.0, %v4555
        %v4557 = vpop.f32.mrf.mxu0
        %v4558 = vpop.f32.mrf.mxu0
        %v4559 = vadd.f32 0.0, %v4558
        %v4560 = vpop.f32.mrf.mxu0
        %4561 = vdwg.mxu0
        %v4562 = vadd.f32 %v3782, %v4500
        %v4563 = vadd.f32 %v3783, %v4503
        %v4564 = vadd.f32 %v3784, %v4508
        %v4565 = vadd.f32 %v3785, %v4511
        %v4566 = vadd.f32 %v3786, %v4516
        %v4567 = vadd.f32 %v3787, %v4519
        %v4568 = vadd.f32 %v3788, %v4524
        %v4569 = vadd.f32 %v3789, %v4527
        %v4570 = vadd.f32 %v3790, %v4532
        %v4571 = vadd.f32 %v3791, %v4535
        %v4572 = vadd.f32 %v3792, %v4540
        %v4573 = vadd.f32 %v3793, %v4543
        %v4574 = vadd.f32 %v3794, %v4548
        %v4575 = vadd.f32 %v3795, %v4551
        %v4576 = vadd.f32 %v3796, %v4556
        %v4577 = vadd.f32 %v3797, %v4559
        %s4578 = scalar_lea.vmem %s3, 14
        %v4579 = vld [vmem:[%s4578] sm:$0x3]
        %v4580 = vunpack.c.l.b16 %v4233
        %v4581 = vunpack.c.l.b16 %v4243
        %v4582 = vunpack.c.l.b16 %v4257
        %v4583 = vunpack.c.l.b16 %v4267
        %v4584 = vunpack.c.l.b16 %v4281
        %v4585 = vunpack.c.l.b16 %v4291
        %v4586 = vunpack.c.l.b16 %v4305
        %v4587 = vunpack.c.l.b16 %v4315
        %v4588 = vunpack.c.l.b16 %v4329
        %v4589 = vunpack.c.l.b16 %v4339
        %v4590 = vunpack.c.l.b16 %v4353
        %v4591 = vunpack.c.l.b16 %v4363
        %v4592 = vunpack.c.l.b16 %v4377
        %v4593 = vunpack.c.l.b16 %v4387
        %v4594 = vunpack.c.l.b16 %v4401
        %v4595 = vunpack.c.l.b16 %v4411
        %v4596 = vpack.c.b16 %v4581, %v4580
        %v4597 = vpack.c.b16 %v4583, %v4582
        %v4598 = vpack.c.b16 %v4585, %v4584
        %v4599 = vpack.c.b16 %v4587, %v4586
        %v4600 = vpack.c.b16 %v4589, %v4588
        %v4601 = vpack.c.b16 %v4591, %v4590
        %v4602 = vpack.c.b16 %v4593, %v4592
        %v4603 = vpack.c.b16 %v4595, %v4594
        %v4605 = vsel %vm805, %v4596, 0
        %v4608 = vsel %vm805, %v4597, 0
        %v4611 = vsel %vm805, %v4598, 0
        %v4614 = vsel %vm805, %v4599, 0
        %v4617 = vsel %vm805, %v4600, 0
        %v4620 = vsel %vm805, %v4601, 0
        %v4623 = vsel %vm805, %v4602, 0
        %v4626 = vsel %vm805, %v4603, 0
        %v4629 = vsel %vm830, %v4579, 0
        %4631 = vmatprep.subr.bf16.mxu0 0
        %4632 = vmatpush1.bf16.msra.mxu0 0
        %4633 = vmatprep.subr.bf16.mxu0 0
        %4634 = vmatpush1.bf16.msra.mxu0 0
        %4635 = vmatprep.subr.bf16.mxu0 0
        %4636 = vmatpush1.bf16.msra.mxu0 0
        %4637 = vmatprep.subr.bf16.mxu0 0
        %4638 = vmatpush1.bf16.msra.mxu0 0
        %4639 = vmatprep.subr.bf16.mxu0 0
        %4640 = vmatpush1.bf16.msra.mxu0 0
        %4641 = vmatprep.subr.bf16.mxu0 0
        %4642 = vmatpush1.bf16.msra.mxu0 0
        %4643 = vmatprep.subr.bf16.mxu0 0
        %4644 = vmatpush1.bf16.msra.mxu0 0
        %4645 = vmatprep.subr.bf16.mxu0 0
        %4646 = vmatpush1.bf16.msra.mxu0 %v4629
        %4647 = vmatprep.subr.bf16.mxu0 0
        %4648 = vmatpush2.bf16.msra.mxu0 0
        %4649 = vmatprep.subr.bf16.mxu0 0
        %4650 = vmatpush2.bf16.msra.mxu0 0
        %4651 = vmatprep.subr.bf16.mxu0 0
        %4652 = vmatpush2.bf16.msra.mxu0 0
        %4653 = vmatprep.subr.bf16.mxu0 0
        %4654 = vmatpush2.bf16.msra.mxu0 0
        %4655 = vmatprep.subr.bf16.mxu0 0
        %4656 = vmatpush2.bf16.msra.mxu0 0
        %4657 = vmatprep.subr.bf16.mxu0 0
        %4658 = vmatpush2.bf16.msra.mxu0 0
        %4659 = vmatprep.subr.bf16.mxu0 0
        %4660 = vmatpush2.bf16.msra.mxu0 0
        %4661 = vmatprep.subr.bf16.mxu0 0
        %4662 = vmatpush2.bf16.msra.mxu0 0
        %4663 = vmatprep.mubr.bf16.mxu0 0
        %4664 = vmatmul.mubr.bf16.gmra.mxu0 %v4605
        %v4665 = vpop.f32.mrf.mxu0
        %v4666 = vadd.f32 0.0, %v4665
        %v4667 = vpop.f32.mrf.mxu0
        %v4668 = vpop.f32.mrf.mxu0
        %v4669 = vadd.f32 0.0, %v4668
        %v4670 = vpop.f32.mrf.mxu0
        %4671 = vmatprep.mubr.bf16.mxu0 0
        %4672 = vmatmul.mubr.bf16.gmra.mxu0 %v4608
        %v4673 = vpop.f32.mrf.mxu0
        %v4674 = vadd.f32 0.0, %v4673
        %v4675 = vpop.f32.mrf.mxu0
        %v4676 = vpop.f32.mrf.mxu0
        %v4677 = vadd.f32 0.0, %v4676
        %v4678 = vpop.f32.mrf.mxu0
        %4679 = vmatprep.mubr.bf16.mxu0 0
        %4680 = vmatmul.mubr.bf16.gmra.mxu0 %v4611
        %v4681 = vpop.f32.mrf.mxu0
        %v4682 = vadd.f32 0.0, %v4681
        %v4683 = vpop.f32.mrf.mxu0
        %v4684 = vpop.f32.mrf.mxu0
        %v4685 = vadd.f32 0.0, %v4684
        %v4686 = vpop.f32.mrf.mxu0
        %4687 = vmatprep.mubr.bf16.mxu0 0
        %4688 = vmatmul.mubr.bf16.gmra.mxu0 %v4614
        %v4689 = vpop.f32.mrf.mxu0
        %v4690 = vadd.f32 0.0, %v4689
        %v4691 = vpop.f32.mrf.mxu0
        %v4692 = vpop.f32.mrf.mxu0
        %v4693 = vadd.f32 0.0, %v4692
        %v4694 = vpop.f32.mrf.mxu0
        %4695 = vmatprep.mubr.bf16.mxu0 0
        %4696 = vmatmul.mubr.bf16.gmra.mxu0 %v4617
        %v4697 = vpop.f32.mrf.mxu0
        %v4698 = vadd.f32 0.0, %v4697
        %v4699 = vpop.f32.mrf.mxu0
        %v4700 = vpop.f32.mrf.mxu0
        %v4701 = vadd.f32 0.0, %v4700
        %v4702 = vpop.f32.mrf.mxu0
        %4703 = vmatprep.mubr.bf16.mxu0 0
        %4704 = vmatmul.mubr.bf16.gmra.mxu0 %v4620
        %v4705 = vpop.f32.mrf.mxu0
        %v4706 = vadd.f32 0.0, %v4705
        %v4707 = vpop.f32.mrf.mxu0
        %v4708 = vpop.f32.mrf.mxu0
        %v4709 = vadd.f32 0.0, %v4708
        %v4710 = vpop.f32.mrf.mxu0
        %4711 = vmatprep.mubr.bf16.mxu0 0
        %4712 = vmatmul.mubr.bf16.gmra.mxu0 %v4623
        %v4713 = vpop.f32.mrf.mxu0
        %v4714 = vadd.f32 0.0, %v4713
        %v4715 = vpop.f32.mrf.mxu0
        %v4716 = vpop.f32.mrf.mxu0
        %v4717 = vadd.f32 0.0, %v4716
        %v4718 = vpop.f32.mrf.mxu0
        %4719 = vmatprep.mubr.bf16.mxu0 0
        %4720 = vmatmul.mubr.bf16.gmra.mxu0 %v4626
        %v4721 = vpop.f32.mrf.mxu0
        %v4722 = vadd.f32 0.0, %v4721
        %v4723 = vpop.f32.mrf.mxu0
        %v4724 = vpop.f32.mrf.mxu0
        %v4725 = vadd.f32 0.0, %v4724
        %v4726 = vpop.f32.mrf.mxu0
        %4727 = vdwg.mxu0
        %v4728 = vadd.f32 %v3964, %v4666
        %v4729 = vadd.f32 %v3965, %v4669
        %v4730 = vadd.f32 %v3966, %v4674
        %v4731 = vadd.f32 %v3967, %v4677
        %v4732 = vadd.f32 %v3968, %v4682
        %v4733 = vadd.f32 %v3969, %v4685
        %v4734 = vadd.f32 %v3970, %v4690
        %v4735 = vadd.f32 %v3971, %v4693
        %v4736 = vadd.f32 %v3972, %v4698
        %v4737 = vadd.f32 %v3973, %v4701
        %v4738 = vadd.f32 %v3974, %v4706
        %v4739 = vadd.f32 %v3975, %v4709
        %v4740 = vadd.f32 %v3976, %v4714
        %v4741 = vadd.f32 %v3977, %v4717
        %v4742 = vadd.f32 %v3978, %v4722
        %v4743 = vadd.f32 %v3979, %v4725
        %v4744 = vld [vmem:[%s3581] sm:$0xe]
        %v4745 = vld [vmem:[%s3581 + $0xc] sm:$0xe]
        %v4746 = vld [vmem:[%s3581 + $0x18] sm:$0xe]
        %v4747 = vld [vmem:[%s3581 + $0x24] sm:$0xe]
        %v4748 = vld [vmem:[%s3581 + $0x30] sm:$0xe]
        %v4749 = vld [vmem:[%s3581 + $0x3c] sm:$0xe]
        %v4750 = vld [vmem:[%s3581 + $0x48] sm:$0xe]
        %v4751 = vld [vmem:[%s3581 + $0x54] sm:$0xe]
        %v4752 = vld [vmem:[%s3599] sm:$0xe]
        %v4753 = vld [vmem:[%s3599 + $0xc] sm:$0xe]
        %v4754 = vld [vmem:[%s3599 + $0x18] sm:$0xe]
        %v4755 = vld [vmem:[%s3599 + $0x24] sm:$0xe]
        %v4756 = vld [vmem:[%s3599 + $0x30] sm:$0xe]
        %v4757 = vld [vmem:[%s3599 + $0x3c] sm:$0xe]
        %v4758 = vld [vmem:[%s3599 + $0x48] sm:$0xe]
        %v4759 = vld [vmem:[%s3599 + $0x54] sm:$0xe]
        %v4784 = vrot.slane %v4744, 5
        %v4785 = vrot.slane %v4784, 4
        %v4786 = vrot.slane %v3981, 5
        %v4787 = vsel %vm1443, %v4785, %v4786
        %v4788 = vrot.slane %v4786, 4
        %v4789 = vrot.slane %v3982, 5
        %v4790 = vsel %vm1443, %v4788, %v4789
        %v4791 = vrot.slane %v4745, 5
        %v4792 = vrot.slane %v4791, 4
        %v4793 = vrot.slane %v3984, 5
        %v4794 = vsel %vm1443, %v4792, %v4793
        %v4795 = vrot.slane %v4793, 4
        %v4796 = vrot.slane %v3985, 5
        %v4797 = vsel %vm1443, %v4795, %v4796
        %v4798 = vrot.slane %v4746, 5
        %v4799 = vrot.slane %v4798, 4
        %v4800 = vrot.slane %v3987, 5
        %v4801 = vsel %vm1443, %v4799, %v4800
        %v4802 = vrot.slane %v4800, 4
        %v4803 = vrot.slane %v3988, 5
        %v4804 = vsel %vm1443, %v4802, %v4803
        %v4805 = vrot.slane %v4747, 5
        %v4806 = vrot.slane %v4805, 4
        %v4807 = vrot.slane %v3990, 5
        %v4808 = vsel %vm1443, %v4806, %v4807
        %v4809 = vrot.slane %v4807, 4
        %v4810 = vrot.slane %v3991, 5
        %v4811 = vsel %vm1443, %v4809, %v4810
        %v4812 = vrot.slane %v4748, 5
        %v4813 = vrot.slane %v4812, 4
        %v4814 = vrot.slane %v3993, 5
        %v4815 = vsel %vm1443, %v4813, %v4814
        %v4816 = vrot.slane %v4814, 4
        %v4817 = vrot.slane %v3994, 5
        %v4818 = vsel %vm1443, %v4816, %v4817
        %v4819 = vrot.slane %v4749, 5
        %v4820 = vrot.slane %v4819, 4
        %v4821 = vrot.slane %v3996, 5
        %v4822 = vsel %vm1443, %v4820, %v4821
        %v4823 = vrot.slane %v4821, 4
        %v4824 = vrot.slane %v3997, 5
        %v4825 = vsel %vm1443, %v4823, %v4824
        %v4826 = vrot.slane %v4750, 5
        %v4827 = vrot.slane %v4826, 4
        %v4828 = vrot.slane %v3999, 5
        %v4829 = vsel %vm1443, %v4827, %v4828
        %v4830 = vrot.slane %v4828, 4
        %v4831 = vrot.slane %v4000, 5
        %v4832 = vsel %vm1443, %v4830, %v4831
        %v4833 = vrot.slane %v4751, 5
        %v4834 = vrot.slane %v4833, 4
        %v4835 = vrot.slane %v4002, 5
        %v4836 = vsel %vm1443, %v4834, %v4835
        %v4837 = vrot.slane %v4835, 4
        %v4838 = vrot.slane %v4003, 5
        %v4839 = vsel %vm1443, %v4837, %v4838
        %v4864 = vrot.slane %v4752, 5
        %v4865 = vrot.slane %v4864, 4
        %v4866 = vrot.slane %v4005, 5
        %v4867 = vsel %vm1443, %v4865, %v4866
        %v4868 = vrot.slane %v4866, 4
        %v4869 = vrot.slane %v4006, 5
        %v4870 = vsel %vm1443, %v4868, %v4869
        %v4871 = vrot.slane %v4753, 5
        %v4872 = vrot.slane %v4871, 4
        %v4873 = vrot.slane %v4008, 5
        %v4874 = vsel %vm1443, %v4872, %v4873
        %v4875 = vrot.slane %v4873, 4
        %v4876 = vrot.slane %v4009, 5
        %v4877 = vsel %vm1443, %v4875, %v4876
        %v4878 = vrot.slane %v4754, 5
        %v4879 = vrot.slane %v4878, 4
        %v4880 = vrot.slane %v4011, 5
        %v4881 = vsel %vm1443, %v4879, %v4880
        %v4882 = vrot.slane %v4880, 4
        %v4883 = vrot.slane %v4012, 5
        %v4884 = vsel %vm1443, %v4882, %v4883
        %v4885 = vrot.slane %v4755, 5
        %v4886 = vrot.slane %v4885, 4
        %v4887 = vrot.slane %v4014, 5
        %v4888 = vsel %vm1443, %v4886, %v4887
        %v4889 = vrot.slane %v4887, 4
        %v4890 = vrot.slane %v4015, 5
        %v4891 = vsel %vm1443, %v4889, %v4890
        %v4892 = vrot.slane %v4756, 5
        %v4893 = vrot.slane %v4892, 4
        %v4894 = vrot.slane %v4017, 5
        %v4895 = vsel %vm1443, %v4893, %v4894
        %v4896 = vrot.slane %v4894, 4
        %v4897 = vrot.slane %v4018, 5
        %v4898 = vsel %vm1443, %v4896, %v4897
        %v4899 = vrot.slane %v4757, 5
        %v4900 = vrot.slane %v4899, 4
        %v4901 = vrot.slane %v4020, 5
        %v4902 = vsel %vm1443, %v4900, %v4901
        %v4903 = vrot.slane %v4901, 4
        %v4904 = vrot.slane %v4021, 5
        %v4905 = vsel %vm1443, %v4903, %v4904
        %v4906 = vrot.slane %v4758, 5
        %v4907 = vrot.slane %v4906, 4
        %v4908 = vrot.slane %v4023, 5
        %v4909 = vsel %vm1443, %v4907, %v4908
        %v4910 = vrot.slane %v4908, 4
        %v4911 = vrot.slane %v4024, 5
        %v4912 = vsel %vm1443, %v4910, %v4911
        %v4913 = vrot.slane %v4759, 5
        %v4914 = vrot.slane %v4913, 4
        %v4915 = vrot.slane %v4026, 5
        %v4916 = vsel %vm1443, %v4914, %v4915
        %v4917 = vrot.slane %v4915, 4
        %v4918 = vrot.slane %v4027, 5
        %v4919 = vsel %vm1443, %v4917, %v4918
        %s4920 = scalar_lea.vmem %s2, 16
        %v4921 = vld [vmem:[%s4920] sm:$0x3]
        %v4922 = vunpack.c.l.b16 %v4787
        %v4923 = vunpack.c.l.b16 %v4790
        %v4924 = vunpack.c.l.b16 %v4794
        %v4925 = vunpack.c.l.b16 %v4797
        %v4926 = vunpack.c.l.b16 %v4801
        %v4927 = vunpack.c.l.b16 %v4804
        %v4928 = vunpack.c.l.b16 %v4808
        %v4929 = vunpack.c.l.b16 %v4811
        %v4930 = vunpack.c.l.b16 %v4815
        %v4931 = vunpack.c.l.b16 %v4818
        %v4932 = vunpack.c.l.b16 %v4822
        %v4933 = vunpack.c.l.b16 %v4825
        %v4934 = vunpack.c.l.b16 %v4829
        %v4935 = vunpack.c.l.b16 %v4832
        %v4936 = vunpack.c.l.b16 %v4836
        %v4937 = vunpack.c.l.b16 %v4839
        %v4938 = vpack.c.b16 %v4923, %v4922
        %v4939 = vpack.c.b16 %v4925, %v4924
        %v4940 = vpack.c.b16 %v4927, %v4926
        %v4941 = vpack.c.b16 %v4929, %v4928
        %v4942 = vpack.c.b16 %v4931, %v4930
        %v4943 = vpack.c.b16 %v4933, %v4932
        %v4944 = vpack.c.b16 %v4935, %v4934
        %v4945 = vpack.c.b16 %v4937, %v4936
        %v4947 = vsel %vm805, %v4938, 0
        %v4950 = vsel %vm805, %v4939, 0
        %v4953 = vsel %vm805, %v4940, 0
        %v4956 = vsel %vm805, %v4941, 0
        %v4959 = vsel %vm805, %v4942, 0
        %v4962 = vsel %vm805, %v4943, 0
        %v4965 = vsel %vm805, %v4944, 0
        %v4968 = vsel %vm805, %v4945, 0
        %v4971 = vsel %vm830, %v4921, 0
        %4973 = vmatprep.subr.bf16.mxu0 0
        %4974 = vmatpush1.bf16.msra.mxu0 0
        %4975 = vmatprep.subr.bf16.mxu0 0
        %4976 = vmatpush1.bf16.msra.mxu0 0
        %4977 = vmatprep.subr.bf16.mxu0 0
        %4978 = vmatpush1.bf16.msra.mxu0 0
        %4979 = vmatprep.subr.bf16.mxu0 0
        %4980 = vmatpush1.bf16.msra.mxu0 0
        %4981 = vmatprep.subr.bf16.mxu0 0
        %4982 = vmatpush1.bf16.msra.mxu0 0
        %4983 = vmatprep.subr.bf16.mxu0 0
        %4984 = vmatpush1.bf16.msra.mxu0 0
        %4985 = vmatprep.subr.bf16.mxu0 0
        %4986 = vmatpush1.bf16.msra.mxu0 0
        %4987 = vmatprep.subr.bf16.mxu0 0
        %4988 = vmatpush1.bf16.msra.mxu0 %v4971
        %4989 = vmatprep.subr.bf16.mxu0 0
        %4990 = vmatpush2.bf16.msra.mxu0 0
        %4991 = vmatprep.subr.bf16.mxu0 0
        %4992 = vmatpush2.bf16.msra.mxu0 0
        %4993 = vmatprep.subr.bf16.mxu0 0
        %4994 = vmatpush2.bf16.msra.mxu0 0
        %4995 = vmatprep.subr.bf16.mxu0 0
        %4996 = vmatpush2.bf16.msra.mxu0 0
        %4997 = vmatprep.subr.bf16.mxu0 0
        %4998 = vmatpush2.bf16.msra.mxu0 0
        %4999 = vmatprep.subr.bf16.mxu0 0
        %5000 = vmatpush2.bf16.msra.mxu0 0
        %5001 = vmatprep.subr.bf16.mxu0 0
        %5002 = vmatpush2.bf16.msra.mxu0 0
        %5003 = vmatprep.subr.bf16.mxu0 0
        %5004 = vmatpush2.bf16.msra.mxu0 0
        %5005 = vmatprep.mubr.bf16.mxu0 0
        %5006 = vmatmul.mubr.bf16.gmra.mxu0 %v4947
        %v5007 = vpop.f32.mrf.mxu0
        %v5008 = vadd.f32 0.0, %v5007
        %v5009 = vpop.f32.mrf.mxu0
        %v5010 = vpop.f32.mrf.mxu0
        %v5011 = vadd.f32 0.0, %v5010
        %v5012 = vpop.f32.mrf.mxu0
        %5013 = vmatprep.mubr.bf16.mxu0 0
        %5014 = vmatmul.mubr.bf16.gmra.mxu0 %v4950
        %v5015 = vpop.f32.mrf.mxu0
        %v5016 = vadd.f32 0.0, %v5015
        %v5017 = vpop.f32.mrf.mxu0
        %v5018 = vpop.f32.mrf.mxu0
        %v5019 = vadd.f32 0.0, %v5018
        %v5020 = vpop.f32.mrf.mxu0
        %5021 = vmatprep.mubr.bf16.mxu0 0
        %5022 = vmatmul.mubr.bf16.gmra.mxu0 %v4953
        %v5023 = vpop.f32.mrf.mxu0
        %v5024 = vadd.f32 0.0, %v5023
        %v5025 = vpop.f32.mrf.mxu0
        %v5026 = vpop.f32.mrf.mxu0
        %v5027 = vadd.f32 0.0, %v5026
        %v5028 = vpop.f32.mrf.mxu0
        %5029 = vmatprep.mubr.bf16.mxu0 0
        %5030 = vmatmul.mubr.bf16.gmra.mxu0 %v4956
        %v5031 = vpop.f32.mrf.mxu0
        %v5032 = vadd.f32 0.0, %v5031
        %v5033 = vpop.f32.mrf.mxu0
        %v5034 = vpop.f32.mrf.mxu0
        %v5035 = vadd.f32 0.0, %v5034
        %v5036 = vpop.f32.mrf.mxu0
        %5037 = vmatprep.mubr.bf16.mxu0 0
        %5038 = vmatmul.mubr.bf16.gmra.mxu0 %v4959
        %v5039 = vpop.f32.mrf.mxu0
        %v5040 = vadd.f32 0.0, %v5039
        %v5041 = vpop.f32.mrf.mxu0
        %v5042 = vpop.f32.mrf.mxu0
        %v5043 = vadd.f32 0.0, %v5042
        %v5044 = vpop.f32.mrf.mxu0
        %5045 = vmatprep.mubr.bf16.mxu0 0
        %5046 = vmatmul.mubr.bf16.gmra.mxu0 %v4962
        %v5047 = vpop.f32.mrf.mxu0
        %v5048 = vadd.f32 0.0, %v5047
        %v5049 = vpop.f32.mrf.mxu0
        %v5050 = vpop.f32.mrf.mxu0
        %v5051 = vadd.f32 0.0, %v5050
        %v5052 = vpop.f32.mrf.mxu0
        %5053 = vmatprep.mubr.bf16.mxu0 0
        %5054 = vmatmul.mubr.bf16.gmra.mxu0 %v4965
        %v5055 = vpop.f32.mrf.mxu0
        %v5056 = vadd.f32 0.0, %v5055
        %v5057 = vpop.f32.mrf.mxu0
        %v5058 = vpop.f32.mrf.mxu0
        %v5059 = vadd.f32 0.0, %v5058
        %v5060 = vpop.f32.mrf.mxu0
        %5061 = vmatprep.mubr.bf16.mxu0 0
        %5062 = vmatmul.mubr.bf16.gmra.mxu0 %v4968
        %v5063 = vpop.f32.mrf.mxu0
        %v5064 = vadd.f32 0.0, %v5063
        %v5065 = vpop.f32.mrf.mxu0
        %v5066 = vpop.f32.mrf.mxu0
        %v5067 = vadd.f32 0.0, %v5066
        %v5068 = vpop.f32.mrf.mxu0
        %5069 = vdwg.mxu0
        %v5070 = vadd.f32 %v4562, %v5008
        %v5071 = vadd.f32 %v4563, %v5011
        %v5072 = vadd.f32 %v4564, %v5016
        %v5073 = vadd.f32 %v4565, %v5019
        %v5074 = vadd.f32 %v4566, %v5024
        %v5075 = vadd.f32 %v4567, %v5027
        %v5076 = vadd.f32 %v4568, %v5032
        %v5077 = vadd.f32 %v4569, %v5035
        %v5078 = vadd.f32 %v4570, %v5040
        %v5079 = vadd.f32 %v4571, %v5043
        %v5080 = vadd.f32 %v4572, %v5048
        %v5081 = vadd.f32 %v4573, %v5051
        %v5082 = vadd.f32 %v4574, %v5056
        %v5083 = vadd.f32 %v4575, %v5059
        %v5084 = vadd.f32 %v4576, %v5064
        %v5085 = vadd.f32 %v4577, %v5067
        %s5086 = scalar_lea.vmem %s3, 16
        %v5087 = vld [vmem:[%s5086] sm:$0x3]
        %v5088 = vunpack.c.l.b16 %v4867
        %v5089 = vunpack.c.l.b16 %v4870
        %v5090 = vunpack.c.l.b16 %v4874
        %v5091 = vunpack.c.l.b16 %v4877
        %v5092 = vunpack.c.l.b16 %v4881
        %v5093 = vunpack.c.l.b16 %v4884
        %v5094 = vunpack.c.l.b16 %v4888
        %v5095 = vunpack.c.l.b16 %v4891
        %v5096 = vunpack.c.l.b16 %v4895
        %v5097 = vunpack.c.l.b16 %v4898
        %v5098 = vunpack.c.l.b16 %v4902
        %v5099 = vunpack.c.l.b16 %v4905
        %v5100 = vunpack.c.l.b16 %v4909
        %v5101 = vunpack.c.l.b16 %v4912
        %v5102 = vunpack.c.l.b16 %v4916
        %v5103 = vunpack.c.l.b16 %v4919
        %v5104 = vpack.c.b16 %v5089, %v5088
        %v5105 = vpack.c.b16 %v5091, %v5090
        %v5106 = vpack.c.b16 %v5093, %v5092
        %v5107 = vpack.c.b16 %v5095, %v5094
        %v5108 = vpack.c.b16 %v5097, %v5096
        %v5109 = vpack.c.b16 %v5099, %v5098
        %v5110 = vpack.c.b16 %v5101, %v5100
        %v5111 = vpack.c.b16 %v5103, %v5102
        %v5113 = vsel %vm805, %v5104, 0
        %v5116 = vsel %vm805, %v5105, 0
        %v5119 = vsel %vm805, %v5106, 0
        %v5122 = vsel %vm805, %v5107, 0
        %v5125 = vsel %vm805, %v5108, 0
        %v5128 = vsel %vm805, %v5109, 0
        %v5131 = vsel %vm805, %v5110, 0
        %v5134 = vsel %vm805, %v5111, 0
        %v5137 = vsel %vm830, %v5087, 0
        %5139 = vmatprep.subr.bf16.mxu0 0
        %5140 = vmatpush1.bf16.msra.mxu0 0
        %5141 = vmatprep.subr.bf16.mxu0 0
        %5142 = vmatpush1.bf16.msra.mxu0 0
        %5143 = vmatprep.subr.bf16.mxu0 0
        %5144 = vmatpush1.bf16.msra.mxu0 0
        %5145 = vmatprep.subr.bf16.mxu0 0
        %5146 = vmatpush1.bf16.msra.mxu0 0
        %5147 = vmatprep.subr.bf16.mxu0 0
        %5148 = vmatpush1.bf16.msra.mxu0 0
        %5149 = vmatprep.subr.bf16.mxu0 0
        %5150 = vmatpush1.bf16.msra.mxu0 0
        %5151 = vmatprep.subr.bf16.mxu0 0
        %5152 = vmatpush1.bf16.msra.mxu0 0
        %5153 = vmatprep.subr.bf16.mxu0 0
        %5154 = vmatpush1.bf16.msra.mxu0 %v5137
        %5155 = vmatprep.subr.bf16.mxu0 0
        %5156 = vmatpush2.bf16.msra.mxu0 0
        %5157 = vmatprep.subr.bf16.mxu0 0
        %5158 = vmatpush2.bf16.msra.mxu0 0
        %5159 = vmatprep.subr.bf16.mxu0 0
        %5160 = vmatpush2.bf16.msra.mxu0 0
        %5161 = vmatprep.subr.bf16.mxu0 0
        %5162 = vmatpush2.bf16.msra.mxu0 0
        %5163 = vmatprep.subr.bf16.mxu0 0
        %5164 = vmatpush2.bf16.msra.mxu0 0
        %5165 = vmatprep.subr.bf16.mxu0 0
        %5166 = vmatpush2.bf16.msra.mxu0 0
        %5167 = vmatprep.subr.bf16.mxu0 0
        %5168 = vmatpush2.bf16.msra.mxu0 0
        %5169 = vmatprep.subr.bf16.mxu0 0
        %5170 = vmatpush2.bf16.msra.mxu0 0
        %5171 = vmatprep.mubr.bf16.mxu0 0
        %5172 = vmatmul.mubr.bf16.gmra.mxu0 %v5113
        %v5173 = vpop.f32.mrf.mxu0
        %v5174 = vadd.f32 0.0, %v5173
        %v5175 = vpop.f32.mrf.mxu0
        %v5176 = vpop.f32.mrf.mxu0
        %v5177 = vadd.f32 0.0, %v5176
        %v5178 = vpop.f32.mrf.mxu0
        %5179 = vmatprep.mubr.bf16.mxu0 0
        %5180 = vmatmul.mubr.bf16.gmra.mxu0 %v5116
        %v5181 = vpop.f32.mrf.mxu0
        %v5182 = vadd.f32 0.0, %v5181
        %v5183 = vpop.f32.mrf.mxu0
        %v5184 = vpop.f32.mrf.mxu0
        %v5185 = vadd.f32 0.0, %v5184
        %v5186 = vpop.f32.mrf.mxu0
        %5187 = vmatprep.mubr.bf16.mxu0 0
        %5188 = vmatmul.mubr.bf16.gmra.mxu0 %v5119
        %v5189 = vpop.f32.mrf.mxu0
        %v5190 = vadd.f32 0.0, %v5189
        %v5191 = vpop.f32.mrf.mxu0
        %v5192 = vpop.f32.mrf.mxu0
        %v5193 = vadd.f32 0.0, %v5192
        %v5194 = vpop.f32.mrf.mxu0
        %5195 = vmatprep.mubr.bf16.mxu0 0
        %5196 = vmatmul.mubr.bf16.gmra.mxu0 %v5122
        %v5197 = vpop.f32.mrf.mxu0
        %v5198 = vadd.f32 0.0, %v5197
        %v5199 = vpop.f32.mrf.mxu0
        %v5200 = vpop.f32.mrf.mxu0
        %v5201 = vadd.f32 0.0, %v5200
        %v5202 = vpop.f32.mrf.mxu0
        %5203 = vmatprep.mubr.bf16.mxu0 0
        %5204 = vmatmul.mubr.bf16.gmra.mxu0 %v5125
        %v5205 = vpop.f32.mrf.mxu0
        %v5206 = vadd.f32 0.0, %v5205
        %v5207 = vpop.f32.mrf.mxu0
        %v5208 = vpop.f32.mrf.mxu0
        %v5209 = vadd.f32 0.0, %v5208
        %v5210 = vpop.f32.mrf.mxu0
        %5211 = vmatprep.mubr.bf16.mxu0 0
        %5212 = vmatmul.mubr.bf16.gmra.mxu0 %v5128
        %v5213 = vpop.f32.mrf.mxu0
        %v5214 = vadd.f32 0.0, %v5213
        %v5215 = vpop.f32.mrf.mxu0
        %v5216 = vpop.f32.mrf.mxu0
        %v5217 = vadd.f32 0.0, %v5216
        %v5218 = vpop.f32.mrf.mxu0
        %5219 = vmatprep.mubr.bf16.mxu0 0
        %5220 = vmatmul.mubr.bf16.gmra.mxu0 %v5131
        %v5221 = vpop.f32.mrf.mxu0
        %v5222 = vadd.f32 0.0, %v5221
        %v5223 = vpop.f32.mrf.mxu0
        %v5224 = vpop.f32.mrf.mxu0
        %v5225 = vadd.f32 0.0, %v5224
        %v5226 = vpop.f32.mrf.mxu0
        %5227 = vmatprep.mubr.bf16.mxu0 0
        %5228 = vmatmul.mubr.bf16.gmra.mxu0 %v5134
        %v5229 = vpop.f32.mrf.mxu0
        %v5230 = vadd.f32 0.0, %v5229
        %v5231 = vpop.f32.mrf.mxu0
        %v5232 = vpop.f32.mrf.mxu0
        %v5233 = vadd.f32 0.0, %v5232
        %v5234 = vpop.f32.mrf.mxu0
        %5235 = vdwg.mxu0
        %v5236 = vadd.f32 %v4728, %v5174
        %v5237 = vadd.f32 %v4729, %v5177
        %v5238 = vadd.f32 %v4730, %v5182
        %v5239 = vadd.f32 %v4731, %v5185
        %v5240 = vadd.f32 %v4732, %v5190
        %v5241 = vadd.f32 %v4733, %v5193
        %v5242 = vadd.f32 %v4734, %v5198
        %v5243 = vadd.f32 %v4735, %v5201
        %v5244 = vadd.f32 %v4736, %v5206
        %v5245 = vadd.f32 %v4737, %v5209
        %v5246 = vadd.f32 %v4738, %v5214
        %v5247 = vadd.f32 %v4739, %v5217
        %v5248 = vadd.f32 %v4740, %v5222
        %v5249 = vadd.f32 %v4741, %v5225
        %v5250 = vadd.f32 %v4742, %v5230
        %v5251 = vadd.f32 %v4743, %v5233
        %vm5252 = vcmp.eq.f32.partialorder %v5236, 0.0
        %vm5253 = vcmp.eq.f32.partialorder %v5237, 0.0
        %vm5254 = vcmp.eq.f32.partialorder %v5238, 0.0
        %vm5255 = vcmp.eq.f32.partialorder %v5239, 0.0
        %vm5256 = vcmp.eq.f32.partialorder %v5240, 0.0
        %vm5257 = vcmp.eq.f32.partialorder %v5241, 0.0
        %vm5258 = vcmp.eq.f32.partialorder %v5242, 0.0
        %vm5259 = vcmp.eq.f32.partialorder %v5243, 0.0
        %vm5260 = vcmp.eq.f32.partialorder %v5244, 0.0
        %vm5261 = vcmp.eq.f32.partialorder %v5245, 0.0
        %vm5262 = vcmp.eq.f32.partialorder %v5246, 0.0
        %vm5263 = vcmp.eq.f32.partialorder %v5247, 0.0
        %vm5264 = vcmp.eq.f32.partialorder %v5248, 0.0
        %vm5265 = vcmp.eq.f32.partialorder %v5249, 0.0
        %vm5266 = vcmp.eq.f32.partialorder %v5250, 0.0
        %vm5267 = vcmp.eq.f32.partialorder %v5251, 0.0
        %v5268 = vsel %vm5252, 1.0, %v5236
        %v5269 = vsel %vm5253, 1.0, %v5237
        %v5270 = vsel %vm5254, 1.0, %v5238
        %v5271 = vsel %vm5255, 1.0, %v5239
        %v5272 = vsel %vm5256, 1.0, %v5240
        %v5273 = vsel %vm5257, 1.0, %v5241
        %v5274 = vsel %vm5258, 1.0, %v5242
        %v5275 = vsel %vm5259, 1.0, %v5243
        %v5276 = vsel %vm5260, 1.0, %v5244
        %v5277 = vsel %vm5261, 1.0, %v5245
        %v5278 = vsel %vm5262, 1.0, %v5246
        %v5279 = vsel %vm5263, 1.0, %v5247
        %v5280 = vsel %vm5264, 1.0, %v5248
        %v5281 = vsel %vm5265, 1.0, %v5249
        %v5282 = vsel %vm5266, 1.0, %v5250
        %v5283 = vsel %vm5267, 1.0, %v5251
        %v5284 = vrcp.pop %v5268
        %v5285 = vrcp.pop %v5269
        %v5286 = vrcp.pop %v5270
        %v5287 = vrcp.pop %v5271
        %v5288 = vrcp.pop %v5272
        %v5289 = vrcp.pop %v5273
        %v5290 = vrcp.pop %v5274
        %v5291 = vrcp.pop %v5275
        %v5292 = vrcp.pop %v5276
        %v5293 = vrcp.pop %v5277
        %v5294 = vrcp.pop %v5278
        %v5295 = vrcp.pop %v5279
        %v5296 = vrcp.pop %v5280
        %v5297 = vrcp.pop %v5281
        %v5298 = vrcp.pop %v5282
        %v5299 = vrcp.pop %v5283
        %v5300 = vmul.f32 %v5070, %v5284
        %v5301 = vmul.f32 %v5071, %v5285
        %v5302 = vmul.f32 %v5072, %v5286
        %v5303 = vmul.f32 %v5073, %v5287
        %v5304 = vmul.f32 %v5074, %v5288
        %v5305 = vmul.f32 %v5075, %v5289
        %v5306 = vmul.f32 %v5076, %v5290
        %v5307 = vmul.f32 %v5077, %v5291
        %v5308 = vmul.f32 %v5078, %v5292
        %v5309 = vmul.f32 %v5079, %v5293
        %v5310 = vmul.f32 %v5080, %v5294
        %v5311 = vmul.f32 %v5081, %v5295
        %v5312 = vmul.f32 %v5082, %v5296
        %v5313 = vmul.f32 %v5083, %v5297
        %v5314 = vmul.f32 %v5084, %v5298
        %v5315 = vmul.f32 %v5085, %v5299
        %v5316 = vld [vmem:[%s4] sm:$0x1]
        %v5318 = vlaneseq
        %v5319 = vshrl.u32 %v5318, 7
        %v5320 = vsub.s32 0, %v5319
        %v5321 = vrot.slane %v5316, %v5320
        %v5323 = vadd.f32 %v5300, %v5321
        %v5324 = vadd.f32 %v5301, %v5321
        %v5325 = vadd.f32 %v5302, %v5321
        %v5326 = vadd.f32 %v5303, %v5321
        %v5327 = vadd.f32 %v5304, %v5321
        %v5328 = vadd.f32 %v5305, %v5321
        %v5329 = vadd.f32 %v5306, %v5321
        %v5330 = vadd.f32 %v5307, %v5321
        %v5331 = vadd.f32 %v5308, %v5321
        %v5332 = vadd.f32 %v5309, %v5321
        %v5333 = vadd.f32 %v5310, %v5321
        %v5334 = vadd.f32 %v5311, %v5321
        %v5335 = vadd.f32 %v5312, %v5321
        %v5336 = vadd.f32 %v5313, %v5321
        %v5337 = vadd.f32 %v5314, %v5321
        %v5338 = vadd.f32 %v5315, %v5321
        %v5339 = vsel %vm5252, 0.0, %v5323
        %v5340 = vsel %vm5253, 0.0, %v5324
        %v5341 = vsel %vm5254, 0.0, %v5325
        %v5342 = vsel %vm5255, 0.0, %v5326
        %v5343 = vsel %vm5256, 0.0, %v5327
        %v5344 = vsel %vm5257, 0.0, %v5328
        %v5345 = vsel %vm5258, 0.0, %v5329
        %v5346 = vsel %vm5259, 0.0, %v5330
        %v5347 = vsel %vm5260, 0.0, %v5331
        %v5348 = vsel %vm5261, 0.0, %v5332
        %v5349 = vsel %vm5262, 0.0, %v5333
        %v5350 = vsel %vm5263, 0.0, %v5334
        %v5351 = vsel %vm5264, 0.0, %v5335
        %v5352 = vsel %vm5265, 0.0, %v5336
        %v5353 = vsel %vm5266, 0.0, %v5337
        %v5354 = vsel %vm5267, 0.0, %v5338
        %5355 = vst [vmem:[%s308] sm:$0xff] %v5339
        %5356 = vst [vmem:[%s308 + $0x8] sm:$0xff] %v5340
        %5357 = vst [vmem:[%s308 + $0x10] sm:$0xff] %v5341
        %5358 = vst [vmem:[%s308 + $0x18] sm:$0xff] %v5342
        %5359 = vst [vmem:[%s308 + $0x20] sm:$0xff] %v5343
        %5360 = vst [vmem:[%s308 + $0x28] sm:$0xff] %v5344
        %5361 = vst [vmem:[%s308 + $0x30] sm:$0xff] %v5345
        %5362 = vst [vmem:[%s308 + $0x38] sm:$0xff] %v5346
        %5363 = vst [vmem:[%s308 + $0x40] sm:$0xff] %v5347
        %5364 = vst [vmem:[%s308 + $0x48] sm:$0xff] %v5348
        %5365 = vst [vmem:[%s308 + $0x50] sm:$0xff] %v5349
        %5366 = vst [vmem:[%s308 + $0x58] sm:$0xff] %v5350
        %5367 = vst [vmem:[%s308 + $0x60] sm:$0xff] %v5351
        %5368 = vst [vmem:[%s308 + $0x68] sm:$0xff] %v5352
        %5369 = vst [vmem:[%s308 + $0x70] sm:$0xff] %v5353
        %5370 = vst [vmem:[%s308 + $0x78] sm:$0xff] %v5354
        %v5371 = vsel %vm5252, 0.0, 1.0
        %v5372 = vsel %vm5253, 0.0, 1.0
        %v5373 = vsel %vm5254, 0.0, 1.0
        %v5374 = vsel %vm5255, 0.0, 1.0
        %v5375 = vsel %vm5256, 0.0, 1.0
        %v5376 = vsel %vm5257, 0.0, 1.0
        %v5377 = vsel %vm5258, 0.0, 1.0
        %v5378 = vsel %vm5259, 0.0, 1.0
        %v5379 = vsel %vm5260, 0.0, 1.0
        %v5380 = vsel %vm5261, 0.0, 1.0
        %v5381 = vsel %vm5262, 0.0, 1.0
        %v5382 = vsel %vm5263, 0.0, 1.0
        %v5383 = vsel %vm5264, 0.0, 1.0
        %v5384 = vsel %vm5265, 0.0, 1.0
        %v5385 = vsel %vm5266, 0.0, 1.0
        %v5386 = vsel %vm5267, 0.0, 1.0
        %v5387 = vpack.c.bf16 %v5372, %v5371
        %v5388 = vpack.c.bf16 %v5374, %v5373
        %v5389 = vpack.c.bf16 %v5376, %v5375
        %v5390 = vpack.c.bf16 %v5378, %v5377
        %v5391 = vpack.c.bf16 %v5380, %v5379
        %v5392 = vpack.c.bf16 %v5382, %v5381
        %v5393 = vpack.c.bf16 %v5384, %v5383
        %v5394 = vpack.c.bf16 %v5386, %v5385
        %v5403 = vunpack.c.l.b16 %v5387
        %v5404 = vunpack.c.h.b16 %v5387
        %v5405 = vunpack.c.l.b16 %v5388
        %v5406 = vunpack.c.h.b16 %v5388
        %v5407 = vunpack.c.l.b16 %v5389
        %v5408 = vunpack.c.h.b16 %v5389
        %v5409 = vunpack.c.l.b16 %v5390
        %v5410 = vunpack.c.h.b16 %v5390
        %v5411 = vunpack.c.l.b16 %v5391
        %v5412 = vunpack.c.h.b16 %v5391
        %v5413 = vunpack.c.l.b16 %v5392
        %v5414 = vunpack.c.h.b16 %v5392
        %v5415 = vunpack.c.l.b16 %v5393
        %v5416 = vunpack.c.h.b16 %v5393
        %v5417 = vunpack.c.l.b16 %v5394
        %v5418 = vunpack.c.h.b16 %v5394
        %v5419 = vpack.c.b16 %v5403, %v5403
        %v5420 = vpack.c.b16 %v5404, %v5404
        %v5421 = vpack.c.b16 %v5405, %v5405
        %v5422 = vpack.c.b16 %v5406, %v5406
        %v5423 = vpack.c.b16 %v5407, %v5407
        %v5424 = vpack.c.b16 %v5408, %v5408
        %v5425 = vpack.c.b16 %v5409, %v5409
        %v5426 = vpack.c.b16 %v5410, %v5410
        %v5427 = vpack.c.b16 %v5411, %v5411
        %v5428 = vpack.c.b16 %v5412, %v5412
        %v5429 = vpack.c.b16 %v5413, %v5413
        %v5430 = vpack.c.b16 %v5414, %v5414
        %v5431 = vpack.c.b16 %v5415, %v5415
        %v5432 = vpack.c.b16 %v5416, %v5416
        %v5433 = vpack.c.b16 %v5417, %v5417
        %v5434 = vpack.c.b16 %v5418, %v5418
        %5451 = vst [vmem:[%s315] sm:$0xf] %v5419
        %5452 = vst [vmem:[%s315 + $0x4] sm:$0xf] %v5420
        %5453 = vst [vmem:[%s315 + $0x8] sm:$0xf] %v5421
        %5454 = vst [vmem:[%s315 + $0xc] sm:$0xf] %v5422
        %5455 = vst [vmem:[%s315 + $0x10] sm:$0xf] %v5423
        %5456 = vst [vmem:[%s315 + $0x14] sm:$0xf] %v5424
        %5457 = vst [vmem:[%s315 + $0x18] sm:$0xf] %v5425
        %5458 = vst [vmem:[%s315 + $0x1c] sm:$0xf] %v5426
        %5459 = vst [vmem:[%s315 + $0x20] sm:$0xf] %v5427
        %5460 = vst [vmem:[%s315 + $0x24] sm:$0xf] %v5428
        %5461 = vst [vmem:[%s315 + $0x28] sm:$0xf] %v5429
        %5462 = vst [vmem:[%s315 + $0x2c] sm:$0xf] %v5430
        %5463 = vst [vmem:[%s315 + $0x30] sm:$0xf] %v5431
        %5464 = vst [vmem:[%s315 + $0x34] sm:$0xf] %v5432
        %5465 = vst [vmem:[%s315 + $0x38] sm:$0xf] %v5433
        %5466 = vst [vmem:[%s315 + $0x3c] sm:$0xf] %v5434
        %v5467 = vadd.f32 %v5339, %v5340
        %v5468 = vadd.f32 %v5467, %v5341
        %v5469 = vadd.f32 %v5468, %v5342
        %v5470 = vadd.f32 %v5469, %v5343
        %v5471 = vadd.f32 %v5470, %v5344
        %v5472 = vadd.f32 %v5471, %v5345
        %v5473 = vadd.f32 %v5472, %v5346
        %v5474 = vadd.f32 %v5473, %v5347
        %v5475 = vadd.f32 %v5474, %v5348
        %v5476 = vadd.f32 %v5475, %v5349
        %v5477 = vadd.f32 %v5476, %v5350
        %v5478 = vadd.f32 %v5477, %v5351
        %v5479 = vadd.f32 %v5478, %v5352
        %v5480 = vadd.f32 %v5479, %v5353
        %v5481 = vadd.f32 %v5480, %v5354
        %v5482 = vrot.slane %v5481, 4
        %v5483 = vadd.f32 %v5481, %v5482
        %v5484 = vrot.slane %v5483, 2
        %v5485 = vadd.f32 %v5483, %v5484
        %v5486 = vrot.slane %v5485, 1
        %v5487 = vadd.f32 %v5485, %v5486
        %5488 = vst [vmem:[%s322] sm:$0x1] %v5487
        %v5489 = vmul.f32 %v5339, %v5339
        %v5490 = vmul.f32 %v5340, %v5340
        %v5491 = vmul.f32 %v5341, %v5341
        %v5492 = vmul.f32 %v5342, %v5342
        %v5493 = vmul.f32 %v5343, %v5343
        %v5494 = vmul.f32 %v5344, %v5344
        %v5495 = vmul.f32 %v5345, %v5345
        %v5496 = vmul.f32 %v5346, %v5346
        %v5497 = vmul.f32 %v5347, %v5347
        %v5498 = vmul.f32 %v5348, %v5348
        %v5499 = vmul.f32 %v5349, %v5349
        %v5500 = vmul.f32 %v5350, %v5350
        %v5501 = vmul.f32 %v5351, %v5351
        %v5502 = vmul.f32 %v5352, %v5352
        %v5503 = vmul.f32 %v5353, %v5353
        %v5504 = vmul.f32 %v5354, %v5354
        %v5505 = vadd.f32 %v5489, %v5490
        %v5506 = vadd.f32 %v5505, %v5491
        %v5507 = vadd.f32 %v5506, %v5492
        %v5508 = vadd.f32 %v5507, %v5493
        %v5509 = vadd.f32 %v5508, %v5494
        %v5510 = vadd.f32 %v5509, %v5495
        %v5511 = vadd.f32 %v5510, %v5496
        %v5512 = vadd.f32 %v5511, %v5497
        %v5513 = vadd.f32 %v5512, %v5498
        %v5514 = vadd.f32 %v5513, %v5499
        %v5515 = vadd.f32 %v5514, %v5500
        %v5516 = vadd.f32 %v5515, %v5501
        %v5517 = vadd.f32 %v5516, %v5502
        %v5518 = vadd.f32 %v5517, %v5503
        %v5519 = vadd.f32 %v5518, %v5504
        %v5520 = vrot.slane %v5519, 4
        %v5521 = vadd.f32 %v5519, %v5520
        %v5522 = vrot.slane %v5521, 2
        %v5523 = vadd.f32 %v5521, %v5522
        %v5524 = vrot.slane %v5523, 1
        %v5525 = vadd.f32 %v5523, %v5524
        %5526 = vst [vmem:[%s322 + $0x1] sm:$0x1] %v5525
        %s5527 = sand.u32 %s162, 1
        %s5528 = scalar_lea.sflag [#allocation3], %s5527
        %s5529 = sand.u32 %s162, 1
        %s5530 = smul.addr %s5529, 128
        %s5531 = scalar_lea.vmem [#allocation2], %s5530
        %s5532 = sand.u32 %s25, 1
        %s5533 = scalar_lea.sflag [#allocation5], %s5532
        %s5534 = sand.u32 %s190, 1
        %s5535 = smul.addr %s5534, 64
        %s5536 = scalar_lea.vmem [#allocation4], %s5535
        %s5537 = sand.u32 %s25, 1
        %s5538 = scalar_lea.sflag [#allocation5], %s5537
        %s5539 = sand.u32 %s218, 1
        %s5540 = smul.addr %s5539, 2
        %s5541 = scalar_lea.vmem [#allocation6], %s5540
        // Predicated region
        $region41: #{tpu_custom_call.1} parent=39 // pred_check
          %p5542 = pneg %p172
        $region42: #{tpu_custom_call.1} parent=39 // pred_check_branch
          %5544 = sbr.rel (%p5542) target = $region44
        $region43: #{tpu_custom_call.1} parent=39 // pred_region
          %s5545 = smul.u32 8, %s30
          %s5547 = ssub.s32 2048, 2048
          %5548 = vsyncadd %s5528, %s5547
          %s5549 = smul.addr %s5545, 2
          %s5550 = smul.addr %s29, 32
          %s5551 = sadd.s32 %s5549, %s5550
          %s5552 = smul.addr %s5551, 128
          %s5553 = scalar_lea.hbm %s5, %s5552
          %s5554 = sshll.u32 %s5531, 4
          %s5555 = int_to_ptr.vmem [resolvable:$true] %s5554
          %5560 = dma.vmem_to_hbm [thread:$0]  %s5555, 2048, %s5553, %s5528, 128, 128, 8
        $region44: #{tpu_custom_call.1} parent=39 // pred_fallthru
          _
        // Predicated region
        $region45: #{tpu_custom_call.1} parent=39 // pred_check
          %p5561 = pneg %p200
        $region46: #{tpu_custom_call.1} parent=39 // pred_check_branch
          %5563 = sbr.rel (%p5561) target = $region48
        $region47: #{tpu_custom_call.1} parent=39 // pred_region
          %s5564 = smul.u32 8, %s30
          %s5566 = ssub.s32 1024, 1024
          %5567 = vsyncadd %s5533, %s5566
          %s5568 = smul.addr %s5564, 2
          %s5569 = smul.addr %s29, 32
          %s5570 = sadd.s32 %s5568, %s5569
          %s5571 = smul.addr %s5570, 64
          %s5572 = scalar_lea.hbm %s6, %s5571
          %s5573 = sshll.u32 %s5536, 4
          %s5574 = int_to_ptr.vmem [resolvable:$true] %s5573
          %5579 = dma.vmem_to_hbm [thread:$0]  %s5574, 1024, %s5572, %s5533, 64, 64, 4
        $region48: #{tpu_custom_call.1} parent=39 // pred_fallthru
          _
        // Predicated region
        $region49: #{tpu_custom_call.1} parent=39 // pred_check
          %p5580 = pneg %p228
        $region50: #{tpu_custom_call.1} parent=39 // pred_check_branch
          %5582 = sbr.rel (%p5580) target = $region52
        $region51: #{tpu_custom_call.1} parent=39 // pred_region
          %s5584 = ssub.s32 32, 32
          %5585 = vsyncadd %s5538, %s5584
          %s5586 = smul.addr %s29, 2
          %s5587 = sadd.s32 %s30, %s5586
          %s5588 = smul.addr %s5587, 32
          %s5589 = scalar_lea.hbm %s7, %s5588
          %s5591 = sshll.u32 %s5541, 4
          %s5592 = int_to_ptr.vmem [resolvable:$true] %s5591
          %5594 = dma.vmem_to_hbm [thread:$0]  %s5592, 32, %s5589, %s5538
        $region52: #{tpu_custom_call.1} parent=39 // pred_fallthru
          _
      $region40: #{tpu_custom_call.1} parent=5 // pred_fallthru
        _
      %p5595 = scmp.le.s32.totalorder 2, %s20
      // Predicated region
      $region53: #{tpu_custom_call.1} parent=5 // pred_check
        %p5596 = pneg %p5595
      $region54: #{tpu_custom_call.1} parent=5 // pred_check_branch
        %5598 = sbr.rel (%p5596) target = $region56
      $region55: #{tpu_custom_call.1} parent=5 // pred_region
        %s5599 = ssub.s32 %s20, 2
        // Predicated region
        $region57: #{tpu_custom_call.1} parent=55 // pred_check
          %p5600 = pneg %p178
        $region58: #{tpu_custom_call.1} parent=55 // pred_check_branch
          %5602 = sbr.rel (%p5600) target = $region60
        $region59: #{tpu_custom_call.1} parent=55 // pred_region
          %s5603 = sand.u32 %s163, 1
          %s5604 = scalar_lea.sflag [#allocation3], %s5603
          %s5605 = sand.u32 %s163, 1
          %s5606 = smul.addr %s5605, 128
          %s5607 = scalar_lea.vmem [#allocation2], %s5606
          %5608 = dma.done %s5604, 2048
        $region60: #{tpu_custom_call.1} parent=55 // pred_fallthru
          _
        // Predicated region
        $region61: #{tpu_custom_call.1} parent=55 // pred_check
          %p5609 = pneg %p206
        $region62: #{tpu_custom_call.1} parent=55 // pred_check_branch
          %5611 = sbr.rel (%p5609) target = $region64
        $region63: #{tpu_custom_call.1} parent=55 // pred_region
          %s5612 = sand.u32 %s26, 1
          %s5613 = scalar_lea.sflag [#allocation5], %s5612
          %s5614 = sand.u32 %s191, 1
          %s5615 = smul.addr %s5614, 64
          %s5616 = scalar_lea.vmem [#allocation4], %s5615
          %5617 = dma.done %s5613, 1024
        $region64: #{tpu_custom_call.1} parent=55 // pred_fallthru
          _
        // Predicated region
        $region65: #{tpu_custom_call.1} parent=55 // pred_check
          %p5618 = pneg %p234
        $region66: #{tpu_custom_call.1} parent=55 // pred_check_branch
          %5620 = sbr.rel (%p5618) target = $region68
        $region67: #{tpu_custom_call.1} parent=55 // pred_region
          %s5621 = sand.u32 %s26, 1
          %s5622 = scalar_lea.sflag [#allocation5], %s5621
          %s5623 = sand.u32 %s219, 1
          %s5624 = smul.addr %s5623, 2
          %s5625 = scalar_lea.vmem [#allocation6], %s5624
          %5626 = dma.done %s5622, 32
        $region68: #{tpu_custom_call.1} parent=55 // pred_fallthru
          _
      $region56: #{tpu_custom_call.1} parent=5 // pred_fallthru
        _
    $region6: #{tpu_custom_call.1} parent=1 // loop_footer
      %s24 = sadd.s32 1, %s20
    $region7: #{tpu_custom_call.1} parent=1 // loop_footer_branch
      %19 = sbr.rel target = $region3
    $region8: #{tpu_custom_call.1} parent=1 // loop_exit
      _
    %5627 = vsyncpa [#allocation3], 1
    %s5628 = scalar_lea.sflag [#allocation3], 1
    %5629 = vsyncpa %s5628, 1
    %5630 = vsyncpa [#allocation5], 1
    %s5631 = scalar_lea.sflag [#allocation5], 1
    %5632 = vsyncpa %s5631, 1

</llo_original>
